<compile_context>
chip_gen: v7x
topology: tpu7x:2x2x1
jax: 0.10.0
libtpu: 0.0.40
codegen_flags: <defaults>
</compile_context>

<pallas_src>
import functools

import jax
import jax.numpy as jnp
from jax.experimental import pallas as pl
from jax.experimental.pallas import tpu as pltpu


def _round_up(x, m):
    return (x + m - 1) // m * m


def _cdiv(a, b):
    return -(-a // b)


# ----------------------------------------------------------------------------
# Generation-aware VMEM budgets
# ----------------------------------------------------------------------------
_VMEM_CFG = None


def _vmem_cfg():
    """Returns (per-step block budget, scoped vmem limit) from the chip's VMEM."""
    global _VMEM_CFG
    if _VMEM_CFG is None:
        cap = 64 * 1024 * 1024                       # conservative fallback (v7x size)
        try:
            info = pltpu.get_tpu_info()
            cap = int(getattr(info, "vmem_capacity_bytes", cap)) or cap
        except Exception:
            pass
        block_budget = min(cap // 4, 32 * 1024 * 1024)   # 32 MiB on 128-MiB chips, 16 MiB on v7x
        vmem_limit = min((cap * 3) // 4, 96 * 1024 * 1024)
        _VMEM_CFG = (block_budget, vmem_limit)
    return _VMEM_CFG


# ----------------------------------------------------------------------------
# Pallas kernel 1: tiled matmul (bf16 / int8-weight) + fused scale / bias / ReLU
# ----------------------------------------------------------------------------
def _matmul_kernel(x_ref, w_ref, s_ref, b_ref, o_ref, acc_ref, *, relu):
    @pl.when(pl.program_id(2) == 0)
    def _():
        acc_ref[...] = jnp.zeros_like(acc_ref)

    acc_ref[...] += jnp.dot(
        x_ref[...],
        w_ref[...].astype(jnp.bfloat16),   # no-op for bf16 weights, dequant for int8
        preferred_element_type=jnp.float32,
    )

    @pl.when(pl.program_id(2) == pl.num_programs(2) - 1)
    def _():
        r = acc_ref[...] * s_ref[...] + b_ref[...]
        if relu:
            r = jnp.maximum(r, 0.0)
        o_ref[...] = r.astype(o_ref.dtype)


_TM_DIVS = (4096, 3584, 3072, 2816, 2560, 2304, 2048, 1792, 1536, 1280, 1024,
            896, 768, 640, 512, 448, 384, 320, 256, 192, 128, 96, 64, 48, 32, 16)


def _plan_matmul(M, K, N, w_bytes, out_bytes, budget):
    """Pick (tm, tk, tn) so the double-buffered working set fits `budget`."""
    Kp = _round_up(K, 32)
    if M <= 4096:
        tm = _round_up(M, 16)                     # single (or few) full M blocks
    else:
        tm = next((c for c in _TM_DIVS if M % c == 0), 2048)
    Mp = _round_up(M, tm)

    if N <= 2048:
        tn, Np = N, N                             # full-dim lane block, no padding
    else:
        tn = next((c for c in (2048, 1024, 512, 256, 128) if N % c == 0), 2048)
        Np = _round_up(N, tn)

    fixed = 2 * tm * tn * out_bytes + tm * tn * 4 + 8 * tn * 4
    denom = 2 * tm * 2 + 2 * tn * w_bytes         # x (bf16) + w, double buffered
    if denom * Kp + fixed <= budget:
        tk = Kp
    else:
        cap = max(((budget - fixed) // denom) // 128 * 128, 128)
        tk = next((c for c in range(min(cap, Kp), 127, -128) if Kp % c == 0),
                  min(cap, Kp))
    Kp = _round_up(Kp, tk)
    return tm, tk, tn, Mp, Kp, Np


def matmul_bias_act(x, w, b, *, scale=None, relu=False, out_dtype=jnp.bfloat16):
    """out = act((x @ dequant(w)) * scale + b); x:[M,K] bf16, w:[K,N] bf16|int8."""
    M, K = x.shape
    K2, N = w.shape
    assert K == K2
    x = x.astype(jnp.bfloat16)
    if w.dtype != jnp.int8:
        w = w.astype(jnp.bfloat16)
    b = b.astype(jnp.float32)
    scale = (jnp.ones((N,), jnp.float32) if scale is None
             else jnp.asarray(scale, jnp.float32).reshape(-1))

    budget, vmem_limit = _vmem_cfg()
    out_bytes = jnp.dtype(out_dtype).itemsize
    w_bytes = jnp.dtype(w.dtype).itemsize
    tm, tk, tn, Mp, Kp, Np = _plan_matmul(M, K, N, w_bytes, out_bytes, budget)

    xp = x if (Mp == M and Kp == K) else jnp.pad(x, ((0, Mp - M), (0, Kp - K)))
    wp = w if (Kp == K and Np == N) else jnp.pad(w, ((0, Kp - K), (0, Np - N)))
    sp = (scale if Np == N else jnp.pad(scale, (0, Np - N))).reshape(1, Np)
    bp = (b if Np == N else jnp.pad(b, (0, Np - N))).reshape(1, Np)

    gm, gn, gk = Mp // tm, Np // tn, Kp // tk
    kernel = functools.partial(_matmul_kernel, relu=relu)

    cost = pl.CostEstimate(
        flops=int(2 * M * K * N),
        transcendentals=0,
        # Count re-streaming: x is re-read per N tile, w per M tile.
        bytes_accessed=int(Mp * Kp * 2 * gn + Kp * Np * w_bytes * gm
                           + Mp * Np * out_bytes + 2 * Np * 4),
    )

    out = pl.pallas_call(
        kernel,
        out_shape=jax.ShapeDtypeStruct((Mp, Np), out_dtype),
        grid_spec=pltpu.PrefetchScalarGridSpec(
            num_scalar_prefetch=0,
            grid=(gm, gn, gk),
            in_specs=[
                pl.BlockSpec((tm, tk), lambda i, j, k: (i, k)),
                pl.BlockSpec((tk, tn), lambda i, j, k: (k, j)),
                pl.BlockSpec((1, tn), lambda i, j, k: (0, j)),
                pl.BlockSpec((1, tn), lambda i, j, k: (0, j)),
            ],
            out_specs=pl.BlockSpec((tm, tn), lambda i, j, k: (i, j)),
            scratch_shapes=[pltpu.VMEM((tm, tn), jnp.float32)],
        ),
        compiler_params=pltpu.CompilerParams(
            dimension_semantics=("parallel", "parallel", "arbitrary"),
            vmem_limit_bytes=vmem_limit,
        ),
        cost_estimate=cost,
    )(xp, wp, sp, bp)

    if Mp != M or Np != N:
        out = out[:M, :N]
    return out


# ----------------------------------------------------------------------------
# Pallas kernel 2: fused 3x3 / pad-1 conv (no HBM im2col)
# ----------------------------------------------------------------------------
def _conv3x3_kernel(x0_ref, x1_ref, w_ref, b_ref, o_ref, xs_ref, acc_ref,
                    *, tm, halo, cin, wp, relu):
    # Assemble the row slab: current block + halo rows from the next block.
    xs_ref[:tm, :] = x0_ref[...]
    xs_ref[tm:tm + halo, :] = x1_ref[:halo, :]
    # The 9 (dy,dx) taps = 9 shifted matmuls accumulated in f32 ("in-VMEM im2col").
    for t in range(9):
        off = (t // 3) * wp + (t % 3)
        d = jnp.dot(xs_ref[pl.ds(off, tm), :],
                    w_ref[pl.ds(t * cin, cin), :],
                    preferred_element_type=jnp.float32)
        if t == 0:
            acc_ref[...] = d
        else:
            acc_ref[...] += d
    r = acc_ref[...] + b_ref[...]
    if relu:
        r = jnp.maximum(r, 0.0)
    o_ref[...] = r.astype(o_ref.dtype)


def _plan_conv_rows(M, cin, cout, halo, budget):
    halo_a = _round_up(halo, 16)
    fixed = 2 * (9 * cin) * cout * 2 + halo_a * cin * 2 + 4 * cout * 4
    per_row = 10 * cin + 8 * cout         # x0+x1 (dbl-buf) + out (dbl-buf) + xs + acc
    cap = max((budget - fixed) // per_row, halo_a, 16)
    if M <= cap:
        tm = _round_up(M, 16)
    else:
        tm = _round_up(_cdiv(M, _cdiv(M, cap)), 16)
    return max(tm, halo_a)


def conv3x3_fused(x, wmat9, bias, *, relu=True, out_dtype=jnp.bfloat16):
    """3x3 / pad-1 conv (NHWC).  The conv is evaluated over a flat, spatially
    padded (B,H+2,W+2) row grid so every tap is just a constant row offset; the
    (few) garbage border rows/cols are computed and sliced off afterwards."""
    B, H, W, C = x.shape
    K9, Cout = wmat9.shape
    assert K9 == 9 * C
    Hp, Wp = H + 2, W + 2
    M = B * Hp * Wp
    halo = 2 * Wp + 2

    budget, vmem_limit = _vmem_cfg()
    tm = _plan_conv_rows(M, C, Cout, halo, budget)
    G = _cdiv(M, tm)

    xf = jnp.pad(x.astype(jnp.bfloat16), ((0, 0), (1, 1), (1, 1), (0, 0)))
    xf = xf.reshape(M, C)
    xf = jnp.pad(xf, ((0, (G + 1) * tm - M), (0, 0)))   # grid + halo zero padding
    b2 = bias.astype(jnp.float32).reshape(1, Cout)
    w9 = wmat9.astype(jnp.bfloat16)

    kernel = functools.partial(_conv3x3_kernel, tm=tm, halo=halo, cin=C, wp=Wp,
                               relu=relu)
    out_bytes = jnp.dtype(out_dtype).itemsize
    cost = pl.CostEstimate(
        flops=int(2 * G * tm * 9 * C * Cout),
        transcendentals=0,
        # TODO(synk): x is read ~2x (block + halo view); a halo-sized second
        # BlockSpec (or manual DMA) would bring it back to ~1x.
        bytes_accessed=int(2 * xf.size * 2 + w9.size * 2 + Cout * 4
                           + G * tm * Cout * out_bytes),
    )

    out = pl.pallas_call(
        kernel,
        out_shape=jax.ShapeDtypeStruct((G * tm, Cout), out_dtype),
        grid_spec=pltpu.PrefetchScalarGridSpec(
            num_scalar_prefetch=0,
            grid=(G,),
            in_specs=[
                pl.BlockSpec((tm, C), lambda i: (i, 0)),
                pl.BlockSpec((tm, C), lambda i: (i + 1, 0)),    # halo source
                pl.BlockSpec((9 * C, Cout), lambda i: (0, 0)),  # weight: DMA'd once
                pl.BlockSpec((1, Cout), lambda i: (0, 0)),
            ],
            out_specs=pl.BlockSpec((tm, Cout), lambda i: (i, 0)),
            scratch_shapes=[
                pltpu.VMEM((tm + _round_up(halo, 16), C), jnp.bfloat16),
                pltpu.VMEM((tm, Cout), jnp.float32),
            ],
        ),
        compiler_params=pltpu.CompilerParams(
            dimension_semantics=("parallel",),
            vmem_limit_bytes=vmem_limit,
        ),
        cost_estimate=cost,
    )(xf, xf, w9, b2)

    # TODO(synk): for Cout=64 layers, packing two spatial positions per output
    # row would make the stores lane-dense (minor once im2col is gone).
    return out[:M].reshape(B, Hp, Wp, Cout)[:, :H, :W, :]


# ----------------------------------------------------------------------------
# Conv / deconv / pooling / resize glue
# ----------------------------------------------------------------------------
def conv2d_im2col(x, wmat, bias, *, kh, kw, padding, relu, scale=None,
                  out_dtype=jnp.bfloat16):
    """Generic conv via im2col + the Pallas matmul.  Only used where the patch
    matrix is tiny (conv1_1 with Cin=3) or degenerate (1x1 and "fc" convs)."""
    B, H, W, Cin = x.shape
    K, Cout = wmat.shape
    assert K == kh * kw * Cin
    p = int(padding)
    xp = jnp.pad(x, ((0, 0), (p, p), (p, p), (0, 0))) if p else x
    Ho = H + 2 * p - kh + 1
    Wo = W + 2 * p - kw + 1
    if kh == 1 and kw == 1:
        patches = xp.reshape(B * Ho * Wo, Cin)           # 1x1 conv: free reshape
    elif Ho == 1 and Wo == 1:
        patches = xp.reshape(B, K)                       # "fc" conv: NHWC == im2col order
    else:
        cols = [xp[:, dy:dy + Ho, dx:dx + Wo, :] for dy in range(kh) for dx in range(kw)]
        patches = jnp.concatenate(cols, axis=-1).reshape(B * Ho * Wo, K)
    out = matmul_bias_act(patches, wmat, bias, scale=scale, relu=relu,
                          out_dtype=out_dtype)
    return out.reshape(B, Ho, Wo, Cout)


def _deconv_phase_wmat(wt, stride):
    """ConvTranspose2d weight [Cin, Cout, 2s, 2s] (stride s, padding s//2) ->
    [(u,v,ci), (phase_h, phase_w, co)] matrix of the sub-pixel decomposition."""
    s = stride
    cin, cout, kh, kw = wt.shape
    assert kh == 2 * s and kw == 2 * s
    w6 = wt.reshape(cin, cout, 2, s, 2, s)          # (ci, co, ih, ph, iw, pw)
    w6 = jnp.transpose(w6, (2, 4, 0, 3, 5, 1))      # (ih, iw, ci, ph, pw, co)
    w6 = w6[::-1, ::-1]                             # index by (u, v) = (1 - ih, 1 - iw)
    return w6.reshape(4 * cin, s * s * cout)


def conv_transpose_phase(x, wm, *, stride, cout, out_dtype=jnp.float32):
    """ConvTranspose2d(k=2s, stride=s, padding=s//2, bias=False) via sub-pixel
    phase decomposition: each output phase is a 2x2 conv of the un-dilated
    input -> one small dense Pallas matmul + a pixel shuffle."""
    B, Hi, Wi, C = x.shape
    s = stride
    assert wm.shape == (4 * C, s * s * cout)
    xp = jnp.pad(x, ((0, 0), (1, 1), (1, 1), (0, 0)))
    Ho2, Wo2 = Hi + 1, Wi + 1
    cols = [xp[:, u:u + Ho2, v:v + Wo2, :] for u in range(2) for v in range(2)]
    patches = jnp.concatenate(cols, axis=-1).reshape(B * Ho2 * Wo2, 4 * C)
    z = matmul_bias_act(patches, wm, jnp.zeros((s * s * cout,), jnp.float32),
                        relu=False, out_dtype=out_dtype)
    z = z.reshape(B, Ho2, Wo2, s, s, cout)
    z = jnp.transpose(z, (0, 1, 3, 2, 4, 5)).reshape(B, Ho2 * s, Wo2 * s, cout)
    h = s // 2
    return z[:, h:h + s * Hi, h:h + s * Wi, :]


def maxpool2x2_ceil(x):
    """MaxPool2d(kernel=2, stride=2, ceil_mode=True), NHWC (memory-bound glue)."""
    B, H, W, C = x.shape
    Ho, Wo = -(-H // 2), -(-W // 2)
    ph, pw = Ho * 2 - H, Wo * 2 - W
    if ph or pw:
        x = jnp.pad(x, ((0, 0), (0, ph), (0, pw), (0, 0)), constant_values=-jnp.inf)
    return jnp.max(x.reshape(B, Ho, 2, Wo, 2, C), axis=(2, 4))


def center_crop(target, refer):
    th, tw = target.shape[1:3]
    rh, rw = refer.shape[1:3]
    sh, sw = (th - rh) // 2, (tw - rw) // 2
    return target[:, sh:sh + rh, sw:sw + rw, :]


def bilinear_resize(x, out_h, out_w):
    """F.interpolate(mode='bilinear', align_corners=False), NHWC, f32 glue."""
    B, H, W, C = x.shape
    if (out_h, out_w) == (H, W):
        return x

    def coords(in_size, out_size):
        s = in_size / out_size
        c = (jnp.arange(out_size, dtype=jnp.float32) + 0.5) * s - 0.5
        c = jnp.clip(c, 0.0, in_size - 1)
        lo = jnp.floor(c).astype(jnp.int32)
        hi = jnp.minimum(lo + 1, in_size - 1)
        return lo, hi, c - lo.astype(jnp.float32)

    y0, y1, fy = coords(H, out_h)
    x0, x1, fx = coords(W, out_w)
    top = x[:, y0, :, :]
    bot = x[:, y1, :, :]
    rows = top * (1.0 - fy)[None, :, None, None] + bot * fy[None, :, None, None]
    left = rows[:, :, x0, :]
    right = rows[:, :, x1, :]
    return left * (1.0 - fx)[None, None, :, None] + right * fx[None, None, :, None]


# ----------------------------------------------------------------------------
# Parameters (deterministic He init, torch layouts) + one-time preparation
# ----------------------------------------------------------------------------
def init_params(key, n_classes):
    conv_specs = {
        "conv1_1": (64, 3, 3, 3), "conv1_2": (64, 64, 3, 3),
        "conv2_1": (128, 64, 3, 3), "conv2_2": (128, 128, 3, 3),
        "conv3_1": (256, 128, 3, 3), "conv3_2": (256, 256, 3, 3),
        "conv3_3": (256, 256, 3, 3),
        "conv4_1": (512, 256, 3, 3), "conv4_2": (512, 512, 3, 3),
        "conv4_3": (512, 512, 3, 3),
        "conv5_1": (512, 512, 3, 3), "conv5_2": (512, 512, 3, 3),
        "conv5_3": (512, 512, 3, 3),
        "fc6": (4096, 512, 7, 7), "fc7": (4096, 4096, 1, 1),
        "score_fr": (n_classes, 4096, 1, 1),
        "score_pool3": (n_classes, 256, 1, 1),
        "score_pool4": (n_classes, 512, 1, 1),
    }
    keys = jax.random.split(key, len(conv_specs) + 2)
    params = {}
    for k_, (name, (co, ci, kh, kw)) in zip(keys, conv_specs.items()):
        fan_in = ci * kh * kw
        w = jax.random.normal(k_, (co, ci, kh, kw), jnp.float32) * (2.0 / fan_in) ** 0.5
        params[name] = (w, jnp.zeros((co,), jnp.float32))
    params["upscore2_w"] = jax.random.normal(
        keys[-2], (n_classes, n_classes, 4, 4), jnp.float32) * (2.0 / (n_classes * 16)) ** 0.5
    params["upscore8_w"] = jax.random.normal(
        keys[-1], (n_classes, n_classes, 16, 16), jnp.float32) * (2.0 / (n_classes * 256)) ** 0.5
    return params


def _quantize_int8(wmat):
    """Weight-only, per-output-channel symmetric int8 quantization."""
    amax = jnp.max(jnp.abs(wmat), axis=0, keepdims=True)
    scale = jnp.maximum(amax, 1e-8) / 127.0
    q = jnp.clip(jnp.round(wmat / scale), -127, 127).astype(jnp.int8)
    return q, scale.reshape(-1).astype(jnp.float32)


def prepare_params(params, quantize_fc=True):
    """One-time conversion of torch-layout f32 weights to matmul-ready form."""
    pp = {}
    for name, val in params.items():
        if name == "upscore2_w":
            pp[name] = _deconv_phase_wmat(val, 2).astype(jnp.bfloat16)
        elif name == "upscore8_w":
            pp[name] = _deconv_phase_wmat(val, 8).astype(jnp.bfloat16)
        else:
            w, b = val
            co, ci, kh, kw = w.shape
            wm = jnp.transpose(w, (2, 3, 1, 0)).reshape(kh * kw * ci, co)
            if quantize_fc and name in ("fc6", "fc7"):
                q, sc = _quantize_int8(wm)
                pp[name] = (q, sc, b.astype(jnp.float32))
            else:
                pp[name] = (wm.astype(jnp.bfloat16), None, b.astype(jnp.float32))
    return pp


# ----------------------------------------------------------------------------
# Forward pass
# ----------------------------------------------------------------------------
def fcn_forward(pp, x_nchw):
    x = jnp.transpose(x_nchw, (0, 2, 3, 1)).astype(jnp.bfloat16)   # NCHW -> NHWC
    Himg, Wimg = x.shape[1], x.shape[2]

    def conv3(h, name):
        w, _, b = pp[name]
        return conv3x3_fused(h, w, b, relu=True)

    # conv1_1 has only 3 input channels (too lane-sparse for the fused kernel);
    # its im2col patch matrix (K=27) is tiny, so the generic matmul path is fine.
    w, _, b = pp["conv1_1"]
    h = conv2d_im2col(x, w, b, kh=3, kw=3, padding=1, relu=True)
    h = conv3(h, "conv1_2")
    h = maxpool2x2_ceil(h)
    for n in ("conv2_1", "conv2_2"):
        h = conv3(h, n)
    h = maxpool2x2_ceil(h)
    for n in ("conv3_1", "conv3_2", "conv3_3"):
        h = conv3(h, n)
    pool3 = maxpool2x2_ceil(h)
    h = pool3
    for n in ("conv4_1", "conv4_2", "conv4_3"):
        h = conv3(h, n)
    pool4 = maxpool2x2_ceil(h)
    h = pool4
    for n in ("conv5_1", "conv5_2", "conv5_3"):
        h = conv3(h, n)
    pool5 = maxpool2x2_ceil(h)

    w, sc, b = pp["fc6"]
    fc6 = conv2d_im2col(pool5, w, b, kh=7, kw=7, padding=0, relu=True, scale=sc)
    w, sc, b = pp["fc7"]
    fc7 = conv2d_im2col(fc6, w, b, kh=1, kw=1, padding=0, relu=True, scale=sc)
    w, _, b = pp["score_fr"]
    score_fr = conv2d_im2col(fc7, w, b, kh=1, kw=1, padding=0, relu=False,
                             out_dtype=jnp.float32)

    n_classes = score_fr.shape[-1]
    upscore2 = conv_transpose_phase(score_fr, pp["upscore2_w"], stride=2, cout=n_classes)
    w, _, b = pp["score_pool4"]
    score_pool4c = conv2d_im2col(center_crop(pool4, upscore2), w, b, kh=1, kw=1,
                                 padding=0, relu=False, out_dtype=jnp.float32)
    fuse_pool4 = upscore2 + score_pool4c

    upscore_pool4 = conv_transpose_phase(fuse_pool4, pp["upscore2_w"], stride=2,
                                         cout=n_classes)
    w, _, b = pp["score_pool3"]
    score_pool3c = conv2d_im2col(center_crop(pool3, upscore_pool4), w, b, kh=1, kw=1,
                                 padding=0, relu=False, out_dtype=jnp.float32)
    fuse_pool3 = upscore_pool4 + score_pool3c

    upscore8 = conv_transpose_phase(fuse_pool3, pp["upscore8_w"], stride=8,
                                    cout=n_classes)
    out = bilinear_resize(upscore8.astype(jnp.float32), Himg, Wimg)
    return jnp.transpose(out, (0, 3, 1, 2))                        # back to NCHW, f32


# ----------------------------------------------------------------------------
# Cheap numeric self-checks of the new kernel paths (tiny shapes, loose tols)
# ----------------------------------------------------------------------------
def _deconv_ref(x, wt, s, p):
    """Zero-dilation ConvTranspose2d reference (plain JAX, f32)."""
    B, H, W, C = x.shape
    cin, cout, k, _ = wt.shape
    Hd, Wd = (H - 1) * s + 1, (W - 1) * s + 1
    xd = jnp.zeros((B, Hd, Wd, C), jnp.float32).at[:, ::s, ::s, :].set(x)
    pe = k - 1 - p
    xp = jnp.pad(xd, ((0, 0), (pe, pe), (pe, pe), (0, 0)))
    Ho, Wo = Hd + 2 * pe - k + 1, Wd + 2 * pe - k + 1
    w_eq = jnp.transpose(wt, (1, 0, 2, 3))[:, :, ::-1, ::-1]
    wm = jnp.transpose(w_eq, (2, 3, 1, 0)).reshape(k * k * cin, cout)
    cols = [xp[:, dy:dy + Ho, dx:dx + Wo, :] for dy in range(k) for dx in range(k)]
    pm = jnp.concatenate(cols, -1).reshape(B * Ho * Wo, k * k * cin)
    return (pm @ wm).reshape(B, Ho, Wo, cout)


def _self_test(key):
    k1, k2, k3, k4, k5, k6, k7 = jax.random.split(key, 7)

    # Fused 3x3 conv vs explicit im2col reference.
    x = jax.random.normal(k1, (2, 6, 7, 64), jnp.float32).astype(jnp.bfloat16)
    w = (jax.random.normal(k2, (9 * 64, 32), jnp.float32) / 24.0).astype(jnp.bfloat16)
    b = jax.random.normal(k3, (32,), jnp.float32) * 0.1
    got = conv3x3_fused(x, w, b, relu=True).astype(jnp.float32)
    xp = jnp.pad(x.astype(jnp.float32), ((0, 0), (1, 1), (1, 1), (0, 0)))
    cols = [xp[:, dy:dy + 6, dx:dx + 7, :] for dy in range(3) for dx in range(3)]
    ref = jnp.maximum(jnp.concatenate(cols, -1).reshape(-1, 9 * 64)
                      @ w.astype(jnp.float32) + b, 0.0).reshape(2, 6, 7, 32)
    err = float(jnp.max(jnp.abs(got - ref)))
    assert err < 0.05 * (float(jnp.max(jnp.abs(ref))) + 1.0), f"conv3x3 mismatch {err}"

    # Phase-decomposed deconv vs zero-dilation reference.
    C, s = 8, 2
    xd = jax.random.normal(k4, (1, 3, 4, C), jnp.float32).astype(jnp.bfloat16)
    wt = jax.random.normal(k5, (C, C, 2 * s, 2 * s), jnp.float32) * 0.2
    got = conv_transpose_phase(xd, _deconv_phase_wmat(wt, s).astype(jnp.bfloat16),
                               stride=s, cout=C).astype(jnp.float32)
    ref = _deconv_ref(xd.astype(jnp.float32), wt, s, s // 2)
    err = float(jnp.max(jnp.abs(got - ref)))
    assert err < 0.05 * (float(jnp.max(jnp.abs(ref))) + 1.0), f"deconv mismatch {err}"

    # int8 weight path of the matmul kernel.
    xq = jax.random.normal(k6, (3, 96), jnp.float32).astype(jnp.bfloat16)
    wf = jax.random.normal(k7, (96, 40), jnp.float32)
    q, sc = _quantize_int8(wf)
    got = matmul_bias_act(xq, q, jnp.zeros((40,), jnp.float32), scale=sc,
                          relu=False, out_dtype=jnp.float32)
    ref = xq.astype(jnp.float32) @ (q.astype(jnp.float32) * sc[None, :])
    err = float(jnp.max(jnp.abs(got - ref)))
    assert err < 0.05 * (float(jnp.max(jnp.abs(ref))) + 1.0), f"int8 matmul mismatch {err}"


# ----------------------------------------------------------------------------
if __name__ == "__main__":
    n_classes = 21
    key = jax.random.PRNGKey(0)
    pkey, xkey, tkey = jax.random.split(key, 3)

    _self_test(tkey)

    params = init_params(pkey, n_classes)
    pp = prepare_params(params)     # one-time bf16 / int8 / matmul-layout conversion

    # fc6 (7x7 VALID conv on pool5) needs an input >= 193 px -> canonical 224.
    x = jax.random.normal(xkey, (1, 3, 224, 224), jnp.float32)

    fwd = jax.jit(fcn_forward)
    out = jax.block_until_ready(fwd(pp, x))

    assert out.shape == (1, n_classes, 224, 224), out.shape
    assert bool(jnp.all(jnp.isfinite(out)))
    print("KERNEL_OK")
</pallas_src>

<mosaic_0001>
module attributes {stable_mosaic.version = 11 : i64} {
  func.func @_conv3x3_kernel(%arg0: i32, %arg1: memref<144x64xbf16, #tpu.memory_space<vmem>>, %arg2: memref<144x64xbf16, #tpu.memory_space<vmem>>, %arg3: memref<576x32xbf16, #tpu.memory_space<vmem>>, %arg4: memref<1x32xf32, #tpu.memory_space<vmem>>, %arg5: memref<144x32xbf16, #tpu.memory_space<vmem>>, %arg6: memref<176x64xbf16, #tpu.memory_space<vmem>>, %arg7: memref<144x32xf32, #tpu.memory_space<vmem>>) attributes {dimension_semantics = [#tpu.dimension_semantics<parallel>], iteration_bounds = array<i64: 1>, scalar_prefetch = 0 : i64, scratch_operands = 2 : i64, tpu.core_type = #tpu.core_type<tc>, window_params = [{transform_indices = @transform_0, window_bounds = array<i64: 144, 64>}, {transform_indices = @transform_1, window_bounds = array<i64: 144, 64>}, {pipeline_mode = #tpu.pipeline_mode<synchronous>, transform_indices = @transform_2, window_bounds = array<i64: 576, 32>}, {pipeline_mode = #tpu.pipeline_mode<synchronous>, transform_indices = @transform_3, window_bounds = array<i64: 1, 32>}, {transform_indices = @transform_4, window_bounds = array<i64: 144, 32>}]} {
    %c0 = arith.constant 0 : index
    %c0_0 = arith.constant 0 : index
    %0 = vector.load %arg1[%c0, %c0_0] : memref<144x64xbf16, #tpu.memory_space<vmem>>, vector<144x64xbf16>
    %c0_1 = arith.constant 0 : index
    %c0_2 = arith.constant 0 : index
    %1 = vector.load %arg6[%c0_1, %c0_2] : memref<176x64xbf16, #tpu.memory_space<vmem>>, vector<144x64xbf16>
    tpu.vector_store %arg6[%c0_1, %c0_2], %0 {strides = array<i32>} : memref<176x64xbf16, #tpu.memory_space<vmem>>, vector<144x64xbf16>,
    %c0_3 = arith.constant 0 : index
    %c0_4 = arith.constant 0 : index
    %2 = vector.load %arg2[%c0_3, %c0_4] : memref<144x64xbf16, #tpu.memory_space<vmem>>, vector<20x64xbf16>
    %c144 = arith.constant 144 : index
    %c0_5 = arith.constant 0 : index
    %3 = vector.load %arg6[%c144, %c0_5] : memref<176x64xbf16, #tpu.memory_space<vmem>>, vector<20x64xbf16>
    tpu.vector_store %arg6[%c144, %c0_5], %2 {strides = array<i32>} : memref<176x64xbf16, #tpu.memory_space<vmem>>, vector<20x64xbf16>,
    %c0_6 = arith.constant 0 : index
    %c0_7 = arith.constant 0 : index
    %4 = vector.load %arg6[%c0_6, %c0_7] : memref<176x64xbf16, #tpu.memory_space<vmem>>, vector<144x64xbf16>
    %c0_8 = arith.constant 0 : index
    %c0_9 = arith.constant 0 : index
    %5 = vector.load %arg3[%c0_8, %c0_9] : memref<576x32xbf16, #tpu.memory_space<vmem>>, vector<64x32xbf16>
    %cst = arith.constant dense<0.000000e+00> : vector<144x32xf32>
    %6 = tpu.matmul %4, %5, %cst {dimension_numbers = #tpu.dot_dimension_numbers<[1], [0], [0], [1], [0, 0, 1, 1], [], []>} : vector<144x64xbf16>, vector<64x32xbf16>, vector<144x32xf32> -> vector<144x32xf32>
    %c0_10 = arith.constant 0 : index
    %c0_11 = arith.constant 0 : index
    %7 = vector.load %arg7[%c0_10, %c0_11] : memref<144x32xf32, #tpu.memory_space<vmem>>, vector<144x32xf32>
    tpu.vector_store %arg7[%c0_10, %c0_11], %6 {strides = array<i32>} : memref<144x32xf32, #tpu.memory_space<vmem>>, vector<144x32xf32>,
    %c1 = arith.constant 1 : index
    %c0_12 = arith.constant 0 : index
    %8 = vector.load %arg6[%c1, %c0_12] : memref<176x64xbf16, #tpu.memory_space<vmem>>, vector<144x64xbf16>
    %c64 = arith.constant 64 : index
    %c0_13 = arith.constant 0 : index
    %9 = vector.load %arg3[%c64, %c0_13] : memref<576x32xbf16, #tpu.memory_space<vmem>>, vector<64x32xbf16>
    %cst_14 = arith.constant dense<0.000000e+00> : vector<144x32xf32>
    %10 = tpu.matmul %8, %9, %cst_14 {dimension_numbers = #tpu.dot_dimension_numbers<[1], [0], [0], [1], [0, 0, 1, 1], [], []>} : vector<144x64xbf16>, vector<64x32xbf16>, vector<144x32xf32> -> vector<144x32xf32>
    %c0_15 = arith.constant 0 : index
    %c0_16 = arith.constant 0 : index
    %11 = vector.load %arg7[%c0_15, %c0_16] : memref<144x32xf32, #tpu.memory_space<vmem>>, vector<144x32xf32>
    %12 = arith.addf %11, %10 : vector<144x32xf32>
    %c0_17 = arith.constant 0 : index
    %c0_18 = arith.constant 0 : index
    %13 = vector.load %arg7[%c0_17, %c0_18] : memref<144x32xf32, #tpu.memory_space<vmem>>, vector<144x32xf32>
    tpu.vector_store %arg7[%c0_17, %c0_18], %12 {strides = array<i32>} : memref<144x32xf32, #tpu.memory_space<vmem>>, vector<144x32xf32>,
    %c2 = arith.constant 2 : index
    %c0_19 = arith.constant 0 : index
    %14 = vector.load %arg6[%c2, %c0_19] : memref<176x64xbf16, #tpu.memory_space<vmem>>, vector<144x64xbf16>
    %c128 = arith.constant 128 : index
    %c0_20 = arith.constant 0 : index
    %15 = vector.load %arg3[%c128, %c0_20] : memref<576x32xbf16, #tpu.memory_space<vmem>>, vector<64x32xbf16>
    %cst_21 = arith.constant dense<0.000000e+00> : vector<144x32xf32>
    %16 = tpu.matmul %14, %15, %cst_21 {dimension_numbers = #tpu.dot_dimension_numbers<[1], [0], [0], [1], [0, 0, 1, 1], [], []>} : vector<144x64xbf16>, vector<64x32xbf16>, vector<144x32xf32> -> vector<144x32xf32>
    %c0_22 = arith.constant 0 : index
    %c0_23 = arith.constant 0 : index
    %17 = vector.load %arg7[%c0_22, %c0_23] : memref<144x32xf32, #tpu.memory_space<vmem>>, vector<144x32xf32>
    %18 = arith.addf %17, %16 : vector<144x32xf32>
    %c0_24 = arith.constant 0 : index
    %c0_25 = arith.constant 0 : index
    %19 = vector.load %arg7[%c0_24, %c0_25] : memref<144x32xf32, #tpu.memory_space<vmem>>, vector<144x32xf32>
    tpu.vector_store %arg7[%c0_24, %c0_25], %18 {strides = array<i32>} : memref<144x32xf32, #tpu.memory_space<vmem>>, vector<144x32xf32>,
    %c9 = arith.constant 9 : index
    %c0_26 = arith.constant 0 : index
    %20 = vector.load %arg6[%c9, %c0_26] : memref<176x64xbf16, #tpu.memory_space<vmem>>, vector<144x64xbf16>
    %c192 = arith.constant 192 : index
    %c0_27 = arith.constant 0 : index
    %21 = vector.load %arg3[%c192, %c0_27] : memref<576x32xbf16, #tpu.memory_space<vmem>>, vector<64x32xbf16>
    %cst_28 = arith.constant dense<0.000000e+00> : vector<144x32xf32>
    %22 = tpu.matmul %20, %21, %cst_28 {dimension_numbers = #tpu.dot_dimension_numbers<[1], [0], [0], [1], [0, 0, 1, 1], [], []>} : vector<144x64xbf16>, vector<64x32xbf16>, vector<144x32xf32> -> vector<144x32xf32>
    %c0_29 = arith.constant 0 : index
    %c0_30 = arith.constant 0 : index
    %23 = vector.load %arg7[%c0_29, %c0_30] : memref<144x32xf32, #tpu.memory_space<vmem>>, vector<144x32xf32>
    %24 = arith.addf %23, %22 : vector<144x32xf32>
    %c0_31 = arith.constant 0 : index
    %c0_32 = arith.constant 0 : index
    %25 = vector.load %arg7[%c0_31, %c0_32] : memref<144x32xf32, #tpu.memory_space<vmem>>, vector<144x32xf32>
    tpu.vector_store %arg7[%c0_31, %c0_32], %24 {strides = array<i32>} : memref<144x32xf32, #tpu.memory_space<vmem>>, vector<144x32xf32>,
    %c10 = arith.constant 10 : index
    %c0_33 = arith.constant 0 : index
    %26 = vector.load %arg6[%c10, %c0_33] : memref<176x64xbf16, #tpu.memory_space<vmem>>, vector<144x64xbf16>
    %c256 = arith.constant 256 : index
    %c0_34 = arith.constant 0 : index
    %27 = vector.load %arg3[%c256, %c0_34] : memref<576x32xbf16, #tpu.memory_space<vmem>>, vector<64x32xbf16>
    %cst_35 = arith.constant dense<0.000000e+00> : vector<144x32xf32>
    %28 = tpu.matmul %26, %27, %cst_35 {dimension_numbers = #tpu.dot_dimension_numbers<[1], [0], [0], [1], [0, 0, 1, 1], [], []>} : vector<144x64xbf16>, vector<64x32xbf16>, vector<144x32xf32> -> vector<144x32xf32>
    %c0_36 = arith.constant 0 : index
    %c0_37 = arith.constant 0 : index
    %29 = vector.load %arg7[%c0_36, %c0_37] : memref<144x32xf32, #tpu.memory_space<vmem>>, vector<144x32xf32>
    %30 = arith.addf %29, %28 : vector<144x32xf32>
    %c0_38 = arith.constant 0 : index
    %c0_39 = arith.constant 0 : index
    %31 = vector.load %arg7[%c0_38, %c0_39] : memref<144x32xf32, #tpu.memory_space<vmem>>, vector<144x32xf32>
    tpu.vector_store %arg7[%c0_38, %c0_39], %30 {strides = array<i32>} : memref<144x32xf32, #tpu.memory_space<vmem>>, vector<144x32xf32>,
    %c11 = arith.constant 11 : index
    %c0_40 = arith.constant 0 : index
    %32 = vector.load %arg6[%c11, %c0_40] : memref<176x64xbf16, #tpu.memory_space<vmem>>, vector<144x64xbf16>
    %c320 = arith.constant 320 : index
    %c0_41 = arith.constant 0 : index
    %33 = vector.load %arg3[%c320, %c0_41] : memref<576x32xbf16, #tpu.memory_space<vmem>>, vector<64x32xbf16>
    %cst_42 = arith.constant dense<0.000000e+00> : vector<144x32xf32>
    %34 = tpu.matmul %32, %33, %cst_42 {dimension_numbers = #tpu.dot_dimension_numbers<[1], [0], [0], [1], [0, 0, 1, 1], [], []>} : vector<144x64xbf16>, vector<64x32xbf16>, vector<144x32xf32> -> vector<144x32xf32>
    %c0_43 = arith.constant 0 : index
    %c0_44 = arith.constant 0 : index
    %35 = vector.load %arg7[%c0_43, %c0_44] : memref<144x32xf32, #tpu.memory_space<vmem>>, vector<144x32xf32>
    %36 = arith.addf %35, %34 : vector<144x32xf32>
    %c0_45 = arith.constant 0 : index
    %c0_46 = arith.constant 0 : index
    %37 = vector.load %arg7[%c0_45, %c0_46] : memref<144x32xf32, #tpu.memory_space<vmem>>, vector<144x32xf32>
    tpu.vector_store %arg7[%c0_45, %c0_46], %36 {strides = array<i32>} : memref<144x32xf32, #tpu.memory_space<vmem>>, vector<144x32xf32>,
    %c18 = arith.constant 18 : index
    %c0_47 = arith.constant 0 : index
    %38 = vector.load %arg6[%c18, %c0_47] : memref<176x64xbf16, #tpu.memory_space<vmem>>, vector<144x64xbf16>
    %c384 = arith.constant 384 : index
    %c0_48 = arith.constant 0 : index
    %39 = vector.load %arg3[%c384, %c0_48] : memref<576x32xbf16, #tpu.memory_space<vmem>>, vector<64x32xbf16>
    %cst_49 = arith.constant dense<0.000000e+00> : vector<144x32xf32>
    %40 = tpu.matmul %38, %39, %cst_49 {dimension_numbers = #tpu.dot_dimension_numbers<[1], [0], [0], [1], [0, 0, 1, 1], [], []>} : vector<144x64xbf16>, vector<64x32xbf16>, vector<144x32xf32> -> vector<144x32xf32>
    %c0_50 = arith.constant 0 : index
    %c0_51 = arith.constant 0 : index
    %41 = vector.load %arg7[%c0_50, %c0_51] : memref<144x32xf32, #tpu.memory_space<vmem>>, vector<144x32xf32>
    %42 = arith.addf %41, %40 : vector<144x32xf32>
    %c0_52 = arith.constant 0 : index
    %c0_53 = arith.constant 0 : index
    %43 = vector.load %arg7[%c0_52, %c0_53] : memref<144x32xf32, #tpu.memory_space<vmem>>, vector<144x32xf32>
    tpu.vector_store %arg7[%c0_52, %c0_53], %42 {strides = array<i32>} : memref<144x32xf32, #tpu.memory_space<vmem>>, vector<144x32xf32>,
    %c19 = arith.constant 19 : index
    %c0_54 = arith.constant 0 : index
    %44 = vector.load %arg6[%c19, %c0_54] : memref<176x64xbf16, #tpu.memory_space<vmem>>, vector<144x64xbf16>
    %c448 = arith.constant 448 : index
    %c0_55 = arith.constant 0 : index
    %45 = vector.load %arg3[%c448, %c0_55] : memref<576x32xbf16, #tpu.memory_space<vmem>>, vector<64x32xbf16>
    %cst_56 = arith.constant dense<0.000000e+00> : vector<144x32xf32>
    %46 = tpu.matmul %44, %45, %cst_56 {dimension_numbers = #tpu.dot_dimension_numbers<[1], [0], [0], [1], [0, 0, 1, 1], [], []>} : vector<144x64xbf16>, vector<64x32xbf16>, vector<144x32xf32> -> vector<144x32xf32>
    %c0_57 = arith.constant 0 : index
    %c0_58 = arith.constant 0 : index
    %47 = vector.load %arg7[%c0_57, %c0_58] : memref<144x32xf32, #tpu.memory_space<vmem>>, vector<144x32xf32>
    %48 = arith.addf %47, %46 : vector<144x32xf32>
    %c0_59 = arith.constant 0 : index
    %c0_60 = arith.constant 0 : index
    %49 = vector.load %arg7[%c0_59, %c0_60] : memref<144x32xf32, #tpu.memory_space<vmem>>, vector<144x32xf32>
    tpu.vector_store %arg7[%c0_59, %c0_60], %48 {strides = array<i32>} : memref<144x32xf32, #tpu.memory_space<vmem>>, vector<144x32xf32>,
    %c20 = arith.constant 20 : index
    %c0_61 = arith.constant 0 : index
    %50 = vector.load %arg6[%c20, %c0_61] : memref<176x64xbf16, #tpu.memory_space<vmem>>, vector<144x64xbf16>
    %c512 = arith.constant 512 : index
    %c0_62 = arith.constant 0 : index
    %51 = vector.load %arg3[%c512, %c0_62] : memref<576x32xbf16, #tpu.memory_space<vmem>>, vector<64x32xbf16>
    %cst_63 = arith.constant dense<0.000000e+00> : vector<144x32xf32>
    %52 = tpu.matmul %50, %51, %cst_63 {dimension_numbers = #tpu.dot_dimension_numbers<[1], [0], [0], [1], [0, 0, 1, 1], [], []>} : vector<144x64xbf16>, vector<64x32xbf16>, vector<144x32xf32> -> vector<144x32xf32>
    %c0_64 = arith.constant 0 : index
    %c0_65 = arith.constant 0 : index
    %53 = vector.load %arg7[%c0_64, %c0_65] : memref<144x32xf32, #tpu.memory_space<vmem>>, vector<144x32xf32>
    %54 = arith.addf %53, %52 : vector<144x32xf32>
    %c0_66 = arith.constant 0 : index
    %c0_67 = arith.constant 0 : index
    %55 = vector.load %arg7[%c0_66, %c0_67] : memref<144x32xf32, #tpu.memory_space<vmem>>, vector<144x32xf32>
    tpu.vector_store %arg7[%c0_66, %c0_67], %54 {strides = array<i32>} : memref<144x32xf32, #tpu.memory_space<vmem>>, vector<144x32xf32>,
    %c0_68 = arith.constant 0 : index
    %c0_69 = arith.constant 0 : index
    %56 = vector.load %arg7[%c0_68, %c0_69] : memref<144x32xf32, #tpu.memory_space<vmem>>, vector<144x32xf32>
    %c0_70 = arith.constant 0 : index
    %c0_71 = arith.constant 0 : index
    %57 = vector.load %arg4[%c0_70, %c0_71] : memref<1x32xf32, #tpu.memory_space<vmem>>, vector<1x32xf32>
    %58 = vector.broadcast %57 : vector<1x32xf32> to vector<144x32xf32>
    %59 = arith.addf %56, %58 : vector<144x32xf32>
    %cst_72 = arith.constant 0.000000e+00 : f32
    %60 = vector.broadcast %cst_72 : f32 to vector<144x32xf32>
    %61 = arith.maximumf %59, %60 : vector<144x32xf32>
    %62 = arith.truncf %61 : vector<144x32xf32> to vector<144x32xbf16>
    %c0_73 = arith.constant 0 : index
    %c0_74 = arith.constant 0 : index
    %63 = vector.load %arg5[%c0_73, %c0_74] : memref<144x32xbf16, #tpu.memory_space<vmem>>, vector<144x32xbf16>
    tpu.vector_store %arg5[%c0_73, %c0_74], %62 {strides = array<i32>} : memref<144x32xbf16, #tpu.memory_space<vmem>>, vector<144x32xbf16>,
    return
  }
  func.func @transform_0(%arg0: i32) -> (i32, i32) {
    %c0_i32 = arith.constant 0 : i32
    %c0_i32_0 = arith.constant 0 : i32
    return %arg0, %c0_i32 : i32, i32
  }
  func.func @transform_1(%arg0: i32) -> (i32, i32) {
    %c1_i32 = arith.constant 1 : i32
    %0 = arith.addi %arg0, %c1_i32 : i32
    %c0_i32 = arith.constant 0 : i32
    %c0_i32_0 = arith.constant 0 : i32
    return %0, %c0_i32 : i32, i32
  }
  func.func @transform_2(%arg0: i32) -> (i32, i32) {
    %c0_i32 = arith.constant 0 : i32
    %c0_i32_0 = arith.constant 0 : i32
    %c0_i32_1 = arith.constant 0 : i32
    return %c0_i32, %c0_i32_0 : i32, i32
  }
  func.func @transform_3(%arg0: i32) -> (i32, i32) {
    %c0_i32 = arith.constant 0 : i32
    %c0_i32_0 = arith.constant 0 : i32
    %c0_i32_1 = arith.constant 0 : i32
    return %c0_i32, %c0_i32_0 : i32, i32
  }
  func.func @transform_4(%arg0: i32) -> (i32, i32) {
    %c0_i32 = arith.constant 0 : i32
    %c0_i32_0 = arith.constant 0 : i32
    return %arg0, %c0_i32 : i32, i32
  }
}

</mosaic_0001>

<llo_original>
// kernel: tpu_custom_call.1
$region0: #{tpu_custom_call.1}
  #allocation0 [shape = 'u32[]', space=smem, size = 0x4, offset = 0x4, fixed_abs, tag = 'smem constant byte address 0x4 - core index']
  #allocation1 [shape = 'u32[144,128]{1,0:T(1,128)}', space=vmem, size = 0x12000, scoped, tag = 'internal scratch']
  #allocation2 [shape = 'bf16[176,64]{1,0:T(16,128)(2,1)}', space=vmem, size = 0xb000, scoped, tag = 'scratch operand']
  #allocation3 [shape = 'f32[144,32]{1,0:T(8,128)}', space=vmem, size = 0x12000, scoped, tag = 'scratch operand']
  %s0 = inlined_call_operand.vmem [shape: bf16[288,64], index: 0, kind: input, shape index: {}]
  %s1 = inlined_call_operand.vmem [shape: bf16[288,64], index: 1, kind: input, shape index: {}]
  %s2 = inlined_call_operand.vmem [shape: bf16[576,32], index: 2, kind: input, shape index: {}]
  %s3 = inlined_call_operand.vmem [shape: f32[1,32], index: 3, kind: input, shape index: {}]
  %s4 = inlined_call_operand.vmem [shape: bf16[144,32], index: 4, kind: output, shape index: {}]
  %s5 = sld [smem:[#allocation0]]
  $region26: #{tpu_custom_call.1} parent=0
    _
  %s7 = ssub.s32 1, %s5
  %s8 = scalar_select 0, %s7, %s5
  // Predicated region
  $region2: #{tpu_custom_call.1} parent=0 // pred_check
    _
  $region3: #{tpu_custom_call.1} parent=0 // pred_check_branch
    %10 = sbr.rel (0) target = $region5
  $region4: #{tpu_custom_call.1} parent=0 // pred_region
    _
  $region5: #{tpu_custom_call.1} parent=0 // pred_fallthru
    _
  // Predicated region
  $region6: #{tpu_custom_call.1} parent=0 // pred_check
    _
  $region7: #{tpu_custom_call.1} parent=0 // pred_check_branch
    %12 = sbr.rel (0) target = $region9
  $region8: #{tpu_custom_call.1} parent=0 // pred_region
    %s13 = sadd.s32 0, 1
    %s14 = smul.u32 18, %s13
    %p15 = scmp.lt.s32.totalorder %s14, 35
    %s16 = scalar_select %p15, %s14, 35
    %s17 = smul.addr %s16, 4
    %s18 = scalar_lea.vmem %s1, %s17
    %s19 = sadd.s32 0, 1
    %s20 = smul.u32 18, %s19
  $region9: #{tpu_custom_call.1} parent=0 // pred_fallthru
    _
  // Predicated region
  $region10: #{tpu_custom_call.1} parent=0 // pred_check
    _
  $region11: #{tpu_custom_call.1} parent=0 // pred_check_branch
    %22 = sbr.rel (0) target = $region13
  $region12: #{tpu_custom_call.1} parent=0 // pred_region
    _
  $region13: #{tpu_custom_call.1} parent=0 // pred_fallthru
    _
  // Predicated region
  $region14: #{tpu_custom_call.1} parent=0 // pred_check
    _
  $region15: #{tpu_custom_call.1} parent=0 // pred_check_branch
    %24 = sbr.rel (0) target = $region17
  $region16: #{tpu_custom_call.1} parent=0 // pred_region
    _
  $region17: #{tpu_custom_call.1} parent=0 // pred_fallthru
    _
  %s25 = sadd.s32 0, 1
  %s26 = smul.u32 18, %s25
  %p27 = scmp.lt.s32.totalorder %s26, 35
  %s28 = scalar_select %p27, %s26, 35
  %s29 = smul.addr %s28, 4
  %s30 = scalar_lea.vmem %s1, %s29
  %s31 = sadd.s32 0, 1
  %s32 = smul.u32 18, %s31
  %p33 = scmp.lt.s32.totalorder %s32, 35
  %s34 = scalar_select %p33, %s32, 35
  %s35 = smul.addr %s34, 4
  %s36 = scalar_lea.vmem %s1, %s35
  %s37 = sadd.s32 0, 1
  %s38 = smul.u32 18, %s37
  %v40 = vld [vmem:[%s0] sm:$0xf]
  %v41 = vld [vmem:[%s0 + $0x4] sm:$0xf]
  %v42 = vld [vmem:[%s0 + $0x8] sm:$0xf]
  %v43 = vld [vmem:[%s0 + $0xc] sm:$0xf]
  %v44 = vld [vmem:[%s0 + $0x10] sm:$0xf]
  %v45 = vld [vmem:[%s0 + $0x14] sm:$0xf]
  %v46 = vld [vmem:[%s0 + $0x18] sm:$0xf]
  %v47 = vld [vmem:[%s0 + $0x1c] sm:$0xf]
  %v48 = vld [vmem:[%s0 + $0x20] sm:$0xf]
  %v49 = vld [vmem:[%s0 + $0x24] sm:$0xf]
  %v50 = vld [vmem:[%s0 + $0x28] sm:$0xf]
  %v51 = vld [vmem:[%s0 + $0x2c] sm:$0xf]
  %v52 = vld [vmem:[%s0 + $0x30] sm:$0xf]
  %v53 = vld [vmem:[%s0 + $0x34] sm:$0xf]
  %v54 = vld [vmem:[%s0 + $0x38] sm:$0xf]
  %v55 = vld [vmem:[%s0 + $0x3c] sm:$0xf]
  %v56 = vld [vmem:[%s0 + $0x40] sm:$0xf]
  %v57 = vld [vmem:[%s0 + $0x44] sm:$0xf]
  %v76 = vunpack.c.l.b16 %v40
  %v77 = vunpack.c.l.b16 %v41
  %v78 = vunpack.c.l.b16 %v42
  %v79 = vunpack.c.l.b16 %v43
  %v80 = vunpack.c.l.b16 %v44
  %v81 = vunpack.c.l.b16 %v45
  %v82 = vunpack.c.l.b16 %v46
  %v83 = vunpack.c.l.b16 %v47
  %v84 = vunpack.c.l.b16 %v48
  %v85 = vunpack.c.l.b16 %v49
  %v86 = vunpack.c.l.b16 %v50
  %v87 = vunpack.c.l.b16 %v51
  %v88 = vunpack.c.l.b16 %v52
  %v89 = vunpack.c.l.b16 %v53
  %v90 = vunpack.c.l.b16 %v54
  %v91 = vunpack.c.l.b16 %v55
  %v92 = vunpack.c.l.b16 %v56
  %v93 = vunpack.c.l.b16 %v57
  %v94 = vpack.c.b16 %v77, %v76
  %v95 = vpack.c.b16 %v79, %v78
  %v96 = vpack.c.b16 %v81, %v80
  %v97 = vpack.c.b16 %v83, %v82
  %v98 = vpack.c.b16 %v85, %v84
  %v99 = vpack.c.b16 %v87, %v86
  %v100 = vpack.c.b16 %v89, %v88
  %v101 = vpack.c.b16 %v91, %v90
  %v102 = vpack.c.b16 %v93, %v92
  %vm112 = vcmask 523264
  %113 = vst.msk [vmem:[#allocation2] sm:$0xff] %vm112, %v94
  %114 = vst.msk [vmem:[#allocation2 + $0x8] sm:$0xff] %vm112, %v95
  %115 = vst.msk [vmem:[#allocation2 + $0x10] sm:$0xff] %vm112, %v96
  %116 = vst.msk [vmem:[#allocation2 + $0x18] sm:$0xff] %vm112, %v97
  %117 = vst.msk [vmem:[#allocation2 + $0x20] sm:$0xff] %vm112, %v98
  %118 = vst.msk [vmem:[#allocation2 + $0x28] sm:$0xff] %vm112, %v99
  %119 = vst.msk [vmem:[#allocation2 + $0x30] sm:$0xff] %vm112, %v100
  %120 = vst.msk [vmem:[#allocation2 + $0x38] sm:$0xff] %vm112, %v101
  %121 = vst.msk [vmem:[#allocation2 + $0x40] sm:$0xff] %vm112, %v102
  %v122 = vld [vmem:[%s36] sm:$0xf]
  %v123 = vld [vmem:[%s36 + $0x4] sm:$0xf]
  %v124 = vld [vmem:[%s36 + $0x8] sm:$0x3]
  %v128 = vunpack.c.l.b16 %v122
  %v129 = vunpack.c.l.b16 %v123
  %v130 = vunpack.c.l.b16 %v124
  %v131 = vpack.c.b16 %v129, %v128
  %v132 = vpack.c.b16 %v130, %v130
  %135 = vst.msk [vmem:[#allocation2 + $0x48] sm:$0xff] %vm112, %v131
  %vm136 = vcmask 517120
  %137 = vst.msk [vmem:[#allocation2 + $0x50] sm:$0x3] %vm136, %v132
  %v138 = vld [vmem:[#allocation2] sm:$0xff]
  %v139 = vld [vmem:[#allocation2 + $0x8] sm:$0xff]
  %v140 = vld [vmem:[#allocation2 + $0x10] sm:$0xff]
  %v141 = vld [vmem:[#allocation2 + $0x18] sm:$0xff]
  %v142 = vld [vmem:[#allocation2 + $0x20] sm:$0xff]
  %v143 = vld [vmem:[#allocation2 + $0x28] sm:$0xff]
  %v144 = vld [vmem:[#allocation2 + $0x30] sm:$0xff]
  %v145 = vld [vmem:[#allocation2 + $0x38] sm:$0xff]
  %v146 = vld [vmem:[#allocation2 + $0x40] sm:$0xff]
  %v147 = vld [vmem:[%s2] sm:$0xf]
  %v148 = vld [vmem:[%s2 + $0x4] sm:$0xf]
  %v149 = vld [vmem:[%s2 + $0x8] sm:$0xf]
  %v150 = vld [vmem:[%s2 + $0xc] sm:$0xf]
  %v151 = vld [vmem:[%s2 + $0x10] sm:$0xf]
  %v152 = vld [vmem:[%s2 + $0x14] sm:$0xf]
  %v153 = vld [vmem:[%s2 + $0x18] sm:$0xf]
  %v154 = vld [vmem:[%s2 + $0x1c] sm:$0xf]
  %v163 = vunpack.c.l.b16 %v147
  %v164 = vunpack.c.l.b16 %v148
  %v165 = vunpack.c.l.b16 %v149
  %v166 = vunpack.c.l.b16 %v150
  %v167 = vunpack.c.l.b16 %v151
  %v168 = vunpack.c.l.b16 %v152
  %v169 = vunpack.c.l.b16 %v153
  %v170 = vunpack.c.l.b16 %v154
  %v171 = vpack.c.b16 %v164, %v163
  %v172 = vpack.c.b16 %v166, %v165
  %v173 = vpack.c.b16 %v168, %v167
  %v174 = vpack.c.b16 %v170, %v169
  %v180 = vsel %vm112, %v138, 0
  %v183 = vsel %vm112, %v139, 0
  %v186 = vsel %vm112, %v140, 0
  %v189 = vsel %vm112, %v141, 0
  %v192 = vsel %vm112, %v142, 0
  %v195 = vsel %vm112, %v143, 0
  %v198 = vsel %vm112, %v144, 0
  %v201 = vsel %vm112, %v145, 0
  %v204 = vsel %vm112, %v146, 0
  %206 = vmatprep.subr.bf16.mxu0 0
  %207 = vmatpush1.bf16.msra.mxu0 %v171
  %208 = vmatprep.subr.bf16.mxu0 0
  %209 = vmatpush1.bf16.msra.mxu0 %v172
  %210 = vmatprep.subr.bf16.mxu0 0
  %211 = vmatpush1.bf16.msra.mxu0 %v173
  %212 = vmatprep.subr.bf16.mxu0 0
  %213 = vmatpush1.bf16.msra.mxu0 %v174
  %214 = vmatprep.subr.bf16.mxu0 0
  %215 = vmatpush1.bf16.msra.mxu0 0
  %216 = vmatprep.subr.bf16.mxu0 0
  %217 = vmatpush1.bf16.msra.mxu0 0
  %218 = vmatprep.subr.bf16.mxu0 0
  %219 = vmatpush1.bf16.msra.mxu0 0
  %220 = vmatprep.subr.bf16.mxu0 0
  %221 = vmatpush1.bf16.msra.mxu0 0
  %222 = vmatprep.subr.bf16.mxu0 0
  %223 = vmatpush1.bf16.msra.mxu0 0
  %224 = vmatprep.subr.bf16.mxu0 0
  %225 = vmatpush1.bf16.msra.mxu0 0
  %226 = vmatprep.subr.bf16.mxu0 0
  %227 = vmatpush1.bf16.msra.mxu0 0
  %228 = vmatprep.subr.bf16.mxu0 0
  %229 = vmatpush1.bf16.msra.mxu0 0
  %230 = vmatprep.subr.bf16.mxu0 0
  %231 = vmatpush1.bf16.msra.mxu0 0
  %232 = vmatprep.subr.bf16.mxu0 0
  %233 = vmatpush1.bf16.msra.mxu0 0
  %234 = vmatprep.subr.bf16.mxu0 0
  %235 = vmatpush1.bf16.msra.mxu0 0
  %236 = vmatprep.subr.bf16.mxu0 0
  %237 = vmatpush1.bf16.msra.mxu0 0
  %238 = vmatprep.mubr.bf16.mxu0 0
  %239 = vmatmul.mubr.bf16.gmra.mrb[0].mxu0 %v180
  %v240 = vpop.f32.mrb[0].mxu0
  %v241 = vadd.f32 0.0, %v240
  %v242 = vpop.f32.mrb[0].mxu0
  %v243 = vpop.f32.mrb[0].mxu0
  %v244 = vadd.f32 0.0, %v243
  %v245 = vpop.f32.mrb[0].mxu0
  %246 = vmatprep.mubr.bf16.mxu0 0
  %247 = vmatmul.mubr.bf16.gmra.mrb[0].mxu0 %v183
  %v248 = vpop.f32.mrb[0].mxu0
  %v249 = vadd.f32 0.0, %v248
  %v250 = vpop.f32.mrb[0].mxu0
  %v251 = vpop.f32.mrb[0].mxu0
  %v252 = vadd.f32 0.0, %v251
  %v253 = vpop.f32.mrb[0].mxu0
  %254 = vmatprep.mubr.bf16.mxu0 0
  %255 = vmatmul.mubr.bf16.gmra.mrb[0].mxu0 %v186
  %v256 = vpop.f32.mrb[0].mxu0
  %v257 = vadd.f32 0.0, %v256
  %v258 = vpop.f32.mrb[0].mxu0
  %v259 = vpop.f32.mrb[0].mxu0
  %v260 = vadd.f32 0.0, %v259
  %v261 = vpop.f32.mrb[0].mxu0
  %262 = vmatprep.mubr.bf16.mxu0 0
  %263 = vmatmul.mubr.bf16.gmra.mrb[0].mxu0 %v189
  %v264 = vpop.f32.mrb[0].mxu0
  %v265 = vadd.f32 0.0, %v264
  %v266 = vpop.f32.mrb[0].mxu0
  %v267 = vpop.f32.mrb[0].mxu0
  %v268 = vadd.f32 0.0, %v267
  %v269 = vpop.f32.mrb[0].mxu0
  %270 = vmatprep.mubr.bf16.mxu0 0
  %271 = vmatmul.mubr.bf16.gmra.mrb[0].mxu0 %v192
  %v272 = vpop.f32.mrb[0].mxu0
  %v273 = vadd.f32 0.0, %v272
  %v274 = vpop.f32.mrb[0].mxu0
  %v275 = vpop.f32.mrb[0].mxu0
  %v276 = vadd.f32 0.0, %v275
  %v277 = vpop.f32.mrb[0].mxu0
  %278 = vmatprep.mubr.bf16.mxu0 0
  %279 = vmatmul.mubr.bf16.gmra.mrb[0].mxu0 %v195
  %v280 = vpop.f32.mrb[0].mxu0
  %v281 = vadd.f32 0.0, %v280
  %v282 = vpop.f32.mrb[0].mxu0
  %v283 = vpop.f32.mrb[0].mxu0
  %v284 = vadd.f32 0.0, %v283
  %v285 = vpop.f32.mrb[0].mxu0
  %286 = vmatprep.mubr.bf16.mxu0 0
  %287 = vmatmul.mubr.bf16.gmra.mrb[0].mxu0 %v198
  %v288 = vpop.f32.mrb[0].mxu0
  %v289 = vadd.f32 0.0, %v288
  %v290 = vpop.f32.mrb[0].mxu0
  %v291 = vpop.f32.mrb[0].mxu0
  %v292 = vadd.f32 0.0, %v291
  %v293 = vpop.f32.mrb[0].mxu0
  %294 = vmatprep.mubr.bf16.mxu0 0
  %295 = vmatmul.mubr.bf16.gmra.mrb[0].mxu0 %v201
  %v296 = vpop.f32.mrb[0].mxu0
  %v297 = vadd.f32 0.0, %v296
  %v298 = vpop.f32.mrb[0].mxu0
  %v299 = vpop.f32.mrb[0].mxu0
  %v300 = vadd.f32 0.0, %v299
  %v301 = vpop.f32.mrb[0].mxu0
  %302 = vmatprep.mubr.bf16.mxu0 0
  %303 = vmatmul.mubr.bf16.gmra.mrb[0].mxu0 %v204
  %v304 = vpop.f32.mrb[0].mxu0
  %v305 = vadd.f32 0.0, %v304
  %v306 = vpop.f32.mrb[0].mxu0
  %v307 = vpop.f32.mrb[0].mxu0
  %v308 = vadd.f32 0.0, %v307
  %v309 = vpop.f32.mrb[0].mxu0
  %310 = vdwg.mxu0
  %vm311 = vcmask 261120
  %312 = vst.msk [vmem:[#allocation3] sm:$0xff] %vm311, %v241
  %313 = vst.msk [vmem:[#allocation3 + $0x8] sm:$0xff] %vm311, %v244
  %314 = vst.msk [vmem:[#allocation3 + $0x10] sm:$0xff] %vm311, %v249
  %315 = vst.msk [vmem:[#allocation3 + $0x18] sm:$0xff] %vm311, %v252
  %316 = vst.msk [vmem:[#allocation3 + $0x20] sm:$0xff] %vm311, %v257
  %317 = vst.msk [vmem:[#allocation3 + $0x28] sm:$0xff] %vm311, %v260
  %318 = vst.msk [vmem:[#allocation3 + $0x30] sm:$0xff] %vm311, %v265
  %319 = vst.msk [vmem:[#allocation3 + $0x38] sm:$0xff] %vm311, %v268
  %320 = vst.msk [vmem:[#allocation3 + $0x40] sm:$0xff] %vm311, %v273
  %321 = vst.msk [vmem:[#allocation3 + $0x48] sm:$0xff] %vm311, %v276
  %322 = vst.msk [vmem:[#allocation3 + $0x50] sm:$0xff] %vm311, %v281
  %323 = vst.msk [vmem:[#allocation3 + $0x58] sm:$0xff] %vm311, %v284
  %324 = vst.msk [vmem:[#allocation3 + $0x60] sm:$0xff] %vm311, %v289
  %325 = vst.msk [vmem:[#allocation3 + $0x68] sm:$0xff] %vm311, %v292
  %326 = vst.msk [vmem:[#allocation3 + $0x70] sm:$0xff] %vm311, %v297
  %327 = vst.msk [vmem:[#allocation3 + $0x78] sm:$0xff] %vm311, %v300
  %328 = vst.msk [vmem:[#allocation3 + $0x80] sm:$0xff] %vm311, %v305
  %329 = vst.msk [vmem:[#allocation3 + $0x88] sm:$0xff] %vm311, %v308
  %v330 = vld [vmem:[#allocation2] sm:$0xff]
  %v331 = vld [vmem:[#allocation2 + $0x8] sm:$0xff]
  %v332 = vld [vmem:[#allocation2 + $0x10] sm:$0xff]
  %v333 = vld [vmem:[#allocation2 + $0x18] sm:$0xff]
  %v334 = vld [vmem:[#allocation2 + $0x20] sm:$0xff]
  %v335 = vld [vmem:[#allocation2 + $0x28] sm:$0xff]
  %v336 = vld [vmem:[#allocation2 + $0x30] sm:$0xff]
  %v337 = vld [vmem:[#allocation2 + $0x38] sm:$0xff]
  %v338 = vld [vmem:[#allocation2 + $0x40] sm:$0xff]
  %v339 = vld [vmem:[#allocation2 + $0x48] sm:$0x1]
  %v340 = vld [vmem:[%s2 + $0x20] sm:$0xf]
  %v341 = vld [vmem:[%s2 + $0x24] sm:$0xf]
  %v342 = vld [vmem:[%s2 + $0x28] sm:$0xf]
  %v343 = vld [vmem:[%s2 + $0x2c] sm:$0xf]
  %v344 = vld [vmem:[%s2 + $0x30] sm:$0xf]
  %v345 = vld [vmem:[%s2 + $0x34] sm:$0xf]
  %v346 = vld [vmem:[%s2 + $0x38] sm:$0xf]
  %v347 = vld [vmem:[%s2 + $0x3c] sm:$0xf]
  %vm348 = vsmask.f32 7424
  %v350 = vshrl.u32 %v330, 16
  %v352 = vshll.u32 %v330, 16
  %v354 = vrot.slane %v352, 1
  %v355 = vor.u32 %v350, %v354
  %v357 = vshll.u32 %v331, 16
  %v359 = vrot.slane %v357, 1
  %v360 = vsel %vm348, %v355, %v359
  %v361 = vshrl.u32 %v331, 16
  %v363 = vor.u32 %v361, %v359
  %v365 = vshll.u32 %v332, 16
  %v367 = vrot.slane %v365, 1
  %v368 = vsel %vm348, %v363, %v367
  %v369 = vshrl.u32 %v332, 16
  %v371 = vor.u32 %v369, %v367
  %v373 = vshll.u32 %v333, 16
  %v375 = vrot.slane %v373, 1
  %v376 = vsel %vm348, %v371, %v375
  %v377 = vshrl.u32 %v333, 16
  %v379 = vor.u32 %v377, %v375
  %v381 = vshll.u32 %v334, 16
  %v383 = vrot.slane %v381, 1
  %v384 = vsel %vm348, %v379, %v383
  %v385 = vshrl.u32 %v334, 16
  %v387 = vor.u32 %v385, %v383
  %v389 = vshll.u32 %v335, 16
  %v391 = vrot.slane %v389, 1
  %v392 = vsel %vm348, %v387, %v391
  %v393 = vshrl.u32 %v335, 16
  %v395 = vor.u32 %v393, %v391
  %v397 = vshll.u32 %v336, 16
  %v399 = vrot.slane %v397, 1
  %v400 = vsel %vm348, %v395, %v399
  %v401 = vshrl.u32 %v336, 16
  %v403 = vor.u32 %v401, %v399
  %v405 = vshll.u32 %v337, 16
  %v407 = vrot.slane %v405, 1
  %v408 = vsel %vm348, %v403, %v407
  %v409 = vshrl.u32 %v337, 16
  %v411 = vor.u32 %v409, %v407
  %v413 = vshll.u32 %v338, 16
  %v415 = vrot.slane %v413, 1
  %v416 = vsel %vm348, %v411, %v415
  %v417 = vshrl.u32 %v338, 16
  %v419 = vor.u32 %v417, %v415
  %v421 = vshll.u32 %v339, 16
  %v423 = vrot.slane %v421, 1
  %v424 = vsel %vm348, %v419, %v423
  %v433 = vunpack.c.l.b16 %v340
  %v434 = vunpack.c.l.b16 %v341
  %v435 = vunpack.c.l.b16 %v342
  %v436 = vunpack.c.l.b16 %v343
  %v437 = vunpack.c.l.b16 %v344
  %v438 = vunpack.c.l.b16 %v345
  %v439 = vunpack.c.l.b16 %v346
  %v440 = vunpack.c.l.b16 %v347
  %v441 = vpack.c.b16 %v434, %v433
  %v442 = vpack.c.b16 %v436, %v435
  %v443 = vpack.c.b16 %v438, %v437
  %v444 = vpack.c.b16 %v440, %v439
  %v450 = vsel %vm112, %v360, 0
  %v453 = vsel %vm112, %v368, 0
  %v456 = vsel %vm112, %v376, 0
  %v459 = vsel %vm112, %v384, 0
  %v462 = vsel %vm112, %v392, 0
  %v465 = vsel %vm112, %v400, 0
  %v468 = vsel %vm112, %v408, 0
  %v471 = vsel %vm112, %v416, 0
  %v474 = vsel %vm112, %v424, 0
  %476 = vmatprep.subr.bf16.mxu0 0
  %477 = vmatpush1.bf16.msra.mxu0 %v441
  %478 = vmatprep.subr.bf16.mxu0 0
  %479 = vmatpush1.bf16.msra.mxu0 %v442
  %480 = vmatprep.subr.bf16.mxu0 0
  %481 = vmatpush1.bf16.msra.mxu0 %v443
  %482 = vmatprep.subr.bf16.mxu0 0
  %483 = vmatpush1.bf16.msra.mxu0 %v444
  %484 = vmatprep.subr.bf16.mxu0 0
  %485 = vmatpush1.bf16.msra.mxu0 0
  %486 = vmatprep.subr.bf16.mxu0 0
  %487 = vmatpush1.bf16.msra.mxu0 0
  %488 = vmatprep.subr.bf16.mxu0 0
  %489 = vmatpush1.bf16.msra.mxu0 0
  %490 = vmatprep.subr.bf16.mxu0 0
  %491 = vmatpush1.bf16.msra.mxu0 0
  %492 = vmatprep.subr.bf16.mxu0 0
  %493 = vmatpush1.bf16.msra.mxu0 0
  %494 = vmatprep.subr.bf16.mxu0 0
  %495 = vmatpush1.bf16.msra.mxu0 0
  %496 = vmatprep.subr.bf16.mxu0 0
  %497 = vmatpush1.bf16.msra.mxu0 0
  %498 = vmatprep.subr.bf16.mxu0 0
  %499 = vmatpush1.bf16.msra.mxu0 0
  %500 = vmatprep.subr.bf16.mxu0 0
  %501 = vmatpush1.bf16.msra.mxu0 0
  %502 = vmatprep.subr.bf16.mxu0 0
  %503 = vmatpush1.bf16.msra.mxu0 0
  %504 = vmatprep.subr.bf16.mxu0 0
  %505 = vmatpush1.bf16.msra.mxu0 0
  %506 = vmatprep.subr.bf16.mxu0 0
  %507 = vmatpush1.bf16.msra.mxu0 0
  %508 = vmatprep.mubr.bf16.mxu0 0
  %509 = vmatmul.mubr.bf16.gmra.mrb[0].mxu0 %v450
  %v510 = vpop.f32.mrb[0].mxu0
  %v511 = vadd.f32 0.0, %v510
  %v512 = vpop.f32.mrb[0].mxu0
  %v513 = vpop.f32.mrb[0].mxu0
  %v514 = vadd.f32 0.0, %v513
  %v515 = vpop.f32.mrb[0].mxu0
  %516 = vmatprep.mubr.bf16.mxu0 0
  %517 = vmatmul.mubr.bf16.gmra.mrb[0].mxu0 %v453
  %v518 = vpop.f32.mrb[0].mxu0
  %v519 = vadd.f32 0.0, %v518
  %v520 = vpop.f32.mrb[0].mxu0
  %v521 = vpop.f32.mrb[0].mxu0
  %v522 = vadd.f32 0.0, %v521
  %v523 = vpop.f32.mrb[0].mxu0
  %524 = vmatprep.mubr.bf16.mxu0 0
  %525 = vmatmul.mubr.bf16.gmra.mrb[0].mxu0 %v456
  %v526 = vpop.f32.mrb[0].mxu0
  %v527 = vadd.f32 0.0, %v526
  %v528 = vpop.f32.mrb[0].mxu0
  %v529 = vpop.f32.mrb[0].mxu0
  %v530 = vadd.f32 0.0, %v529
  %v531 = vpop.f32.mrb[0].mxu0
  %532 = vmatprep.mubr.bf16.mxu0 0
  %533 = vmatmul.mubr.bf16.gmra.mrb[0].mxu0 %v459
  %v534 = vpop.f32.mrb[0].mxu0
  %v535 = vadd.f32 0.0, %v534
  %v536 = vpop.f32.mrb[0].mxu0
  %v537 = vpop.f32.mrb[0].mxu0
  %v538 = vadd.f32 0.0, %v537
  %v539 = vpop.f32.mrb[0].mxu0
  %540 = vmatprep.mubr.bf16.mxu0 0
  %541 = vmatmul.mubr.bf16.gmra.mrb[0].mxu0 %v462
  %v542 = vpop.f32.mrb[0].mxu0
  %v543 = vadd.f32 0.0, %v542
  %v544 = vpop.f32.mrb[0].mxu0
  %v545 = vpop.f32.mrb[0].mxu0
  %v546 = vadd.f32 0.0, %v545
  %v547 = vpop.f32.mrb[0].mxu0
  %548 = vmatprep.mubr.bf16.mxu0 0
  %549 = vmatmul.mubr.bf16.gmra.mrb[0].mxu0 %v465
  %v550 = vpop.f32.mrb[0].mxu0
  %v551 = vadd.f32 0.0, %v550
  %v552 = vpop.f32.mrb[0].mxu0
  %v553 = vpop.f32.mrb[0].mxu0
  %v554 = vadd.f32 0.0, %v553
  %v555 = vpop.f32.mrb[0].mxu0
  %556 = vmatprep.mubr.bf16.mxu0 0
  %557 = vmatmul.mubr.bf16.gmra.mrb[0].mxu0 %v468
  %v558 = vpop.f32.mrb[0].mxu0
  %v559 = vadd.f32 0.0, %v558
  %v560 = vpop.f32.mrb[0].mxu0
  %v561 = vpop.f32.mrb[0].mxu0
  %v562 = vadd.f32 0.0, %v561
  %v563 = vpop.f32.mrb[0].mxu0
  %564 = vmatprep.mubr.bf16.mxu0 0
  %565 = vmatmul.mubr.bf16.gmra.mrb[0].mxu0 %v471
  %v566 = vpop.f32.mrb[0].mxu0
  %v567 = vadd.f32 0.0, %v566
  %v568 = vpop.f32.mrb[0].mxu0
  %v569 = vpop.f32.mrb[0].mxu0
  %v570 = vadd.f32 0.0, %v569
  %v571 = vpop.f32.mrb[0].mxu0
  %572 = vmatprep.mubr.bf16.mxu0 0
  %573 = vmatmul.mubr.bf16.gmra.mrb[0].mxu0 %v474
  %v574 = vpop.f32.mrb[0].mxu0
  %v575 = vadd.f32 0.0, %v574
  %v576 = vpop.f32.mrb[0].mxu0
  %v577 = vpop.f32.mrb[0].mxu0
  %v578 = vadd.f32 0.0, %v577
  %v579 = vpop.f32.mrb[0].mxu0
  %580 = vdwg.mxu0
  %v581 = vld [vmem:[#allocation3] sm:$0xff]
  %v582 = vld [vmem:[#allocation3 + $0x8] sm:$0xff]
  %v583 = vld [vmem:[#allocation3 + $0x10] sm:$0xff]
  %v584 = vld [vmem:[#allocation3 + $0x18] sm:$0xff]
  %v585 = vld [vmem:[#allocation3 + $0x20] sm:$0xff]
  %v586 = vld [vmem:[#allocation3 + $0x28] sm:$0xff]
  %v587 = vld [vmem:[#allocation3 + $0x30] sm:$0xff]
  %v588 = vld [vmem:[#allocation3 + $0x38] sm:$0xff]
  %v589 = vld [vmem:[#allocation3 + $0x40] sm:$0xff]
  %v590 = vld [vmem:[#allocation3 + $0x48] sm:$0xff]
  %v591 = vld [vmem:[#allocation3 + $0x50] sm:$0xff]
  %v592 = vld [vmem:[#allocation3 + $0x58] sm:$0xff]
  %v593 = vld [vmem:[#allocation3 + $0x60] sm:$0xff]
  %v594 = vld [vmem:[#allocation3 + $0x68] sm:$0xff]
  %v595 = vld [vmem:[#allocation3 + $0x70] sm:$0xff]
  %v596 = vld [vmem:[#allocation3 + $0x78] sm:$0xff]
  %v597 = vld [vmem:[#allocation3 + $0x80] sm:$0xff]
  %v598 = vld [vmem:[#allocation3 + $0x88] sm:$0xff]
  %v599 = vadd.f32 %v581, %v511
  %v600 = vadd.f32 %v582, %v514
  %v601 = vadd.f32 %v583, %v519
  %v602 = vadd.f32 %v584, %v522
  %v603 = vadd.f32 %v585, %v527
  %v604 = vadd.f32 %v586, %v530
  %v605 = vadd.f32 %v587, %v535
  %v606 = vadd.f32 %v588, %v538
  %v607 = vadd.f32 %v589, %v543
  %v608 = vadd.f32 %v590, %v546
  %v609 = vadd.f32 %v591, %v551
  %v610 = vadd.f32 %v592, %v554
  %v611 = vadd.f32 %v593, %v559
  %v612 = vadd.f32 %v594, %v562
  %v613 = vadd.f32 %v595, %v567
  %v614 = vadd.f32 %v596, %v570
  %v615 = vadd.f32 %v597, %v575
  %v616 = vadd.f32 %v598, %v578
  %617 = vst.msk [vmem:[#allocation3] sm:$0xff] %vm311, %v599
  %618 = vst.msk [vmem:[#allocation3 + $0x8] sm:$0xff] %vm311, %v600
  %619 = vst.msk [vmem:[#allocation3 + $0x10] sm:$0xff] %vm311, %v601
  %620 = vst.msk [vmem:[#allocation3 + $0x18] sm:$0xff] %vm311, %v602
  %621 = vst.msk [vmem:[#allocation3 + $0x20] sm:$0xff] %vm311, %v603
  %622 = vst.msk [vmem:[#allocation3 + $0x28] sm:$0xff] %vm311, %v604
  %623 = vst.msk [vmem:[#allocation3 + $0x30] sm:$0xff] %vm311, %v605
  %624 = vst.msk [vmem:[#allocation3 + $0x38] sm:$0xff] %vm311, %v606
  %625 = vst.msk [vmem:[#allocation3 + $0x40] sm:$0xff] %vm311, %v607
  %626 = vst.msk [vmem:[#allocation3 + $0x48] sm:$0xff] %vm311, %v608
  %627 = vst.msk [vmem:[#allocation3 + $0x50] sm:$0xff] %vm311, %v609
  %628 = vst.msk [vmem:[#allocation3 + $0x58] sm:$0xff] %vm311, %v610
  %629 = vst.msk [vmem:[#allocation3 + $0x60] sm:$0xff] %vm311, %v611
  %630 = vst.msk [vmem:[#allocation3 + $0x68] sm:$0xff] %vm311, %v612
  %631 = vst.msk [vmem:[#allocation3 + $0x70] sm:$0xff] %vm311, %v613
  %632 = vst.msk [vmem:[#allocation3 + $0x78] sm:$0xff] %vm311, %v614
  %633 = vst.msk [vmem:[#allocation3 + $0x80] sm:$0xff] %vm311, %v615
  %634 = vst.msk [vmem:[#allocation3 + $0x88] sm:$0xff] %vm311, %v616
  %v635 = vld [vmem:[#allocation2] sm:$0xfe]
  %v636 = vld [vmem:[#allocation2 + $0x8] sm:$0xff]
  %v637 = vld [vmem:[#allocation2 + $0x10] sm:$0xff]
  %v638 = vld [vmem:[#allocation2 + $0x18] sm:$0xff]
  %v639 = vld [vmem:[#allocation2 + $0x20] sm:$0xff]
  %v640 = vld [vmem:[#allocation2 + $0x28] sm:$0xff]
  %v641 = vld [vmem:[#allocation2 + $0x30] sm:$0xff]
  %v642 = vld [vmem:[#allocation2 + $0x38] sm:$0xff]
  %v643 = vld [vmem:[#allocation2 + $0x40] sm:$0xff]
  %v644 = vld [vmem:[#allocation2 + $0x48] sm:$0x1]
  %v645 = vld [vmem:[%s2 + $0x40] sm:$0xf]
  %v646 = vld [vmem:[%s2 + $0x44] sm:$0xf]
  %v647 = vld [vmem:[%s2 + $0x48] sm:$0xf]
  %v648 = vld [vmem:[%s2 + $0x4c] sm:$0xf]
  %v649 = vld [vmem:[%s2 + $0x50] sm:$0xf]
  %v650 = vld [vmem:[%s2 + $0x54] sm:$0xf]
  %v651 = vld [vmem:[%s2 + $0x58] sm:$0xf]
  %v652 = vld [vmem:[%s2 + $0x5c] sm:$0xf]
  %vm663 = vcmask 1046528
  %v664 = vrot.slane %v635, 1
  %v665 = vrot.slane %v636, 1
  %v666 = vsel %vm663, %v664, %v665
  %v667 = vrot.slane %v637, 1
  %v668 = vsel %vm663, %v665, %v667
  %v669 = vrot.slane %v638, 1
  %v670 = vsel %vm663, %v667, %v669
  %v671 = vrot.slane %v639, 1
  %v672 = vsel %vm663, %v669, %v671
  %v673 = vrot.slane %v640, 1
  %v674 = vsel %vm663, %v671, %v673
  %v675 = vrot.slane %v641, 1
  %v676 = vsel %vm663, %v673, %v675
  %v677 = vrot.slane %v642, 1
  %v678 = vsel %vm663, %v675, %v677
  %v679 = vrot.slane %v643, 1
  %v680 = vsel %vm663, %v677, %v679
  %v681 = vrot.slane %v644, 1
  %v682 = vsel %vm663, %v679, %v681
  %v691 = vunpack.c.l.b16 %v645
  %v692 = vunpack.c.l.b16 %v646
  %v693 = vunpack.c.l.b16 %v647
  %v694 = vunpack.c.l.b16 %v648
  %v695 = vunpack.c.l.b16 %v649
  %v696 = vunpack.c.l.b16 %v650
  %v697 = vunpack.c.l.b16 %v651
  %v698 = vunpack.c.l.b16 %v652
  %v699 = vpack.c.b16 %v692, %v691
  %v700 = vpack.c.b16 %v694, %v693
  %v701 = vpack.c.b16 %v696, %v695
  %v702 = vpack.c.b16 %v698, %v697
  %v708 = vsel %vm112, %v666, 0
  %v711 = vsel %vm112, %v668, 0
  %v714 = vsel %vm112, %v670, 0
  %v717 = vsel %vm112, %v672, 0
  %v720 = vsel %vm112, %v674, 0
  %v723 = vsel %vm112, %v676, 0
  %v726 = vsel %vm112, %v678, 0
  %v729 = vsel %vm112, %v680, 0
  %v732 = vsel %vm112, %v682, 0
  %734 = vmatprep.subr.bf16.mxu0 0
  %735 = vmatpush1.bf16.msra.mxu0 %v699
  %736 = vmatprep.subr.bf16.mxu0 0
  %737 = vmatpush1.bf16.msra.mxu0 %v700
  %738 = vmatprep.subr.bf16.mxu0 0
  %739 = vmatpush1.bf16.msra.mxu0 %v701
  %740 = vmatprep.subr.bf16.mxu0 0
  %741 = vmatpush1.bf16.msra.mxu0 %v702
  %742 = vmatprep.subr.bf16.mxu0 0
  %743 = vmatpush1.bf16.msra.mxu0 0
  %744 = vmatprep.subr.bf16.mxu0 0
  %745 = vmatpush1.bf16.msra.mxu0 0
  %746 = vmatprep.subr.bf16.mxu0 0
  %747 = vmatpush1.bf16.msra.mxu0 0
  %748 = vmatprep.subr.bf16.mxu0 0
  %749 = vmatpush1.bf16.msra.mxu0 0
  %750 = vmatprep.subr.bf16.mxu0 0
  %751 = vmatpush1.bf16.msra.mxu0 0
  %752 = vmatprep.subr.bf16.mxu0 0
  %753 = vmatpush1.bf16.msra.mxu0 0
  %754 = vmatprep.subr.bf16.mxu0 0
  %755 = vmatpush1.bf16.msra.mxu0 0
  %756 = vmatprep.subr.bf16.mxu0 0
  %757 = vmatpush1.bf16.msra.mxu0 0
  %758 = vmatprep.subr.bf16.mxu0 0
  %759 = vmatpush1.bf16.msra.mxu0 0
  %760 = vmatprep.subr.bf16.mxu0 0
  %761 = vmatpush1.bf16.msra.mxu0 0
  %762 = vmatprep.subr.bf16.mxu0 0
  %763 = vmatpush1.bf16.msra.mxu0 0
  %764 = vmatprep.subr.bf16.mxu0 0
  %765 = vmatpush1.bf16.msra.mxu0 0
  %766 = vmatprep.mubr.bf16.mxu0 0
  %767 = vmatmul.mubr.bf16.gmra.mrb[0].mxu0 %v708
  %v768 = vpop.f32.mrb[0].mxu0
  %v769 = vadd.f32 0.0, %v768
  %v770 = vpop.f32.mrb[0].mxu0
  %v771 = vpop.f32.mrb[0].mxu0
  %v772 = vadd.f32 0.0, %v771
  %v773 = vpop.f32.mrb[0].mxu0
  %774 = vmatprep.mubr.bf16.mxu0 0
  %775 = vmatmul.mubr.bf16.gmra.mrb[0].mxu0 %v711
  %v776 = vpop.f32.mrb[0].mxu0
  %v777 = vadd.f32 0.0, %v776
  %v778 = vpop.f32.mrb[0].mxu0
  %v779 = vpop.f32.mrb[0].mxu0
  %v780 = vadd.f32 0.0, %v779
  %v781 = vpop.f32.mrb[0].mxu0
  %782 = vmatprep.mubr.bf16.mxu0 0
  %783 = vmatmul.mubr.bf16.gmra.mrb[0].mxu0 %v714
  %v784 = vpop.f32.mrb[0].mxu0
  %v785 = vadd.f32 0.0, %v784
  %v786 = vpop.f32.mrb[0].mxu0
  %v787 = vpop.f32.mrb[0].mxu0
  %v788 = vadd.f32 0.0, %v787
  %v789 = vpop.f32.mrb[0].mxu0
  %790 = vmatprep.mubr.bf16.mxu0 0
  %791 = vmatmul.mubr.bf16.gmra.mrb[0].mxu0 %v717
  %v792 = vpop.f32.mrb[0].mxu0
  %v793 = vadd.f32 0.0, %v792
  %v794 = vpop.f32.mrb[0].mxu0
  %v795 = vpop.f32.mrb[0].mxu0
  %v796 = vadd.f32 0.0, %v795
  %v797 = vpop.f32.mrb[0].mxu0
  %798 = vmatprep.mubr.bf16.mxu0 0
  %799 = vmatmul.mubr.bf16.gmra.mrb[0].mxu0 %v720
  %v800 = vpop.f32.mrb[0].mxu0
  %v801 = vadd.f32 0.0, %v800
  %v802 = vpop.f32.mrb[0].mxu0
  %v803 = vpop.f32.mrb[0].mxu0
  %v804 = vadd.f32 0.0, %v803
  %v805 = vpop.f32.mrb[0].mxu0
  %806 = vmatprep.mubr.bf16.mxu0 0
  %807 = vmatmul.mubr.bf16.gmra.mrb[0].mxu0 %v723
  %v808 = vpop.f32.mrb[0].mxu0
  %v809 = vadd.f32 0.0, %v808
  %v810 = vpop.f32.mrb[0].mxu0
  %v811 = vpop.f32.mrb[0].mxu0
  %v812 = vadd.f32 0.0, %v811
  %v813 = vpop.f32.mrb[0].mxu0
  %814 = vmatprep.mubr.bf16.mxu0 0
  %815 = vmatmul.mubr.bf16.gmra.mrb[0].mxu0 %v726
  %v816 = vpop.f32.mrb[0].mxu0
  %v817 = vadd.f32 0.0, %v816
  %v818 = vpop.f32.mrb[0].mxu0
  %v819 = vpop.f32.mrb[0].mxu0
  %v820 = vadd.f32 0.0, %v819
  %v821 = vpop.f32.mrb[0].mxu0
  %822 = vmatprep.mubr.bf16.mxu0 0
  %823 = vmatmul.mubr.bf16.gmra.mrb[0].mxu0 %v729
  %v824 = vpop.f32.mrb[0].mxu0
  %v825 = vadd.f32 0.0, %v824
  %v826 = vpop.f32.mrb[0].mxu0
  %v827 = vpop.f32.mrb[0].mxu0
  %v828 = vadd.f32 0.0, %v827
  %v829 = vpop.f32.mrb[0].mxu0
  %830 = vmatprep.mubr.bf16.mxu0 0
  %831 = vmatmul.mubr.bf16.gmra.mrb[0].mxu0 %v732
  %v832 = vpop.f32.mrb[0].mxu0
  %v833 = vadd.f32 0.0, %v832
  %v834 = vpop.f32.mrb[0].mxu0
  %v835 = vpop.f32.mrb[0].mxu0
  %v836 = vadd.f32 0.0, %v835
  %v837 = vpop.f32.mrb[0].mxu0
  %838 = vdwg.mxu0
  %v839 = vld [vmem:[#allocation3] sm:$0xff]
  %v840 = vld [vmem:[#allocation3 + $0x8] sm:$0xff]
  %v841 = vld [vmem:[#allocation3 + $0x10] sm:$0xff]
  %v842 = vld [vmem:[#allocation3 + $0x18] sm:$0xff]
  %v843 = vld [vmem:[#allocation3 + $0x20] sm:$0xff]
  %v844 = vld [vmem:[#allocation3 + $0x28] sm:$0xff]
  %v845 = vld [vmem:[#allocation3 + $0x30] sm:$0xff]
  %v846 = vld [vmem:[#allocation3 + $0x38] sm:$0xff]
  %v847 = vld [vmem:[#allocation3 + $0x40] sm:$0xff]
  %v848 = vld [vmem:[#allocation3 + $0x48] sm:$0xff]
  %v849 = vld [vmem:[#allocation3 + $0x50] sm:$0xff]
  %v850 = vld [vmem:[#allocation3 + $0x58] sm:$0xff]
  %v851 = vld [vmem:[#allocation3 + $0x60] sm:$0xff]
  %v852 = vld [vmem:[#allocation3 + $0x68] sm:$0xff]
  %v853 = vld [vmem:[#allocation3 + $0x70] sm:$0xff]
  %v854 = vld [vmem:[#allocation3 + $0x78] sm:$0xff]
  %v855 = vld [vmem:[#allocation3 + $0x80] sm:$0xff]
  %v856 = vld [vmem:[#allocation3 + $0x88] sm:$0xff]
  %v857 = vadd.f32 %v839, %v769
  %v858 = vadd.f32 %v840, %v772
  %v859 = vadd.f32 %v841, %v777
  %v860 = vadd.f32 %v842, %v780
  %v861 = vadd.f32 %v843, %v785
  %v862 = vadd.f32 %v844, %v788
  %v863 = vadd.f32 %v845, %v793
  %v864 = vadd.f32 %v846, %v796
  %v865 = vadd.f32 %v847, %v801
  %v866 = vadd.f32 %v848, %v804
  %v867 = vadd.f32 %v849, %v809
  %v868 = vadd.f32 %v850, %v812
  %v869 = vadd.f32 %v851, %v817
  %v870 = vadd.f32 %v852, %v820
  %v871 = vadd.f32 %v853, %v825
  %v872 = vadd.f32 %v854, %v828
  %v873 = vadd.f32 %v855, %v833
  %v874 = vadd.f32 %v856, %v836
  %875 = vst.msk [vmem:[#allocation3] sm:$0xff] %vm311, %v857
  %876 = vst.msk [vmem:[#allocation3 + $0x8] sm:$0xff] %vm311, %v858
  %877 = vst.msk [vmem:[#allocation3 + $0x10] sm:$0xff] %vm311, %v859
  %878 = vst.msk [vmem:[#allocation3 + $0x18] sm:$0xff] %vm311, %v860
  %879 = vst.msk [vmem:[#allocation3 + $0x20] sm:$0xff] %vm311, %v861
  %880 = vst.msk [vmem:[#allocation3 + $0x28] sm:$0xff] %vm311, %v862
  %881 = vst.msk [vmem:[#allocation3 + $0x30] sm:$0xff] %vm311, %v863
  %882 = vst.msk [vmem:[#allocation3 + $0x38] sm:$0xff] %vm311, %v864
  %883 = vst.msk [vmem:[#allocation3 + $0x40] sm:$0xff] %vm311, %v865
  %884 = vst.msk [vmem:[#allocation3 + $0x48] sm:$0xff] %vm311, %v866
  %885 = vst.msk [vmem:[#allocation3 + $0x50] sm:$0xff] %vm311, %v867
  %886 = vst.msk [vmem:[#allocation3 + $0x58] sm:$0xff] %vm311, %v868
  %887 = vst.msk [vmem:[#allocation3 + $0x60] sm:$0xff] %vm311, %v869
  %888 = vst.msk [vmem:[#allocation3 + $0x68] sm:$0xff] %vm311, %v870
  %889 = vst.msk [vmem:[#allocation3 + $0x70] sm:$0xff] %vm311, %v871
  %890 = vst.msk [vmem:[#allocation3 + $0x78] sm:$0xff] %vm311, %v872
  %891 = vst.msk [vmem:[#allocation3 + $0x80] sm:$0xff] %vm311, %v873
  %892 = vst.msk [vmem:[#allocation3 + $0x88] sm:$0xff] %vm311, %v874
  %v893 = vld [vmem:[#allocation2] sm:$0xf0]
  %v894 = vld [vmem:[#allocation2 + $0x8] sm:$0xff]
  %v895 = vld [vmem:[#allocation2 + $0x10] sm:$0xff]
  %v896 = vld [vmem:[#allocation2 + $0x18] sm:$0xff]
  %v897 = vld [vmem:[#allocation2 + $0x20] sm:$0xff]
  %v898 = vld [vmem:[#allocation2 + $0x28] sm:$0xff]
  %v899 = vld [vmem:[#allocation2 + $0x30] sm:$0xff]
  %v900 = vld [vmem:[#allocation2 + $0x38] sm:$0xff]
  %v901 = vld [vmem:[#allocation2 + $0x40] sm:$0xff]
  %v902 = vld [vmem:[#allocation2 + $0x48] sm:$0x1f]
  %v903 = vld [vmem:[%s2 + $0x60] sm:$0xf]
  %v904 = vld [vmem:[%s2 + $0x64] sm:$0xf]
  %v905 = vld [vmem:[%s2 + $0x68] sm:$0xf]
  %v906 = vld [vmem:[%s2 + $0x6c] sm:$0xf]
  %v907 = vld [vmem:[%s2 + $0x70] sm:$0xf]
  %v908 = vld [vmem:[%s2 + $0x74] sm:$0xf]
  %v909 = vld [vmem:[%s2 + $0x78] sm:$0xf]
  %v910 = vld [vmem:[%s2 + $0x7c] sm:$0xf]
  %vm911 = vsmask.f32 3328
  %v913 = vshrl.u32 %v893, 16
  %v915 = vrot.slane %v913, 4
  %v916 = vshll.u32 %v893, 16
  %v918 = vrot.slane %v916, 5
  %v919 = vor.u32 %v915, %v918
  %v921 = vshrl.u32 %v894, 16
  %v923 = vrot.slane %v921, 4
  %v924 = vshll.u32 %v894, 16
  %v926 = vrot.slane %v924, 5
  %v927 = vor.u32 %v923, %v926
  %v928 = vsel %vm911, %v919, %v927
  %v930 = vshrl.u32 %v895, 16
  %v932 = vrot.slane %v930, 4
  %v933 = vshll.u32 %v895, 16
  %v935 = vrot.slane %v933, 5
  %v936 = vor.u32 %v932, %v935
  %v937 = vsel %vm911, %v927, %v936
  %v939 = vshrl.u32 %v896, 16
  %v941 = vrot.slane %v939, 4
  %v942 = vshll.u32 %v896, 16
  %v944 = vrot.slane %v942, 5
  %v945 = vor.u32 %v941, %v944
  %v946 = vsel %vm911, %v936, %v945
  %v948 = vshrl.u32 %v897, 16
  %v950 = vrot.slane %v948, 4
  %v951 = vshll.u32 %v897, 16
  %v953 = vrot.slane %v951, 5
  %v954 = vor.u32 %v950, %v953
  %v955 = vsel %vm911, %v945, %v954
  %v957 = vshrl.u32 %v898, 16
  %v959 = vrot.slane %v957, 4
  %v960 = vshll.u32 %v898, 16
  %v962 = vrot.slane %v960, 5
  %v963 = vor.u32 %v959, %v962
  %v964 = vsel %vm911, %v954, %v963
  %v966 = vshrl.u32 %v899, 16
  %v968 = vrot.slane %v966, 4
  %v969 = vshll.u32 %v899, 16
  %v971 = vrot.slane %v969, 5
  %v972 = vor.u32 %v968, %v971
  %v973 = vsel %vm911, %v963, %v972
  %v975 = vshrl.u32 %v900, 16
  %v977 = vrot.slane %v975, 4
  %v978 = vshll.u32 %v900, 16
  %v980 = vrot.slane %v978, 5
  %v981 = vor.u32 %v977, %v980
  %v982 = vsel %vm911, %v972, %v981
  %v984 = vshrl.u32 %v901, 16
  %v986 = vrot.slane %v984, 4
  %v987 = vshll.u32 %v901, 16
  %v989 = vrot.slane %v987, 5
  %v990 = vor.u32 %v986, %v989
  %v991 = vsel %vm911, %v981, %v990
  %v993 = vshrl.u32 %v902, 16
  %v995 = vrot.slane %v993, 4
  %v996 = vshll.u32 %v902, 16
  %v998 = vrot.slane %v996, 5
  %v999 = vor.u32 %v995, %v998
  %v1000 = vsel %vm911, %v990, %v999
  %v1009 = vunpack.c.l.b16 %v903
  %v1010 = vunpack.c.l.b16 %v904
  %v1011 = vunpack.c.l.b16 %v905
  %v1012 = vunpack.c.l.b16 %v906
  %v1013 = vunpack.c.l.b16 %v907
  %v1014 = vunpack.c.l.b16 %v908
  %v1015 = vunpack.c.l.b16 %v909
  %v1016 = vunpack.c.l.b16 %v910
  %v1017 = vpack.c.b16 %v1010, %v1009
  %v1018 = vpack.c.b16 %v1012, %v1011
  %v1019 = vpack.c.b16 %v1014, %v1013
  %v1020 = vpack.c.b16 %v1016, %v1015
  %v1026 = vsel %vm112, %v928, 0
  %v1029 = vsel %vm112, %v937, 0
  %v1032 = vsel %vm112, %v946, 0
  %v1035 = vsel %vm112, %v955, 0
  %v1038 = vsel %vm112, %v964, 0
  %v1041 = vsel %vm112, %v973, 0
  %v1044 = vsel %vm112, %v982, 0
  %v1047 = vsel %vm112, %v991, 0
  %v1050 = vsel %vm112, %v1000, 0
  %1052 = vmatprep.subr.bf16.mxu0 0
  %1053 = vmatpush1.bf16.msra.mxu0 %v1017
  %1054 = vmatprep.subr.bf16.mxu0 0
  %1055 = vmatpush1.bf16.msra.mxu0 %v1018
  %1056 = vmatprep.subr.bf16.mxu0 0
  %1057 = vmatpush1.bf16.msra.mxu0 %v1019
  %1058 = vmatprep.subr.bf16.mxu0 0
  %1059 = vmatpush1.bf16.msra.mxu0 %v1020
  %1060 = vmatprep.subr.bf16.mxu0 0
  %1061 = vmatpush1.bf16.msra.mxu0 0
  %1062 = vmatprep.subr.bf16.mxu0 0
  %1063 = vmatpush1.bf16.msra.mxu0 0
  %1064 = vmatprep.subr.bf16.mxu0 0
  %1065 = vmatpush1.bf16.msra.mxu0 0
  %1066 = vmatprep.subr.bf16.mxu0 0
  %1067 = vmatpush1.bf16.msra.mxu0 0
  %1068 = vmatprep.subr.bf16.mxu0 0
  %1069 = vmatpush1.bf16.msra.mxu0 0
  %1070 = vmatprep.subr.bf16.mxu0 0
  %1071 = vmatpush1.bf16.msra.mxu0 0
  %1072 = vmatprep.subr.bf16.mxu0 0
  %1073 = vmatpush1.bf16.msra.mxu0 0
  %1074 = vmatprep.subr.bf16.mxu0 0
  %1075 = vmatpush1.bf16.msra.mxu0 0
  %1076 = vmatprep.subr.bf16.mxu0 0
  %1077 = vmatpush1.bf16.msra.mxu0 0
  %1078 = vmatprep.subr.bf16.mxu0 0
  %1079 = vmatpush1.bf16.msra.mxu0 0
  %1080 = vmatprep.subr.bf16.mxu0 0
  %1081 = vmatpush1.bf16.msra.mxu0 0
  %1082 = vmatprep.subr.bf16.mxu0 0
  %1083 = vmatpush1.bf16.msra.mxu0 0
  %1084 = vmatprep.mubr.bf16.mxu0 0
  %1085 = vmatmul.mubr.bf16.gmra.mrb[0].mxu0 %v1026
  %v1086 = vpop.f32.mrb[0].mxu0
  %v1087 = vadd.f32 0.0, %v1086
  %v1088 = vpop.f32.mrb[0].mxu0
  %v1089 = vpop.f32.mrb[0].mxu0
  %v1090 = vadd.f32 0.0, %v1089
  %v1091 = vpop.f32.mrb[0].mxu0
  %1092 = vmatprep.mubr.bf16.mxu0 0
  %1093 = vmatmul.mubr.bf16.gmra.mrb[0].mxu0 %v1029
  %v1094 = vpop.f32.mrb[0].mxu0
  %v1095 = vadd.f32 0.0, %v1094
  %v1096 = vpop.f32.mrb[0].mxu0
  %v1097 = vpop.f32.mrb[0].mxu0
  %v1098 = vadd.f32 0.0, %v1097
  %v1099 = vpop.f32.mrb[0].mxu0
  %1100 = vmatprep.mubr.bf16.mxu0 0
  %1101 = vmatmul.mubr.bf16.gmra.mrb[0].mxu0 %v1032
  %v1102 = vpop.f32.mrb[0].mxu0
  %v1103 = vadd.f32 0.0, %v1102
  %v1104 = vpop.f32.mrb[0].mxu0
  %v1105 = vpop.f32.mrb[0].mxu0
  %v1106 = vadd.f32 0.0, %v1105
  %v1107 = vpop.f32.mrb[0].mxu0
  %1108 = vmatprep.mubr.bf16.mxu0 0
  %1109 = vmatmul.mubr.bf16.gmra.mrb[0].mxu0 %v1035
  %v1110 = vpop.f32.mrb[0].mxu0
  %v1111 = vadd.f32 0.0, %v1110
  %v1112 = vpop.f32.mrb[0].mxu0
  %v1113 = vpop.f32.mrb[0].mxu0
  %v1114 = vadd.f32 0.0, %v1113
  %v1115 = vpop.f32.mrb[0].mxu0
  %1116 = vmatprep.mubr.bf16.mxu0 0
  %1117 = vmatmul.mubr.bf16.gmra.mrb[0].mxu0 %v1038
  %v1118 = vpop.f32.mrb[0].mxu0
  %v1119 = vadd.f32 0.0, %v1118
  %v1120 = vpop.f32.mrb[0].mxu0
  %v1121 = vpop.f32.mrb[0].mxu0
  %v1122 = vadd.f32 0.0, %v1121
  %v1123 = vpop.f32.mrb[0].mxu0
  %1124 = vmatprep.mubr.bf16.mxu0 0
  %1125 = vmatmul.mubr.bf16.gmra.mrb[0].mxu0 %v1041
  %v1126 = vpop.f32.mrb[0].mxu0
  %v1127 = vadd.f32 0.0, %v1126
  %v1128 = vpop.f32.mrb[0].mxu0
  %v1129 = vpop.f32.mrb[0].mxu0
  %v1130 = vadd.f32 0.0, %v1129
  %v1131 = vpop.f32.mrb[0].mxu0
  %1132 = vmatprep.mubr.bf16.mxu0 0
  %1133 = vmatmul.mubr.bf16.gmra.mrb[0].mxu0 %v1044
  %v1134 = vpop.f32.mrb[0].mxu0
  %v1135 = vadd.f32 0.0, %v1134
  %v1136 = vpop.f32.mrb[0].mxu0
  %v1137 = vpop.f32.mrb[0].mxu0
  %v1138 = vadd.f32 0.0, %v1137
  %v1139 = vpop.f32.mrb[0].mxu0
  %1140 = vmatprep.mubr.bf16.mxu0 0
  %1141 = vmatmul.mubr.bf16.gmra.mrb[0].mxu0 %v1047
  %v1142 = vpop.f32.mrb[0].mxu0
  %v1143 = vadd.f32 0.0, %v1142
  %v1144 = vpop.f32.mrb[0].mxu0
  %v1145 = vpop.f32.mrb[0].mxu0
  %v1146 = vadd.f32 0.0, %v1145
  %v1147 = vpop.f32.mrb[0].mxu0
  %1148 = vmatprep.mubr.bf16.mxu0 0
  %1149 = vmatmul.mubr.bf16.gmra.mrb[0].mxu0 %v1050
  %v1150 = vpop.f32.mrb[0].mxu0
  %v1151 = vadd.f32 0.0, %v1150
  %v1152 = vpop.f32.mrb[0].mxu0
  %v1153 = vpop.f32.mrb[0].mxu0
  %v1154 = vadd.f32 0.0, %v1153
  %v1155 = vpop.f32.mrb[0].mxu0
  %1156 = vdwg.mxu0
  %v1157 = vld [vmem:[#allocation3] sm:$0xff]
  %v1158 = vld [vmem:[#allocation3 + $0x8] sm:$0xff]
  %v1159 = vld [vmem:[#allocation3 + $0x10] sm:$0xff]
  %v1160 = vld [vmem:[#allocation3 + $0x18] sm:$0xff]
  %v1161 = vld [vmem:[#allocation3 + $0x20] sm:$0xff]
  %v1162 = vld [vmem:[#allocation3 + $0x28] sm:$0xff]
  %v1163 = vld [vmem:[#allocation3 + $0x30] sm:$0xff]
  %v1164 = vld [vmem:[#allocation3 + $0x38] sm:$0xff]
  %v1165 = vld [vmem:[#allocation3 + $0x40] sm:$0xff]
  %v1166 = vld [vmem:[#allocation3 + $0x48] sm:$0xff]
  %v1167 = vld [vmem:[#allocation3 + $0x50] sm:$0xff]
  %v1168 = vld [vmem:[#allocation3 + $0x58] sm:$0xff]
  %v1169 = vld [vmem:[#allocation3 + $0x60] sm:$0xff]
  %v1170 = vld [vmem:[#allocation3 + $0x68] sm:$0xff]
  %v1171 = vld [vmem:[#allocation3 + $0x70] sm:$0xff]
  %v1172 = vld [vmem:[#allocation3 + $0x78] sm:$0xff]
  %v1173 = vld [vmem:[#allocation3 + $0x80] sm:$0xff]
  %v1174 = vld [vmem:[#allocation3 + $0x88] sm:$0xff]
  %v1175 = vadd.f32 %v1157, %v1087
  %v1176 = vadd.f32 %v1158, %v1090
  %v1177 = vadd.f32 %v1159, %v1095
  %v1178 = vadd.f32 %v1160, %v1098
  %v1179 = vadd.f32 %v1161, %v1103
  %v1180 = vadd.f32 %v1162, %v1106
  %v1181 = vadd.f32 %v1163, %v1111
  %v1182 = vadd.f32 %v1164, %v1114
  %v1183 = vadd.f32 %v1165, %v1119
  %v1184 = vadd.f32 %v1166, %v1122
  %v1185 = vadd.f32 %v1167, %v1127
  %v1186 = vadd.f32 %v1168, %v1130
  %v1187 = vadd.f32 %v1169, %v1135
  %v1188 = vadd.f32 %v1170, %v1138
  %v1189 = vadd.f32 %v1171, %v1143
  %v1190 = vadd.f32 %v1172, %v1146
  %v1191 = vadd.f32 %v1173, %v1151
  %v1192 = vadd.f32 %v1174, %v1154
  %1193 = vst.msk [vmem:[#allocation3] sm:$0xff] %vm311, %v1175
  %1194 = vst.msk [vmem:[#allocation3 + $0x8] sm:$0xff] %vm311, %v1176
  %1195 = vst.msk [vmem:[#allocation3 + $0x10] sm:$0xff] %vm311, %v1177
  %1196 = vst.msk [vmem:[#allocation3 + $0x18] sm:$0xff] %vm311, %v1178
  %1197 = vst.msk [vmem:[#allocation3 + $0x20] sm:$0xff] %vm311, %v1179
  %1198 = vst.msk [vmem:[#allocation3 + $0x28] sm:$0xff] %vm311, %v1180
  %1199 = vst.msk [vmem:[#allocation3 + $0x30] sm:$0xff] %vm311, %v1181
  %1200 = vst.msk [vmem:[#allocation3 + $0x38] sm:$0xff] %vm311, %v1182
  %1201 = vst.msk [vmem:[#allocation3 + $0x40] sm:$0xff] %vm311, %v1183
  %1202 = vst.msk [vmem:[#allocation3 + $0x48] sm:$0xff] %vm311, %v1184
  %1203 = vst.msk [vmem:[#allocation3 + $0x50] sm:$0xff] %vm311, %v1185
  %1204 = vst.msk [vmem:[#allocation3 + $0x58] sm:$0xff] %vm311, %v1186
  %1205 = vst.msk [vmem:[#allocation3 + $0x60] sm:$0xff] %vm311, %v1187
  %1206 = vst.msk [vmem:[#allocation3 + $0x68] sm:$0xff] %vm311, %v1188
  %1207 = vst.msk [vmem:[#allocation3 + $0x70] sm:$0xff] %vm311, %v1189
  %1208 = vst.msk [vmem:[#allocation3 + $0x78] sm:$0xff] %vm311, %v1190
  %1209 = vst.msk [vmem:[#allocation3 + $0x80] sm:$0xff] %vm311, %v1191
  %1210 = vst.msk [vmem:[#allocation3 + $0x88] sm:$0xff] %vm311, %v1192
  %v1211 = vld [vmem:[#allocation2] sm:$0xe0]
  %v1212 = vld [vmem:[#allocation2 + $0x8] sm:$0xff]
  %v1213 = vld [vmem:[#allocation2 + $0x10] sm:$0xff]
  %v1214 = vld [vmem:[#allocation2 + $0x18] sm:$0xff]
  %v1215 = vld [vmem:[#allocation2 + $0x20] sm:$0xff]
  %v1216 = vld [vmem:[#allocation2 + $0x28] sm:$0xff]
  %v1217 = vld [vmem:[#allocation2 + $0x30] sm:$0xff]
  %v1218 = vld [vmem:[#allocation2 + $0x38] sm:$0xff]
  %v1219 = vld [vmem:[#allocation2 + $0x40] sm:$0xff]
  %v1220 = vld [vmem:[#allocation2 + $0x48] sm:$0x1f]
  %v1221 = vld [vmem:[%s2 + $0x80] sm:$0xf]
  %v1222 = vld [vmem:[%s2 + $0x84] sm:$0xf]
  %v1223 = vld [vmem:[%s2 + $0x88] sm:$0xf]
  %v1224 = vld [vmem:[%s2 + $0x8c] sm:$0xf]
  %v1225 = vld [vmem:[%s2 + $0x90] sm:$0xf]
  %v1226 = vld [vmem:[%s2 + $0x94] sm:$0xf]
  %v1227 = vld [vmem:[%s2 + $0x98] sm:$0xf]
  %v1228 = vld [vmem:[%s2 + $0x9c] sm:$0xf]
  %vm1239 = vcmask 1042432
  %v1240 = vrot.slane %v1211, 5
  %v1241 = vrot.slane %v1212, 5
  %v1242 = vsel %vm1239, %v1240, %v1241
  %v1243 = vrot.slane %v1213, 5
  %v1244 = vsel %vm1239, %v1241, %v1243
  %v1245 = vrot.slane %v1214, 5
  %v1246 = vsel %vm1239, %v1243, %v1245
  %v1247 = vrot.slane %v1215, 5
  %v1248 = vsel %vm1239, %v1245, %v1247
  %v1249 = vrot.slane %v1216, 5
  %v1250 = vsel %vm1239, %v1247, %v1249
  %v1251 = vrot.slane %v1217, 5
  %v1252 = vsel %vm1239, %v1249, %v1251
  %v1253 = vrot.slane %v1218, 5
  %v1254 = vsel %vm1239, %v1251, %v1253
  %v1255 = vrot.slane %v1219, 5
  %v1256 = vsel %vm1239, %v1253, %v1255
  %v1257 = vrot.slane %v1220, 5
  %v1258 = vsel %vm1239, %v1255, %v1257
  %v1267 = vunpack.c.l.b16 %v1221
  %v1268 = vunpack.c.l.b16 %v1222
  %v1269 = vunpack.c.l.b16 %v1223
  %v1270 = vunpack.c.l.b16 %v1224
  %v1271 = vunpack.c.l.b16 %v1225
  %v1272 = vunpack.c.l.b16 %v1226
  %v1273 = vunpack.c.l.b16 %v1227
  %v1274 = vunpack.c.l.b16 %v1228
  %v1275 = vpack.c.b16 %v1268, %v1267
  %v1276 = vpack.c.b16 %v1270, %v1269
  %v1277 = vpack.c.b16 %v1272, %v1271
  %v1278 = vpack.c.b16 %v1274, %v1273
  %v1284 = vsel %vm112, %v1242, 0
  %v1287 = vsel %vm112, %v1244, 0
  %v1290 = vsel %vm112, %v1246, 0
  %v1293 = vsel %vm112, %v1248, 0
  %v1296 = vsel %vm112, %v1250, 0
  %v1299 = vsel %vm112, %v1252, 0
  %v1302 = vsel %vm112, %v1254, 0
  %v1305 = vsel %vm112, %v1256, 0
  %v1308 = vsel %vm112, %v1258, 0
  %1310 = vmatprep.subr.bf16.mxu0 0
  %1311 = vmatpush1.bf16.msra.mxu0 %v1275
  %1312 = vmatprep.subr.bf16.mxu0 0
  %1313 = vmatpush1.bf16.msra.mxu0 %v1276
  %1314 = vmatprep.subr.bf16.mxu0 0
  %1315 = vmatpush1.bf16.msra.mxu0 %v1277
  %1316 = vmatprep.subr.bf16.mxu0 0
  %1317 = vmatpush1.bf16.msra.mxu0 %v1278
  %1318 = vmatprep.subr.bf16.mxu0 0
  %1319 = vmatpush1.bf16.msra.mxu0 0
  %1320 = vmatprep.subr.bf16.mxu0 0
  %1321 = vmatpush1.bf16.msra.mxu0 0
  %1322 = vmatprep.subr.bf16.mxu0 0
  %1323 = vmatpush1.bf16.msra.mxu0 0
  %1324 = vmatprep.subr.bf16.mxu0 0
  %1325 = vmatpush1.bf16.msra.mxu0 0
  %1326 = vmatprep.subr.bf16.mxu0 0
  %1327 = vmatpush1.bf16.msra.mxu0 0
  %1328 = vmatprep.subr.bf16.mxu0 0
  %1329 = vmatpush1.bf16.msra.mxu0 0
  %1330 = vmatprep.subr.bf16.mxu0 0
  %1331 = vmatpush1.bf16.msra.mxu0 0
  %1332 = vmatprep.subr.bf16.mxu0 0
  %1333 = vmatpush1.bf16.msra.mxu0 0
  %1334 = vmatprep.subr.bf16.mxu0 0
  %1335 = vmatpush1.bf16.msra.mxu0 0
  %1336 = vmatprep.subr.bf16.mxu0 0
  %1337 = vmatpush1.bf16.msra.mxu0 0
  %1338 = vmatprep.subr.bf16.mxu0 0
  %1339 = vmatpush1.bf16.msra.mxu0 0
  %1340 = vmatprep.subr.bf16.mxu0 0
  %1341 = vmatpush1.bf16.msra.mxu0 0
  %1342 = vmatprep.mubr.bf16.mxu0 0
  %1343 = vmatmul.mubr.bf16.gmra.mrb[0].mxu0 %v1284
  %v1344 = vpop.f32.mrb[0].mxu0
  %v1345 = vadd.f32 0.0, %v1344
  %v1346 = vpop.f32.mrb[0].mxu0
  %v1347 = vpop.f32.mrb[0].mxu0
  %v1348 = vadd.f32 0.0, %v1347
  %v1349 = vpop.f32.mrb[0].mxu0
  %1350 = vmatprep.mubr.bf16.mxu0 0
  %1351 = vmatmul.mubr.bf16.gmra.mrb[0].mxu0 %v1287
  %v1352 = vpop.f32.mrb[0].mxu0
  %v1353 = vadd.f32 0.0, %v1352
  %v1354 = vpop.f32.mrb[0].mxu0
  %v1355 = vpop.f32.mrb[0].mxu0
  %v1356 = vadd.f32 0.0, %v1355
  %v1357 = vpop.f32.mrb[0].mxu0
  %1358 = vmatprep.mubr.bf16.mxu0 0
  %1359 = vmatmul.mubr.bf16.gmra.mrb[0].mxu0 %v1290
  %v1360 = vpop.f32.mrb[0].mxu0
  %v1361 = vadd.f32 0.0, %v1360
  %v1362 = vpop.f32.mrb[0].mxu0
  %v1363 = vpop.f32.mrb[0].mxu0
  %v1364 = vadd.f32 0.0, %v1363
  %v1365 = vpop.f32.mrb[0].mxu0
  %1366 = vmatprep.mubr.bf16.mxu0 0
  %1367 = vmatmul.mubr.bf16.gmra.mrb[0].mxu0 %v1293
  %v1368 = vpop.f32.mrb[0].mxu0
  %v1369 = vadd.f32 0.0, %v1368
  %v1370 = vpop.f32.mrb[0].mxu0
  %v1371 = vpop.f32.mrb[0].mxu0
  %v1372 = vadd.f32 0.0, %v1371
  %v1373 = vpop.f32.mrb[0].mxu0
  %1374 = vmatprep.mubr.bf16.mxu0 0
  %1375 = vmatmul.mubr.bf16.gmra.mrb[0].mxu0 %v1296
  %v1376 = vpop.f32.mrb[0].mxu0
  %v1377 = vadd.f32 0.0, %v1376
  %v1378 = vpop.f32.mrb[0].mxu0
  %v1379 = vpop.f32.mrb[0].mxu0
  %v1380 = vadd.f32 0.0, %v1379
  %v1381 = vpop.f32.mrb[0].mxu0
  %1382 = vmatprep.mubr.bf16.mxu0 0
  %1383 = vmatmul.mubr.bf16.gmra.mrb[0].mxu0 %v1299
  %v1384 = vpop.f32.mrb[0].mxu0
  %v1385 = vadd.f32 0.0, %v1384
  %v1386 = vpop.f32.mrb[0].mxu0
  %v1387 = vpop.f32.mrb[0].mxu0
  %v1388 = vadd.f32 0.0, %v1387
  %v1389 = vpop.f32.mrb[0].mxu0
  %1390 = vmatprep.mubr.bf16.mxu0 0
  %1391 = vmatmul.mubr.bf16.gmra.mrb[0].mxu0 %v1302
  %v1392 = vpop.f32.mrb[0].mxu0
  %v1393 = vadd.f32 0.0, %v1392
  %v1394 = vpop.f32.mrb[0].mxu0
  %v1395 = vpop.f32.mrb[0].mxu0
  %v1396 = vadd.f32 0.0, %v1395
  %v1397 = vpop.f32.mrb[0].mxu0
  %1398 = vmatprep.mubr.bf16.mxu0 0
  %1399 = vmatmul.mubr.bf16.gmra.mrb[0].mxu0 %v1305
  %v1400 = vpop.f32.mrb[0].mxu0
  %v1401 = vadd.f32 0.0, %v1400
  %v1402 = vpop.f32.mrb[0].mxu0
  %v1403 = vpop.f32.mrb[0].mxu0
  %v1404 = vadd.f32 0.0, %v1403
  %v1405 = vpop.f32.mrb[0].mxu0
  %1406 = vmatprep.mubr.bf16.mxu0 0
  %1407 = vmatmul.mubr.bf16.gmra.mrb[0].mxu0 %v1308
  %v1408 = vpop.f32.mrb[0].mxu0
  %v1409 = vadd.f32 0.0, %v1408
  %v1410 = vpop.f32.mrb[0].mxu0
  %v1411 = vpop.f32.mrb[0].mxu0
  %v1412 = vadd.f32 0.0, %v1411
  %v1413 = vpop.f32.mrb[0].mxu0
  %1414 = vdwg.mxu0
  %v1415 = vld [vmem:[#allocation3] sm:$0xff]
  %v1416 = vld [vmem:[#allocation3 + $0x8] sm:$0xff]
  %v1417 = vld [vmem:[#allocation3 + $0x10] sm:$0xff]
  %v1418 = vld [vmem:[#allocation3 + $0x18] sm:$0xff]
  %v1419 = vld [vmem:[#allocation3 + $0x20] sm:$0xff]
  %v1420 = vld [vmem:[#allocation3 + $0x28] sm:$0xff]
  %v1421 = vld [vmem:[#allocation3 + $0x30] sm:$0xff]
  %v1422 = vld [vmem:[#allocation3 + $0x38] sm:$0xff]
  %v1423 = vld [vmem:[#allocation3 + $0x40] sm:$0xff]
  %v1424 = vld [vmem:[#allocation3 + $0x48] sm:$0xff]
  %v1425 = vld [vmem:[#allocation3 + $0x50] sm:$0xff]
  %v1426 = vld [vmem:[#allocation3 + $0x58] sm:$0xff]
  %v1427 = vld [vmem:[#allocation3 + $0x60] sm:$0xff]
  %v1428 = vld [vmem:[#allocation3 + $0x68] sm:$0xff]
  %v1429 = vld [vmem:[#allocation3 + $0x70] sm:$0xff]
  %v1430 = vld [vmem:[#allocation3 + $0x78] sm:$0xff]
  %v1431 = vld [vmem:[#allocation3 + $0x80] sm:$0xff]
  %v1432 = vld [vmem:[#allocation3 + $0x88] sm:$0xff]
  %v1433 = vadd.f32 %v1415, %v1345
  %v1434 = vadd.f32 %v1416, %v1348
  %v1435 = vadd.f32 %v1417, %v1353
  %v1436 = vadd.f32 %v1418, %v1356
  %v1437 = vadd.f32 %v1419, %v1361
  %v1438 = vadd.f32 %v1420, %v1364
  %v1439 = vadd.f32 %v1421, %v1369
  %v1440 = vadd.f32 %v1422, %v1372
  %v1441 = vadd.f32 %v1423, %v1377
  %v1442 = vadd.f32 %v1424, %v1380
  %v1443 = vadd.f32 %v1425, %v1385
  %v1444 = vadd.f32 %v1426, %v1388
  %v1445 = vadd.f32 %v1427, %v1393
  %v1446 = vadd.f32 %v1428, %v1396
  %v1447 = vadd.f32 %v1429, %v1401
  %v1448 = vadd.f32 %v1430, %v1404
  %v1449 = vadd.f32 %v1431, %v1409
  %v1450 = vadd.f32 %v1432, %v1412
  %1451 = vst.msk [vmem:[#allocation3] sm:$0xff] %vm311, %v1433
  %1452 = vst.msk [vmem:[#allocation3 + $0x8] sm:$0xff] %vm311, %v1434
  %1453 = vst.msk [vmem:[#allocation3 + $0x10] sm:$0xff] %vm311, %v1435
  %1454 = vst.msk [vmem:[#allocation3 + $0x18] sm:$0xff] %vm311, %v1436
  %1455 = vst.msk [vmem:[#allocation3 + $0x20] sm:$0xff] %vm311, %v1437
  %1456 = vst.msk [vmem:[#allocation3 + $0x28] sm:$0xff] %vm311, %v1438
  %1457 = vst.msk [vmem:[#allocation3 + $0x30] sm:$0xff] %vm311, %v1439
  %1458 = vst.msk [vmem:[#allocation3 + $0x38] sm:$0xff] %vm311, %v1440
  %1459 = vst.msk [vmem:[#allocation3 + $0x40] sm:$0xff] %vm311, %v1441
  %1460 = vst.msk [vmem:[#allocation3 + $0x48] sm:$0xff] %vm311, %v1442
  %1461 = vst.msk [vmem:[#allocation3 + $0x50] sm:$0xff] %vm311, %v1443
  %1462 = vst.msk [vmem:[#allocation3 + $0x58] sm:$0xff] %vm311, %v1444
  %1463 = vst.msk [vmem:[#allocation3 + $0x60] sm:$0xff] %vm311, %v1445
  %1464 = vst.msk [vmem:[#allocation3 + $0x68] sm:$0xff] %vm311, %v1446
  %1465 = vst.msk [vmem:[#allocation3 + $0x70] sm:$0xff] %vm311, %v1447
  %1466 = vst.msk [vmem:[#allocation3 + $0x78] sm:$0xff] %vm311, %v1448
  %1467 = vst.msk [vmem:[#allocation3 + $0x80] sm:$0xff] %vm311, %v1449
  %1468 = vst.msk [vmem:[#allocation3 + $0x88] sm:$0xff] %vm311, %v1450
  %v1469 = vld [vmem:[#allocation2] sm:$0xe0]
  %v1470 = vld [vmem:[#allocation2 + $0x8] sm:$0xff]
  %v1471 = vld [vmem:[#allocation2 + $0x10] sm:$0xff]
  %v1472 = vld [vmem:[#allocation2 + $0x18] sm:$0xff]
  %v1473 = vld [vmem:[#allocation2 + $0x20] sm:$0xff]
  %v1474 = vld [vmem:[#allocation2 + $0x28] sm:$0xff]
  %v1475 = vld [vmem:[#allocation2 + $0x30] sm:$0xff]
  %v1476 = vld [vmem:[#allocation2 + $0x38] sm:$0xff]
  %v1477 = vld [vmem:[#allocation2 + $0x40] sm:$0xff]
  %v1478 = vld [vmem:[#allocation2 + $0x48] sm:$0x3f]
  %v1479 = vld [vmem:[%s2 + $0xa0] sm:$0xf]
  %v1480 = vld [vmem:[%s2 + $0xa4] sm:$0xf]
  %v1481 = vld [vmem:[%s2 + $0xa8] sm:$0xf]
  %v1482 = vld [vmem:[%s2 + $0xac] sm:$0xf]
  %v1483 = vld [vmem:[%s2 + $0xb0] sm:$0xf]
  %v1484 = vld [vmem:[%s2 + $0xb4] sm:$0xf]
  %v1485 = vld [vmem:[%s2 + $0xb8] sm:$0xf]
  %v1486 = vld [vmem:[%s2 + $0xbc] sm:$0xf]
  %vm1487 = vsmask.f32 2304
  %v1489 = vshrl.u32 %v1469, 16
  %v1491 = vrot.slane %v1489, 5
  %v1492 = vshll.u32 %v1469, 16
  %v1494 = vrot.slane %v1492, 6
  %v1495 = vor.u32 %v1491, %v1494
  %v1497 = vshrl.u32 %v1470, 16
  %v1499 = vrot.slane %v1497, 5
  %v1500 = vshll.u32 %v1470, 16
  %v1502 = vrot.slane %v1500, 6
  %v1503 = vor.u32 %v1499, %v1502
  %v1504 = vsel %vm1487, %v1495, %v1503
  %v1506 = vshrl.u32 %v1471, 16
  %v1508 = vrot.slane %v1506, 5
  %v1509 = vshll.u32 %v1471, 16
  %v1511 = vrot.slane %v1509, 6
  %v1512 = vor.u32 %v1508, %v1511
  %v1513 = vsel %vm1487, %v1503, %v1512
  %v1515 = vshrl.u32 %v1472, 16
  %v1517 = vrot.slane %v1515, 5
  %v1518 = vshll.u32 %v1472, 16
  %v1520 = vrot.slane %v1518, 6
  %v1521 = vor.u32 %v1517, %v1520
  %v1522 = vsel %vm1487, %v1512, %v1521
  %v1524 = vshrl.u32 %v1473, 16
  %v1526 = vrot.slane %v1524, 5
  %v1527 = vshll.u32 %v1473, 16
  %v1529 = vrot.slane %v1527, 6
  %v1530 = vor.u32 %v1526, %v1529
  %v1531 = vsel %vm1487, %v1521, %v1530
  %v1533 = vshrl.u32 %v1474, 16
  %v1535 = vrot.slane %v1533, 5
  %v1536 = vshll.u32 %v1474, 16
  %v1538 = vrot.slane %v1536, 6
  %v1539 = vor.u32 %v1535, %v1538
  %v1540 = vsel %vm1487, %v1530, %v1539
  %v1542 = vshrl.u32 %v1475, 16
  %v1544 = vrot.slane %v1542, 5
  %v1545 = vshll.u32 %v1475, 16
  %v1547 = vrot.slane %v1545, 6
  %v1548 = vor.u32 %v1544, %v1547
  %v1549 = vsel %vm1487, %v1539, %v1548
  %v1551 = vshrl.u32 %v1476, 16
  %v1553 = vrot.slane %v1551, 5
  %v1554 = vshll.u32 %v1476, 16
  %v1556 = vrot.slane %v1554, 6
  %v1557 = vor.u32 %v1553, %v1556
  %v1558 = vsel %vm1487, %v1548, %v1557
  %v1560 = vshrl.u32 %v1477, 16
  %v1562 = vrot.slane %v1560, 5
  %v1563 = vshll.u32 %v1477, 16
  %v1565 = vrot.slane %v1563, 6
  %v1566 = vor.u32 %v1562, %v1565
  %v1567 = vsel %vm1487, %v1557, %v1566
  %v1569 = vshrl.u32 %v1478, 16
  %v1571 = vrot.slane %v1569, 5
  %v1572 = vshll.u32 %v1478, 16
  %v1574 = vrot.slane %v1572, 6
  %v1575 = vor.u32 %v1571, %v1574
  %v1576 = vsel %vm1487, %v1566, %v1575
  %v1585 = vunpack.c.l.b16 %v1479
  %v1586 = vunpack.c.l.b16 %v1480
  %v1587 = vunpack.c.l.b16 %v1481
  %v1588 = vunpack.c.l.b16 %v1482
  %v1589 = vunpack.c.l.b16 %v1483
  %v1590 = vunpack.c.l.b16 %v1484
  %v1591 = vunpack.c.l.b16 %v1485
  %v1592 = vunpack.c.l.b16 %v1486
  %v1593 = vpack.c.b16 %v1586, %v1585
  %v1594 = vpack.c.b16 %v1588, %v1587
  %v1595 = vpack.c.b16 %v1590, %v1589
  %v1596 = vpack.c.b16 %v1592, %v1591
  %v1602 = vsel %vm112, %v1504, 0
  %v1605 = vsel %vm112, %v1513, 0
  %v1608 = vsel %vm112, %v1522, 0
  %v1611 = vsel %vm112, %v1531, 0
  %v1614 = vsel %vm112, %v1540, 0
  %v1617 = vsel %vm112, %v1549, 0
  %v1620 = vsel %vm112, %v1558, 0
  %v1623 = vsel %vm112, %v1567, 0
  %v1626 = vsel %vm112, %v1576, 0
  %1628 = vmatprep.subr.bf16.mxu0 0
  %1629 = vmatpush1.bf16.msra.mxu0 %v1593
  %1630 = vmatprep.subr.bf16.mxu0 0
  %1631 = vmatpush1.bf16.msra.mxu0 %v1594
  %1632 = vmatprep.subr.bf16.mxu0 0
  %1633 = vmatpush1.bf16.msra.mxu0 %v1595
  %1634 = vmatprep.subr.bf16.mxu0 0
  %1635 = vmatpush1.bf16.msra.mxu0 %v1596
  %1636 = vmatprep.subr.bf16.mxu0 0
  %1637 = vmatpush1.bf16.msra.mxu0 0
  %1638 = vmatprep.subr.bf16.mxu0 0
  %1639 = vmatpush1.bf16.msra.mxu0 0
  %1640 = vmatprep.subr.bf16.mxu0 0
  %1641 = vmatpush1.bf16.msra.mxu0 0
  %1642 = vmatprep.subr.bf16.mxu0 0
  %1643 = vmatpush1.bf16.msra.mxu0 0
  %1644 = vmatprep.subr.bf16.mxu0 0
  %1645 = vmatpush1.bf16.msra.mxu0 0
  %1646 = vmatprep.subr.bf16.mxu0 0
  %1647 = vmatpush1.bf16.msra.mxu0 0
  %1648 = vmatprep.subr.bf16.mxu0 0
  %1649 = vmatpush1.bf16.msra.mxu0 0
  %1650 = vmatprep.subr.bf16.mxu0 0
  %1651 = vmatpush1.bf16.msra.mxu0 0
  %1652 = vmatprep.subr.bf16.mxu0 0
  %1653 = vmatpush1.bf16.msra.mxu0 0
  %1654 = vmatprep.subr.bf16.mxu0 0
  %1655 = vmatpush1.bf16.msra.mxu0 0
  %1656 = vmatprep.subr.bf16.mxu0 0
  %1657 = vmatpush1.bf16.msra.mxu0 0
  %1658 = vmatprep.subr.bf16.mxu0 0
  %1659 = vmatpush1.bf16.msra.mxu0 0
  %1660 = vmatprep.mubr.bf16.mxu0 0
  %1661 = vmatmul.mubr.bf16.gmra.mrb[0].mxu0 %v1602
  %v1662 = vpop.f32.mrb[0].mxu0
  %v1663 = vadd.f32 0.0, %v1662
  %v1664 = vpop.f32.mrb[0].mxu0
  %v1665 = vpop.f32.mrb[0].mxu0
  %v1666 = vadd.f32 0.0, %v1665
  %v1667 = vpop.f32.mrb[0].mxu0
  %1668 = vmatprep.mubr.bf16.mxu0 0
  %1669 = vmatmul.mubr.bf16.gmra.mrb[0].mxu0 %v1605
  %v1670 = vpop.f32.mrb[0].mxu0
  %v1671 = vadd.f32 0.0, %v1670
  %v1672 = vpop.f32.mrb[0].mxu0
  %v1673 = vpop.f32.mrb[0].mxu0
  %v1674 = vadd.f32 0.0, %v1673
  %v1675 = vpop.f32.mrb[0].mxu0
  %1676 = vmatprep.mubr.bf16.mxu0 0
  %1677 = vmatmul.mubr.bf16.gmra.mrb[0].mxu0 %v1608
  %v1678 = vpop.f32.mrb[0].mxu0
  %v1679 = vadd.f32 0.0, %v1678
  %v1680 = vpop.f32.mrb[0].mxu0
  %v1681 = vpop.f32.mrb[0].mxu0
  %v1682 = vadd.f32 0.0, %v1681
  %v1683 = vpop.f32.mrb[0].mxu0
  %1684 = vmatprep.mubr.bf16.mxu0 0
  %1685 = vmatmul.mubr.bf16.gmra.mrb[0].mxu0 %v1611
  %v1686 = vpop.f32.mrb[0].mxu0
  %v1687 = vadd.f32 0.0, %v1686
  %v1688 = vpop.f32.mrb[0].mxu0
  %v1689 = vpop.f32.mrb[0].mxu0
  %v1690 = vadd.f32 0.0, %v1689
  %v1691 = vpop.f32.mrb[0].mxu0
  %1692 = vmatprep.mubr.bf16.mxu0 0
  %1693 = vmatmul.mubr.bf16.gmra.mrb[0].mxu0 %v1614
  %v1694 = vpop.f32.mrb[0].mxu0
  %v1695 = vadd.f32 0.0, %v1694
  %v1696 = vpop.f32.mrb[0].mxu0
  %v1697 = vpop.f32.mrb[0].mxu0
  %v1698 = vadd.f32 0.0, %v1697
  %v1699 = vpop.f32.mrb[0].mxu0
  %1700 = vmatprep.mubr.bf16.mxu0 0
  %1701 = vmatmul.mubr.bf16.gmra.mrb[0].mxu0 %v1617
  %v1702 = vpop.f32.mrb[0].mxu0
  %v1703 = vadd.f32 0.0, %v1702
  %v1704 = vpop.f32.mrb[0].mxu0
  %v1705 = vpop.f32.mrb[0].mxu0
  %v1706 = vadd.f32 0.0, %v1705
  %v1707 = vpop.f32.mrb[0].mxu0
  %1708 = vmatprep.mubr.bf16.mxu0 0
  %1709 = vmatmul.mubr.bf16.gmra.mrb[0].mxu0 %v1620
  %v1710 = vpop.f32.mrb[0].mxu0
  %v1711 = vadd.f32 0.0, %v1710
  %v1712 = vpop.f32.mrb[0].mxu0
  %v1713 = vpop.f32.mrb[0].mxu0
  %v1714 = vadd.f32 0.0, %v1713
  %v1715 = vpop.f32.mrb[0].mxu0
  %1716 = vmatprep.mubr.bf16.mxu0 0
  %1717 = vmatmul.mubr.bf16.gmra.mrb[0].mxu0 %v1623
  %v1718 = vpop.f32.mrb[0].mxu0
  %v1719 = vadd.f32 0.0, %v1718
  %v1720 = vpop.f32.mrb[0].mxu0
  %v1721 = vpop.f32.mrb[0].mxu0
  %v1722 = vadd.f32 0.0, %v1721
  %v1723 = vpop.f32.mrb[0].mxu0
  %1724 = vmatprep.mubr.bf16.mxu0 0
  %1725 = vmatmul.mubr.bf16.gmra.mrb[0].mxu0 %v1626
  %v1726 = vpop.f32.mrb[0].mxu0
  %v1727 = vadd.f32 0.0, %v1726
  %v1728 = vpop.f32.mrb[0].mxu0
  %v1729 = vpop.f32.mrb[0].mxu0
  %v1730 = vadd.f32 0.0, %v1729
  %v1731 = vpop.f32.mrb[0].mxu0
  %1732 = vdwg.mxu0
  %v1733 = vld [vmem:[#allocation3] sm:$0xff]
  %v1734 = vld [vmem:[#allocation3 + $0x8] sm:$0xff]
  %v1735 = vld [vmem:[#allocation3 + $0x10] sm:$0xff]
  %v1736 = vld [vmem:[#allocation3 + $0x18] sm:$0xff]
  %v1737 = vld [vmem:[#allocation3 + $0x20] sm:$0xff]
  %v1738 = vld [vmem:[#allocation3 + $0x28] sm:$0xff]
  %v1739 = vld [vmem:[#allocation3 + $0x30] sm:$0xff]
  %v1740 = vld [vmem:[#allocation3 + $0x38] sm:$0xff]
  %v1741 = vld [vmem:[#allocation3 + $0x40] sm:$0xff]
  %v1742 = vld [vmem:[#allocation3 + $0x48] sm:$0xff]
  %v1743 = vld [vmem:[#allocation3 + $0x50] sm:$0xff]
  %v1744 = vld [vmem:[#allocation3 + $0x58] sm:$0xff]
  %v1745 = vld [vmem:[#allocation3 + $0x60] sm:$0xff]
  %v1746 = vld [vmem:[#allocation3 + $0x68] sm:$0xff]
  %v1747 = vld [vmem:[#allocation3 + $0x70] sm:$0xff]
  %v1748 = vld [vmem:[#allocation3 + $0x78] sm:$0xff]
  %v1749 = vld [vmem:[#allocation3 + $0x80] sm:$0xff]
  %v1750 = vld [vmem:[#allocation3 + $0x88] sm:$0xff]
  %v1751 = vadd.f32 %v1733, %v1663
  %v1752 = vadd.f32 %v1734, %v1666
  %v1753 = vadd.f32 %v1735, %v1671
  %v1754 = vadd.f32 %v1736, %v1674
  %v1755 = vadd.f32 %v1737, %v1679
  %v1756 = vadd.f32 %v1738, %v1682
  %v1757 = vadd.f32 %v1739, %v1687
  %v1758 = vadd.f32 %v1740, %v1690
  %v1759 = vadd.f32 %v1741, %v1695
  %v1760 = vadd.f32 %v1742, %v1698
  %v1761 = vadd.f32 %v1743, %v1703
  %v1762 = vadd.f32 %v1744, %v1706
  %v1763 = vadd.f32 %v1745, %v1711
  %v1764 = vadd.f32 %v1746, %v1714
  %v1765 = vadd.f32 %v1747, %v1719
  %v1766 = vadd.f32 %v1748, %v1722
  %v1767 = vadd.f32 %v1749, %v1727
  %v1768 = vadd.f32 %v1750, %v1730
  %1769 = vst.msk [vmem:[#allocation3] sm:$0xff] %vm311, %v1751
  %1770 = vst.msk [vmem:[#allocation3 + $0x8] sm:$0xff] %vm311, %v1752
  %1771 = vst.msk [vmem:[#allocation3 + $0x10] sm:$0xff] %vm311, %v1753
  %1772 = vst.msk [vmem:[#allocation3 + $0x18] sm:$0xff] %vm311, %v1754
  %1773 = vst.msk [vmem:[#allocation3 + $0x20] sm:$0xff] %vm311, %v1755
  %1774 = vst.msk [vmem:[#allocation3 + $0x28] sm:$0xff] %vm311, %v1756
  %1775 = vst.msk [vmem:[#allocation3 + $0x30] sm:$0xff] %vm311, %v1757
  %1776 = vst.msk [vmem:[#allocation3 + $0x38] sm:$0xff] %vm311, %v1758
  %1777 = vst.msk [vmem:[#allocation3 + $0x40] sm:$0xff] %vm311, %v1759
  %1778 = vst.msk [vmem:[#allocation3 + $0x48] sm:$0xff] %vm311, %v1760
  %1779 = vst.msk [vmem:[#allocation3 + $0x50] sm:$0xff] %vm311, %v1761
  %1780 = vst.msk [vmem:[#allocation3 + $0x58] sm:$0xff] %vm311, %v1762
  %1781 = vst.msk [vmem:[#allocation3 + $0x60] sm:$0xff] %vm311, %v1763
  %1782 = vst.msk [vmem:[#allocation3 + $0x68] sm:$0xff] %vm311, %v1764
  %1783 = vst.msk [vmem:[#allocation3 + $0x70] sm:$0xff] %vm311, %v1765
  %1784 = vst.msk [vmem:[#allocation3 + $0x78] sm:$0xff] %vm311, %v1766
  %1785 = vst.msk [vmem:[#allocation3 + $0x80] sm:$0xff] %vm311, %v1767
  %1786 = vst.msk [vmem:[#allocation3 + $0x88] sm:$0xff] %vm311, %v1768
  %v1787 = vld [vmem:[#allocation2 + $0x8] sm:$0xfe]
  %v1788 = vld [vmem:[#allocation2 + $0x10] sm:$0xff]
  %v1789 = vld [vmem:[#allocation2 + $0x18] sm:$0xff]
  %v1790 = vld [vmem:[#allocation2 + $0x20] sm:$0xff]
  %v1791 = vld [vmem:[#allocation2 + $0x28] sm:$0xff]
  %v1792 = vld [vmem:[#allocation2 + $0x30] sm:$0xff]
  %v1793 = vld [vmem:[#allocation2 + $0x38] sm:$0xff]
  %v1794 = vld [vmem:[#allocation2 + $0x40] sm:$0xff]
  %v1795 = vld [vmem:[#allocation2 + $0x48] sm:$0xff]
  %v1796 = vld [vmem:[#allocation2 + $0x50] sm:$0x1]
  %v1797 = vld [vmem:[%s2 + $0xc0] sm:$0xf]
  %v1798 = vld [vmem:[%s2 + $0xc4] sm:$0xf]
  %v1799 = vld [vmem:[%s2 + $0xc8] sm:$0xf]
  %v1800 = vld [vmem:[%s2 + $0xcc] sm:$0xf]
  %v1801 = vld [vmem:[%s2 + $0xd0] sm:$0xf]
  %v1802 = vld [vmem:[%s2 + $0xd4] sm:$0xf]
  %v1803 = vld [vmem:[%s2 + $0xd8] sm:$0xf]
  %v1804 = vld [vmem:[%s2 + $0xdc] sm:$0xf]
  %v1815 = vrot.slane %v1787, 1
  %v1816 = vrot.slane %v1788, 1
  %v1817 = vsel %vm663, %v1815, %v1816
  %v1818 = vrot.slane %v1789, 1
  %v1819 = vsel %vm663, %v1816, %v1818
  %v1820 = vrot.slane %v1790, 1
  %v1821 = vsel %vm663, %v1818, %v1820
  %v1822 = vrot.slane %v1791, 1
  %v1823 = vsel %vm663, %v1820, %v1822
  %v1824 = vrot.slane %v1792, 1
  %v1825 = vsel %vm663, %v1822, %v1824
  %v1826 = vrot.slane %v1793, 1
  %v1827 = vsel %vm663, %v1824, %v1826
  %v1828 = vrot.slane %v1794, 1
  %v1829 = vsel %vm663, %v1826, %v1828
  %v1830 = vrot.slane %v1795, 1
  %v1831 = vsel %vm663, %v1828, %v1830
  %v1832 = vrot.slane %v1796, 1
  %v1833 = vsel %vm663, %v1830, %v1832
  %v1842 = vunpack.c.l.b16 %v1797
  %v1843 = vunpack.c.l.b16 %v1798
  %v1844 = vunpack.c.l.b16 %v1799
  %v1845 = vunpack.c.l.b16 %v1800
  %v1846 = vunpack.c.l.b16 %v1801
  %v1847 = vunpack.c.l.b16 %v1802
  %v1848 = vunpack.c.l.b16 %v1803
  %v1849 = vunpack.c.l.b16 %v1804
  %v1850 = vpack.c.b16 %v1843, %v1842
  %v1851 = vpack.c.b16 %v1845, %v1844
  %v1852 = vpack.c.b16 %v1847, %v1846
  %v1853 = vpack.c.b16 %v1849, %v1848
  %v1859 = vsel %vm112, %v1817, 0
  %v1862 = vsel %vm112, %v1819, 0
  %v1865 = vsel %vm112, %v1821, 0
  %v1868 = vsel %vm112, %v1823, 0
  %v1871 = vsel %vm112, %v1825, 0
  %v1874 = vsel %vm112, %v1827, 0
  %v1877 = vsel %vm112, %v1829, 0
  %v1880 = vsel %vm112, %v1831, 0
  %v1883 = vsel %vm112, %v1833, 0
  %1885 = vmatprep.subr.bf16.mxu0 0
  %1886 = vmatpush1.bf16.msra.mxu0 %v1850
  %1887 = vmatprep.subr.bf16.mxu0 0
  %1888 = vmatpush1.bf16.msra.mxu0 %v1851
  %1889 = vmatprep.subr.bf16.mxu0 0
  %1890 = vmatpush1.bf16.msra.mxu0 %v1852
  %1891 = vmatprep.subr.bf16.mxu0 0
  %1892 = vmatpush1.bf16.msra.mxu0 %v1853
  %1893 = vmatprep.subr.bf16.mxu0 0
  %1894 = vmatpush1.bf16.msra.mxu0 0
  %1895 = vmatprep.subr.bf16.mxu0 0
  %1896 = vmatpush1.bf16.msra.mxu0 0
  %1897 = vmatprep.subr.bf16.mxu0 0
  %1898 = vmatpush1.bf16.msra.mxu0 0
  %1899 = vmatprep.subr.bf16.mxu0 0
  %1900 = vmatpush1.bf16.msra.mxu0 0
  %1901 = vmatprep.subr.bf16.mxu0 0
  %1902 = vmatpush1.bf16.msra.mxu0 0
  %1903 = vmatprep.subr.bf16.mxu0 0
  %1904 = vmatpush1.bf16.msra.mxu0 0
  %1905 = vmatprep.subr.bf16.mxu0 0
  %1906 = vmatpush1.bf16.msra.mxu0 0
  %1907 = vmatprep.subr.bf16.mxu0 0
  %1908 = vmatpush1.bf16.msra.mxu0 0
  %1909 = vmatprep.subr.bf16.mxu0 0
  %1910 = vmatpush1.bf16.msra.mxu0 0
  %1911 = vmatprep.subr.bf16.mxu0 0
  %1912 = vmatpush1.bf16.msra.mxu0 0
  %1913 = vmatprep.subr.bf16.mxu0 0
  %1914 = vmatpush1.bf16.msra.mxu0 0
  %1915 = vmatprep.subr.bf16.mxu0 0
  %1916 = vmatpush1.bf16.msra.mxu0 0
  %1917 = vmatprep.mubr.bf16.mxu0 0
  %1918 = vmatmul.mubr.bf16.gmra.mrb[0].mxu0 %v1859
  %v1919 = vpop.f32.mrb[0].mxu0
  %v1920 = vadd.f32 0.0, %v1919
  %v1921 = vpop.f32.mrb[0].mxu0
  %v1922 = vpop.f32.mrb[0].mxu0
  %v1923 = vadd.f32 0.0, %v1922
  %v1924 = vpop.f32.mrb[0].mxu0
  %1925 = vmatprep.mubr.bf16.mxu0 0
  %1926 = vmatmul.mubr.bf16.gmra.mrb[0].mxu0 %v1862
  %v1927 = vpop.f32.mrb[0].mxu0
  %v1928 = vadd.f32 0.0, %v1927
  %v1929 = vpop.f32.mrb[0].mxu0
  %v1930 = vpop.f32.mrb[0].mxu0
  %v1931 = vadd.f32 0.0, %v1930
  %v1932 = vpop.f32.mrb[0].mxu0
  %1933 = vmatprep.mubr.bf16.mxu0 0
  %1934 = vmatmul.mubr.bf16.gmra.mrb[0].mxu0 %v1865
  %v1935 = vpop.f32.mrb[0].mxu0
  %v1936 = vadd.f32 0.0, %v1935
  %v1937 = vpop.f32.mrb[0].mxu0
  %v1938 = vpop.f32.mrb[0].mxu0
  %v1939 = vadd.f32 0.0, %v1938
  %v1940 = vpop.f32.mrb[0].mxu0
  %1941 = vmatprep.mubr.bf16.mxu0 0
  %1942 = vmatmul.mubr.bf16.gmra.mrb[0].mxu0 %v1868
  %v1943 = vpop.f32.mrb[0].mxu0
  %v1944 = vadd.f32 0.0, %v1943
  %v1945 = vpop.f32.mrb[0].mxu0
  %v1946 = vpop.f32.mrb[0].mxu0
  %v1947 = vadd.f32 0.0, %v1946
  %v1948 = vpop.f32.mrb[0].mxu0
  %1949 = vmatprep.mubr.bf16.mxu0 0
  %1950 = vmatmul.mubr.bf16.gmra.mrb[0].mxu0 %v1871
  %v1951 = vpop.f32.mrb[0].mxu0
  %v1952 = vadd.f32 0.0, %v1951
  %v1953 = vpop.f32.mrb[0].mxu0
  %v1954 = vpop.f32.mrb[0].mxu0
  %v1955 = vadd.f32 0.0, %v1954
  %v1956 = vpop.f32.mrb[0].mxu0
  %1957 = vmatprep.mubr.bf16.mxu0 0
  %1958 = vmatmul.mubr.bf16.gmra.mrb[0].mxu0 %v1874
  %v1959 = vpop.f32.mrb[0].mxu0
  %v1960 = vadd.f32 0.0, %v1959
  %v1961 = vpop.f32.mrb[0].mxu0
  %v1962 = vpop.f32.mrb[0].mxu0
  %v1963 = vadd.f32 0.0, %v1962
  %v1964 = vpop.f32.mrb[0].mxu0
  %1965 = vmatprep.mubr.bf16.mxu0 0
  %1966 = vmatmul.mubr.bf16.gmra.mrb[0].mxu0 %v1877
  %v1967 = vpop.f32.mrb[0].mxu0
  %v1968 = vadd.f32 0.0, %v1967
  %v1969 = vpop.f32.mrb[0].mxu0
  %v1970 = vpop.f32.mrb[0].mxu0
  %v1971 = vadd.f32 0.0, %v1970
  %v1972 = vpop.f32.mrb[0].mxu0
  %1973 = vmatprep.mubr.bf16.mxu0 0
  %1974 = vmatmul.mubr.bf16.gmra.mrb[0].mxu0 %v1880
  %v1975 = vpop.f32.mrb[0].mxu0
  %v1976 = vadd.f32 0.0, %v1975
  %v1977 = vpop.f32.mrb[0].mxu0
  %v1978 = vpop.f32.mrb[0].mxu0
  %v1979 = vadd.f32 0.0, %v1978
  %v1980 = vpop.f32.mrb[0].mxu0
  %1981 = vmatprep.mubr.bf16.mxu0 0
  %1982 = vmatmul.mubr.bf16.gmra.mrb[0].mxu0 %v1883
  %v1983 = vpop.f32.mrb[0].mxu0
  %v1984 = vadd.f32 0.0, %v1983
  %v1985 = vpop.f32.mrb[0].mxu0
  %v1986 = vpop.f32.mrb[0].mxu0
  %v1987 = vadd.f32 0.0, %v1986
  %v1988 = vpop.f32.mrb[0].mxu0
  %1989 = vdwg.mxu0
  %v1990 = vld [vmem:[#allocation3] sm:$0xff]
  %v1991 = vld [vmem:[#allocation3 + $0x8] sm:$0xff]
  %v1992 = vld [vmem:[#allocation3 + $0x10] sm:$0xff]
  %v1993 = vld [vmem:[#allocation3 + $0x18] sm:$0xff]
  %v1994 = vld [vmem:[#allocation3 + $0x20] sm:$0xff]
  %v1995 = vld [vmem:[#allocation3 + $0x28] sm:$0xff]
  %v1996 = vld [vmem:[#allocation3 + $0x30] sm:$0xff]
  %v1997 = vld [vmem:[#allocation3 + $0x38] sm:$0xff]
  %v1998 = vld [vmem:[#allocation3 + $0x40] sm:$0xff]
  %v1999 = vld [vmem:[#allocation3 + $0x48] sm:$0xff]
  %v2000 = vld [vmem:[#allocation3 + $0x50] sm:$0xff]
  %v2001 = vld [vmem:[#allocation3 + $0x58] sm:$0xff]
  %v2002 = vld [vmem:[#allocation3 + $0x60] sm:$0xff]
  %v2003 = vld [vmem:[#allocation3 + $0x68] sm:$0xff]
  %v2004 = vld [vmem:[#allocation3 + $0x70] sm:$0xff]
  %v2005 = vld [vmem:[#allocation3 + $0x78] sm:$0xff]
  %v2006 = vld [vmem:[#allocation3 + $0x80] sm:$0xff]
  %v2007 = vld [vmem:[#allocation3 + $0x88] sm:$0xff]
  %v2008 = vadd.f32 %v1990, %v1920
  %v2009 = vadd.f32 %v1991, %v1923
  %v2010 = vadd.f32 %v1992, %v1928
  %v2011 = vadd.f32 %v1993, %v1931
  %v2012 = vadd.f32 %v1994, %v1936
  %v2013 = vadd.f32 %v1995, %v1939
  %v2014 = vadd.f32 %v1996, %v1944
  %v2015 = vadd.f32 %v1997, %v1947
  %v2016 = vadd.f32 %v1998, %v1952
  %v2017 = vadd.f32 %v1999, %v1955
  %v2018 = vadd.f32 %v2000, %v1960
  %v2019 = vadd.f32 %v2001, %v1963
  %v2020 = vadd.f32 %v2002, %v1968
  %v2021 = vadd.f32 %v2003, %v1971
  %v2022 = vadd.f32 %v2004, %v1976
  %v2023 = vadd.f32 %v2005, %v1979
  %v2024 = vadd.f32 %v2006, %v1984
  %v2025 = vadd.f32 %v2007, %v1987
  %2026 = vst.msk [vmem:[#allocation3] sm:$0xff] %vm311, %v2008
  %2027 = vst.msk [vmem:[#allocation3 + $0x8] sm:$0xff] %vm311, %v2009
  %2028 = vst.msk [vmem:[#allocation3 + $0x10] sm:$0xff] %vm311, %v2010
  %2029 = vst.msk [vmem:[#allocation3 + $0x18] sm:$0xff] %vm311, %v2011
  %2030 = vst.msk [vmem:[#allocation3 + $0x20] sm:$0xff] %vm311, %v2012
  %2031 = vst.msk [vmem:[#allocation3 + $0x28] sm:$0xff] %vm311, %v2013
  %2032 = vst.msk [vmem:[#allocation3 + $0x30] sm:$0xff] %vm311, %v2014
  %2033 = vst.msk [vmem:[#allocation3 + $0x38] sm:$0xff] %vm311, %v2015
  %2034 = vst.msk [vmem:[#allocation3 + $0x40] sm:$0xff] %vm311, %v2016
  %2035 = vst.msk [vmem:[#allocation3 + $0x48] sm:$0xff] %vm311, %v2017
  %2036 = vst.msk [vmem:[#allocation3 + $0x50] sm:$0xff] %vm311, %v2018
  %2037 = vst.msk [vmem:[#allocation3 + $0x58] sm:$0xff] %vm311, %v2019
  %2038 = vst.msk [vmem:[#allocation3 + $0x60] sm:$0xff] %vm311, %v2020
  %2039 = vst.msk [vmem:[#allocation3 + $0x68] sm:$0xff] %vm311, %v2021
  %2040 = vst.msk [vmem:[#allocation3 + $0x70] sm:$0xff] %vm311, %v2022
  %2041 = vst.msk [vmem:[#allocation3 + $0x78] sm:$0xff] %vm311, %v2023
  %2042 = vst.msk [vmem:[#allocation3 + $0x80] sm:$0xff] %vm311, %v2024
  %2043 = vst.msk [vmem:[#allocation3 + $0x88] sm:$0xff] %vm311, %v2025
  %v2044 = vld [vmem:[#allocation2 + $0x8] sm:$0xfe]
  %v2045 = vld [vmem:[#allocation2 + $0x10] sm:$0xff]
  %v2046 = vld [vmem:[#allocation2 + $0x18] sm:$0xff]
  %v2047 = vld [vmem:[#allocation2 + $0x20] sm:$0xff]
  %v2048 = vld [vmem:[#allocation2 + $0x28] sm:$0xff]
  %v2049 = vld [vmem:[#allocation2 + $0x30] sm:$0xff]
  %v2050 = vld [vmem:[#allocation2 + $0x38] sm:$0xff]
  %v2051 = vld [vmem:[#allocation2 + $0x40] sm:$0xff]
  %v2052 = vld [vmem:[#allocation2 + $0x48] sm:$0xff]
  %v2053 = vld [vmem:[#allocation2 + $0x50] sm:$0x3]
  %v2054 = vld [vmem:[%s2 + $0xe0] sm:$0xf]
  %v2055 = vld [vmem:[%s2 + $0xe4] sm:$0xf]
  %v2056 = vld [vmem:[%s2 + $0xe8] sm:$0xf]
  %v2057 = vld [vmem:[%s2 + $0xec] sm:$0xf]
  %v2058 = vld [vmem:[%s2 + $0xf0] sm:$0xf]
  %v2059 = vld [vmem:[%s2 + $0xf4] sm:$0xf]
  %v2060 = vld [vmem:[%s2 + $0xf8] sm:$0xf]
  %v2061 = vld [vmem:[%s2 + $0xfc] sm:$0xf]
  %vm2062 = vsmask.f32 6400
  %v2064 = vshrl.u32 %v2044, 16
  %v2066 = vrot.slane %v2064, 1
  %v2067 = vshll.u32 %v2044, 16
  %v2069 = vrot.slane %v2067, 2
  %v2070 = vor.u32 %v2066, %v2069
  %v2072 = vshrl.u32 %v2045, 16
  %v2074 = vrot.slane %v2072, 1
  %v2075 = vshll.u32 %v2045, 16
  %v2077 = vrot.slane %v2075, 2
  %v2078 = vor.u32 %v2074, %v2077
  %v2079 = vsel %vm2062, %v2070, %v2078
  %v2081 = vshrl.u32 %v2046, 16
  %v2083 = vrot.slane %v2081, 1
  %v2084 = vshll.u32 %v2046, 16
  %v2086 = vrot.slane %v2084, 2
  %v2087 = vor.u32 %v2083, %v2086
  %v2088 = vsel %vm2062, %v2078, %v2087
  %v2090 = vshrl.u32 %v2047, 16
  %v2092 = vrot.slane %v2090, 1
  %v2093 = vshll.u32 %v2047, 16
  %v2095 = vrot.slane %v2093, 2
  %v2096 = vor.u32 %v2092, %v2095
  %v2097 = vsel %vm2062, %v2087, %v2096
  %v2099 = vshrl.u32 %v2048, 16
  %v2101 = vrot.slane %v2099, 1
  %v2102 = vshll.u32 %v2048, 16
  %v2104 = vrot.slane %v2102, 2
  %v2105 = vor.u32 %v2101, %v2104
  %v2106 = vsel %vm2062, %v2096, %v2105
  %v2108 = vshrl.u32 %v2049, 16
  %v2110 = vrot.slane %v2108, 1
  %v2111 = vshll.u32 %v2049, 16
  %v2113 = vrot.slane %v2111, 2
  %v2114 = vor.u32 %v2110, %v2113
  %v2115 = vsel %vm2062, %v2105, %v2114
  %v2117 = vshrl.u32 %v2050, 16
  %v2119 = vrot.slane %v2117, 1
  %v2120 = vshll.u32 %v2050, 16
  %v2122 = vrot.slane %v2120, 2
  %v2123 = vor.u32 %v2119, %v2122
  %v2124 = vsel %vm2062, %v2114, %v2123
  %v2126 = vshrl.u32 %v2051, 16
  %v2128 = vrot.slane %v2126, 1
  %v2129 = vshll.u32 %v2051, 16
  %v2131 = vrot.slane %v2129, 2
  %v2132 = vor.u32 %v2128, %v2131
  %v2133 = vsel %vm2062, %v2123, %v2132
  %v2135 = vshrl.u32 %v2052, 16
  %v2137 = vrot.slane %v2135, 1
  %v2138 = vshll.u32 %v2052, 16
  %v2140 = vrot.slane %v2138, 2
  %v2141 = vor.u32 %v2137, %v2140
  %v2142 = vsel %vm2062, %v2132, %v2141
  %v2144 = vshrl.u32 %v2053, 16
  %v2146 = vrot.slane %v2144, 1
  %v2147 = vshll.u32 %v2053, 16
  %v2149 = vrot.slane %v2147, 2
  %v2150 = vor.u32 %v2146, %v2149
  %v2151 = vsel %vm2062, %v2141, %v2150
  %v2160 = vunpack.c.l.b16 %v2054
  %v2161 = vunpack.c.l.b16 %v2055
  %v2162 = vunpack.c.l.b16 %v2056
  %v2163 = vunpack.c.l.b16 %v2057
  %v2164 = vunpack.c.l.b16 %v2058
  %v2165 = vunpack.c.l.b16 %v2059
  %v2166 = vunpack.c.l.b16 %v2060
  %v2167 = vunpack.c.l.b16 %v2061
  %v2168 = vpack.c.b16 %v2161, %v2160
  %v2169 = vpack.c.b16 %v2163, %v2162
  %v2170 = vpack.c.b16 %v2165, %v2164
  %v2171 = vpack.c.b16 %v2167, %v2166
  %v2177 = vsel %vm112, %v2079, 0
  %v2180 = vsel %vm112, %v2088, 0
  %v2183 = vsel %vm112, %v2097, 0
  %v2186 = vsel %vm112, %v2106, 0
  %v2189 = vsel %vm112, %v2115, 0
  %v2192 = vsel %vm112, %v2124, 0
  %v2195 = vsel %vm112, %v2133, 0
  %v2198 = vsel %vm112, %v2142, 0
  %v2201 = vsel %vm112, %v2151, 0
  %2203 = vmatprep.subr.bf16.mxu0 0
  %2204 = vmatpush1.bf16.msra.mxu0 %v2168
  %2205 = vmatprep.subr.bf16.mxu0 0
  %2206 = vmatpush1.bf16.msra.mxu0 %v2169
  %2207 = vmatprep.subr.bf16.mxu0 0
  %2208 = vmatpush1.bf16.msra.mxu0 %v2170
  %2209 = vmatprep.subr.bf16.mxu0 0
  %2210 = vmatpush1.bf16.msra.mxu0 %v2171
  %2211 = vmatprep.subr.bf16.mxu0 0
  %2212 = vmatpush1.bf16.msra.mxu0 0
  %2213 = vmatprep.subr.bf16.mxu0 0
  %2214 = vmatpush1.bf16.msra.mxu0 0
  %2215 = vmatprep.subr.bf16.mxu0 0
  %2216 = vmatpush1.bf16.msra.mxu0 0
  %2217 = vmatprep.subr.bf16.mxu0 0
  %2218 = vmatpush1.bf16.msra.mxu0 0
  %2219 = vmatprep.subr.bf16.mxu0 0
  %2220 = vmatpush1.bf16.msra.mxu0 0
  %2221 = vmatprep.subr.bf16.mxu0 0
  %2222 = vmatpush1.bf16.msra.mxu0 0
  %2223 = vmatprep.subr.bf16.mxu0 0
  %2224 = vmatpush1.bf16.msra.mxu0 0
  %2225 = vmatprep.subr.bf16.mxu0 0
  %2226 = vmatpush1.bf16.msra.mxu0 0
  %2227 = vmatprep.subr.bf16.mxu0 0
  %2228 = vmatpush1.bf16.msra.mxu0 0
  %2229 = vmatprep.subr.bf16.mxu0 0
  %2230 = vmatpush1.bf16.msra.mxu0 0
  %2231 = vmatprep.subr.bf16.mxu0 0
  %2232 = vmatpush1.bf16.msra.mxu0 0
  %2233 = vmatprep.subr.bf16.mxu0 0
  %2234 = vmatpush1.bf16.msra.mxu0 0
  %2235 = vmatprep.mubr.bf16.mxu0 0
  %2236 = vmatmul.mubr.bf16.gmra.mrb[0].mxu0 %v2177
  %v2237 = vpop.f32.mrb[0].mxu0
  %v2238 = vadd.f32 0.0, %v2237
  %v2239 = vpop.f32.mrb[0].mxu0
  %v2240 = vpop.f32.mrb[0].mxu0
  %v2241 = vadd.f32 0.0, %v2240
  %v2242 = vpop.f32.mrb[0].mxu0
  %2243 = vmatprep.mubr.bf16.mxu0 0
  %2244 = vmatmul.mubr.bf16.gmra.mrb[0].mxu0 %v2180
  %v2245 = vpop.f32.mrb[0].mxu0
  %v2246 = vadd.f32 0.0, %v2245
  %v2247 = vpop.f32.mrb[0].mxu0
  %v2248 = vpop.f32.mrb[0].mxu0
  %v2249 = vadd.f32 0.0, %v2248
  %v2250 = vpop.f32.mrb[0].mxu0
  %2251 = vmatprep.mubr.bf16.mxu0 0
  %2252 = vmatmul.mubr.bf16.gmra.mrb[0].mxu0 %v2183
  %v2253 = vpop.f32.mrb[0].mxu0
  %v2254 = vadd.f32 0.0, %v2253
  %v2255 = vpop.f32.mrb[0].mxu0
  %v2256 = vpop.f32.mrb[0].mxu0
  %v2257 = vadd.f32 0.0, %v2256
  %v2258 = vpop.f32.mrb[0].mxu0
  %2259 = vmatprep.mubr.bf16.mxu0 0
  %2260 = vmatmul.mubr.bf16.gmra.mrb[0].mxu0 %v2186
  %v2261 = vpop.f32.mrb[0].mxu0
  %v2262 = vadd.f32 0.0, %v2261
  %v2263 = vpop.f32.mrb[0].mxu0
  %v2264 = vpop.f32.mrb[0].mxu0
  %v2265 = vadd.f32 0.0, %v2264
  %v2266 = vpop.f32.mrb[0].mxu0
  %2267 = vmatprep.mubr.bf16.mxu0 0
  %2268 = vmatmul.mubr.bf16.gmra.mrb[0].mxu0 %v2189
  %v2269 = vpop.f32.mrb[0].mxu0
  %v2270 = vadd.f32 0.0, %v2269
  %v2271 = vpop.f32.mrb[0].mxu0
  %v2272 = vpop.f32.mrb[0].mxu0
  %v2273 = vadd.f32 0.0, %v2272
  %v2274 = vpop.f32.mrb[0].mxu0
  %2275 = vmatprep.mubr.bf16.mxu0 0
  %2276 = vmatmul.mubr.bf16.gmra.mrb[0].mxu0 %v2192
  %v2277 = vpop.f32.mrb[0].mxu0
  %v2278 = vadd.f32 0.0, %v2277
  %v2279 = vpop.f32.mrb[0].mxu0
  %v2280 = vpop.f32.mrb[0].mxu0
  %v2281 = vadd.f32 0.0, %v2280
  %v2282 = vpop.f32.mrb[0].mxu0
  %2283 = vmatprep.mubr.bf16.mxu0 0
  %2284 = vmatmul.mubr.bf16.gmra.mrb[0].mxu0 %v2195
  %v2285 = vpop.f32.mrb[0].mxu0
  %v2286 = vadd.f32 0.0, %v2285
  %v2287 = vpop.f32.mrb[0].mxu0
  %v2288 = vpop.f32.mrb[0].mxu0
  %v2289 = vadd.f32 0.0, %v2288
  %v2290 = vpop.f32.mrb[0].mxu0
  %2291 = vmatprep.mubr.bf16.mxu0 0
  %2292 = vmatmul.mubr.bf16.gmra.mrb[0].mxu0 %v2198
  %v2293 = vpop.f32.mrb[0].mxu0
  %v2294 = vadd.f32 0.0, %v2293
  %v2295 = vpop.f32.mrb[0].mxu0
  %v2296 = vpop.f32.mrb[0].mxu0
  %v2297 = vadd.f32 0.0, %v2296
  %v2298 = vpop.f32.mrb[0].mxu0
  %2299 = vmatprep.mubr.bf16.mxu0 0
  %2300 = vmatmul.mubr.bf16.gmra.mrb[0].mxu0 %v2201
  %v2301 = vpop.f32.mrb[0].mxu0
  %v2302 = vadd.f32 0.0, %v2301
  %v2303 = vpop.f32.mrb[0].mxu0
  %v2304 = vpop.f32.mrb[0].mxu0
  %v2305 = vadd.f32 0.0, %v2304
  %v2306 = vpop.f32.mrb[0].mxu0
  %2307 = vdwg.mxu0
  %v2308 = vld [vmem:[#allocation3] sm:$0xff]
  %v2309 = vld [vmem:[#allocation3 + $0x8] sm:$0xff]
  %v2310 = vld [vmem:[#allocation3 + $0x10] sm:$0xff]
  %v2311 = vld [vmem:[#allocation3 + $0x18] sm:$0xff]
  %v2312 = vld [vmem:[#allocation3 + $0x20] sm:$0xff]
  %v2313 = vld [vmem:[#allocation3 + $0x28] sm:$0xff]
  %v2314 = vld [vmem:[#allocation3 + $0x30] sm:$0xff]
  %v2315 = vld [vmem:[#allocation3 + $0x38] sm:$0xff]
  %v2316 = vld [vmem:[#allocation3 + $0x40] sm:$0xff]
  %v2317 = vld [vmem:[#allocation3 + $0x48] sm:$0xff]
  %v2318 = vld [vmem:[#allocation3 + $0x50] sm:$0xff]
  %v2319 = vld [vmem:[#allocation3 + $0x58] sm:$0xff]
  %v2320 = vld [vmem:[#allocation3 + $0x60] sm:$0xff]
  %v2321 = vld [vmem:[#allocation3 + $0x68] sm:$0xff]
  %v2322 = vld [vmem:[#allocation3 + $0x70] sm:$0xff]
  %v2323 = vld [vmem:[#allocation3 + $0x78] sm:$0xff]
  %v2324 = vld [vmem:[#allocation3 + $0x80] sm:$0xff]
  %v2325 = vld [vmem:[#allocation3 + $0x88] sm:$0xff]
  %v2326 = vadd.f32 %v2308, %v2238
  %v2327 = vadd.f32 %v2309, %v2241
  %v2328 = vadd.f32 %v2310, %v2246
  %v2329 = vadd.f32 %v2311, %v2249
  %v2330 = vadd.f32 %v2312, %v2254
  %v2331 = vadd.f32 %v2313, %v2257
  %v2332 = vadd.f32 %v2314, %v2262
  %v2333 = vadd.f32 %v2315, %v2265
  %v2334 = vadd.f32 %v2316, %v2270
  %v2335 = vadd.f32 %v2317, %v2273
  %v2336 = vadd.f32 %v2318, %v2278
  %v2337 = vadd.f32 %v2319, %v2281
  %v2338 = vadd.f32 %v2320, %v2286
  %v2339 = vadd.f32 %v2321, %v2289
  %v2340 = vadd.f32 %v2322, %v2294
  %v2341 = vadd.f32 %v2323, %v2297
  %v2342 = vadd.f32 %v2324, %v2302
  %v2343 = vadd.f32 %v2325, %v2305
  %2344 = vst.msk [vmem:[#allocation3] sm:$0xff] %vm311, %v2326
  %2345 = vst.msk [vmem:[#allocation3 + $0x8] sm:$0xff] %vm311, %v2327
  %2346 = vst.msk [vmem:[#allocation3 + $0x10] sm:$0xff] %vm311, %v2328
  %2347 = vst.msk [vmem:[#allocation3 + $0x18] sm:$0xff] %vm311, %v2329
  %2348 = vst.msk [vmem:[#allocation3 + $0x20] sm:$0xff] %vm311, %v2330
  %2349 = vst.msk [vmem:[#allocation3 + $0x28] sm:$0xff] %vm311, %v2331
  %2350 = vst.msk [vmem:[#allocation3 + $0x30] sm:$0xff] %vm311, %v2332
  %2351 = vst.msk [vmem:[#allocation3 + $0x38] sm:$0xff] %vm311, %v2333
  %2352 = vst.msk [vmem:[#allocation3 + $0x40] sm:$0xff] %vm311, %v2334
  %2353 = vst.msk [vmem:[#allocation3 + $0x48] sm:$0xff] %vm311, %v2335
  %2354 = vst.msk [vmem:[#allocation3 + $0x50] sm:$0xff] %vm311, %v2336
  %2355 = vst.msk [vmem:[#allocation3 + $0x58] sm:$0xff] %vm311, %v2337
  %2356 = vst.msk [vmem:[#allocation3 + $0x60] sm:$0xff] %vm311, %v2338
  %2357 = vst.msk [vmem:[#allocation3 + $0x68] sm:$0xff] %vm311, %v2339
  %2358 = vst.msk [vmem:[#allocation3 + $0x70] sm:$0xff] %vm311, %v2340
  %2359 = vst.msk [vmem:[#allocation3 + $0x78] sm:$0xff] %vm311, %v2341
  %2360 = vst.msk [vmem:[#allocation3 + $0x80] sm:$0xff] %vm311, %v2342
  %2361 = vst.msk [vmem:[#allocation3 + $0x88] sm:$0xff] %vm311, %v2343
  %v2362 = vld [vmem:[#allocation2 + $0x8] sm:$0xfc]
  %v2363 = vld [vmem:[#allocation2 + $0x10] sm:$0xff]
  %v2364 = vld [vmem:[#allocation2 + $0x18] sm:$0xff]
  %v2365 = vld [vmem:[#allocation2 + $0x20] sm:$0xff]
  %v2366 = vld [vmem:[#allocation2 + $0x28] sm:$0xff]
  %v2367 = vld [vmem:[#allocation2 + $0x30] sm:$0xff]
  %v2368 = vld [vmem:[#allocation2 + $0x38] sm:$0xff]
  %v2369 = vld [vmem:[#allocation2 + $0x40] sm:$0xff]
  %v2370 = vld [vmem:[#allocation2 + $0x48] sm:$0xff]
  %v2371 = vld [vmem:[#allocation2 + $0x50] sm:$0x3]
  %v2372 = vld [vmem:[%s2 + $0x100] sm:$0xf]
  %v2373 = vld [vmem:[%s2 + $0x104] sm:$0xf]
  %v2374 = vld [vmem:[%s2 + $0x108] sm:$0xf]
  %v2375 = vld [vmem:[%s2 + $0x10c] sm:$0xf]
  %v2376 = vld [vmem:[%s2 + $0x110] sm:$0xf]
  %v2377 = vld [vmem:[%s2 + $0x114] sm:$0xf]
  %v2378 = vld [vmem:[%s2 + $0x118] sm:$0xf]
  %v2379 = vld [vmem:[%s2 + $0x11c] sm:$0xf]
  %vm2390 = vcmask 1045504
  %v2391 = vrot.slane %v2362, 2
  %v2392 = vrot.slane %v2363, 2
  %v2393 = vsel %vm2390, %v2391, %v2392
  %v2394 = vrot.slane %v2364, 2
  %v2395 = vsel %vm2390, %v2392, %v2394
  %v2396 = vrot.slane %v2365, 2
  %v2397 = vsel %vm2390, %v2394, %v2396
  %v2398 = vrot.slane %v2366, 2
  %v2399 = vsel %vm2390, %v2396, %v2398
  %v2400 = vrot.slane %v2367, 2
  %v2401 = vsel %vm2390, %v2398, %v2400
  %v2402 = vrot.slane %v2368, 2
  %v2403 = vsel %vm2390, %v2400, %v2402
  %v2404 = vrot.slane %v2369, 2
  %v2405 = vsel %vm2390, %v2402, %v2404
  %v2406 = vrot.slane %v2370, 2
  %v2407 = vsel %vm2390, %v2404, %v2406
  %v2408 = vrot.slane %v2371, 2
  %v2409 = vsel %vm2390, %v2406, %v2408
  %v2418 = vunpack.c.l.b16 %v2372
  %v2419 = vunpack.c.l.b16 %v2373
  %v2420 = vunpack.c.l.b16 %v2374
  %v2421 = vunpack.c.l.b16 %v2375
  %v2422 = vunpack.c.l.b16 %v2376
  %v2423 = vunpack.c.l.b16 %v2377
  %v2424 = vunpack.c.l.b16 %v2378
  %v2425 = vunpack.c.l.b16 %v2379
  %v2426 = vpack.c.b16 %v2419, %v2418
  %v2427 = vpack.c.b16 %v2421, %v2420
  %v2428 = vpack.c.b16 %v2423, %v2422
  %v2429 = vpack.c.b16 %v2425, %v2424
  %v2435 = vsel %vm112, %v2393, 0
  %v2438 = vsel %vm112, %v2395, 0
  %v2441 = vsel %vm112, %v2397, 0
  %v2444 = vsel %vm112, %v2399, 0
  %v2447 = vsel %vm112, %v2401, 0
  %v2450 = vsel %vm112, %v2403, 0
  %v2453 = vsel %vm112, %v2405, 0
  %v2456 = vsel %vm112, %v2407, 0
  %v2459 = vsel %vm112, %v2409, 0
  %2461 = vmatprep.subr.bf16.mxu0 0
  %2462 = vmatpush1.bf16.msra.mxu0 %v2426
  %2463 = vmatprep.subr.bf16.mxu0 0
  %2464 = vmatpush1.bf16.msra.mxu0 %v2427
  %2465 = vmatprep.subr.bf16.mxu0 0
  %2466 = vmatpush1.bf16.msra.mxu0 %v2428
  %2467 = vmatprep.subr.bf16.mxu0 0
  %2468 = vmatpush1.bf16.msra.mxu0 %v2429
  %2469 = vmatprep.subr.bf16.mxu0 0
  %2470 = vmatpush1.bf16.msra.mxu0 0
  %2471 = vmatprep.subr.bf16.mxu0 0
  %2472 = vmatpush1.bf16.msra.mxu0 0
  %2473 = vmatprep.subr.bf16.mxu0 0
  %2474 = vmatpush1.bf16.msra.mxu0 0
  %2475 = vmatprep.subr.bf16.mxu0 0
  %2476 = vmatpush1.bf16.msra.mxu0 0
  %2477 = vmatprep.subr.bf16.mxu0 0
  %2478 = vmatpush1.bf16.msra.mxu0 0
  %2479 = vmatprep.subr.bf16.mxu0 0
  %2480 = vmatpush1.bf16.msra.mxu0 0
  %2481 = vmatprep.subr.bf16.mxu0 0
  %2482 = vmatpush1.bf16.msra.mxu0 0
  %2483 = vmatprep.subr.bf16.mxu0 0
  %2484 = vmatpush1.bf16.msra.mxu0 0
  %2485 = vmatprep.subr.bf16.mxu0 0
  %2486 = vmatpush1.bf16.msra.mxu0 0
  %2487 = vmatprep.subr.bf16.mxu0 0
  %2488 = vmatpush1.bf16.msra.mxu0 0
  %2489 = vmatprep.subr.bf16.mxu0 0
  %2490 = vmatpush1.bf16.msra.mxu0 0
  %2491 = vmatprep.subr.bf16.mxu0 0
  %2492 = vmatpush1.bf16.msra.mxu0 0
  %2493 = vmatprep.mubr.bf16.mxu0 0
  %2494 = vmatmul.mubr.bf16.gmra.mrb[0].mxu0 %v2435
  %v2495 = vpop.f32.mrb[0].mxu0
  %v2496 = vadd.f32 0.0, %v2495
  %v2497 = vpop.f32.mrb[0].mxu0
  %v2498 = vpop.f32.mrb[0].mxu0
  %v2499 = vadd.f32 0.0, %v2498
  %v2500 = vpop.f32.mrb[0].mxu0
  %2501 = vmatprep.mubr.bf16.mxu0 0
  %2502 = vmatmul.mubr.bf16.gmra.mrb[0].mxu0 %v2438
  %v2503 = vpop.f32.mrb[0].mxu0
  %v2504 = vadd.f32 0.0, %v2503
  %v2505 = vpop.f32.mrb[0].mxu0
  %v2506 = vpop.f32.mrb[0].mxu0
  %v2507 = vadd.f32 0.0, %v2506
  %v2508 = vpop.f32.mrb[0].mxu0
  %2509 = vmatprep.mubr.bf16.mxu0 0
  %2510 = vmatmul.mubr.bf16.gmra.mrb[0].mxu0 %v2441
  %v2511 = vpop.f32.mrb[0].mxu0
  %v2512 = vadd.f32 0.0, %v2511
  %v2513 = vpop.f32.mrb[0].mxu0
  %v2514 = vpop.f32.mrb[0].mxu0
  %v2515 = vadd.f32 0.0, %v2514
  %v2516 = vpop.f32.mrb[0].mxu0
  %2517 = vmatprep.mubr.bf16.mxu0 0
  %2518 = vmatmul.mubr.bf16.gmra.mrb[0].mxu0 %v2444
  %v2519 = vpop.f32.mrb[0].mxu0
  %v2520 = vadd.f32 0.0, %v2519
  %v2521 = vpop.f32.mrb[0].mxu0
  %v2522 = vpop.f32.mrb[0].mxu0
  %v2523 = vadd.f32 0.0, %v2522
  %v2524 = vpop.f32.mrb[0].mxu0
  %2525 = vmatprep.mubr.bf16.mxu0 0
  %2526 = vmatmul.mubr.bf16.gmra.mrb[0].mxu0 %v2447
  %v2527 = vpop.f32.mrb[0].mxu0
  %v2528 = vadd.f32 0.0, %v2527
  %v2529 = vpop.f32.mrb[0].mxu0
  %v2530 = vpop.f32.mrb[0].mxu0
  %v2531 = vadd.f32 0.0, %v2530
  %v2532 = vpop.f32.mrb[0].mxu0
  %2533 = vmatprep.mubr.bf16.mxu0 0
  %2534 = vmatmul.mubr.bf16.gmra.mrb[0].mxu0 %v2450
  %v2535 = vpop.f32.mrb[0].mxu0
  %v2536 = vadd.f32 0.0, %v2535
  %v2537 = vpop.f32.mrb[0].mxu0
  %v2538 = vpop.f32.mrb[0].mxu0
  %v2539 = vadd.f32 0.0, %v2538
  %v2540 = vpop.f32.mrb[0].mxu0
  %2541 = vmatprep.mubr.bf16.mxu0 0
  %2542 = vmatmul.mubr.bf16.gmra.mrb[0].mxu0 %v2453
  %v2543 = vpop.f32.mrb[0].mxu0
  %v2544 = vadd.f32 0.0, %v2543
  %v2545 = vpop.f32.mrb[0].mxu0
  %v2546 = vpop.f32.mrb[0].mxu0
  %v2547 = vadd.f32 0.0, %v2546
  %v2548 = vpop.f32.mrb[0].mxu0
  %2549 = vmatprep.mubr.bf16.mxu0 0
  %2550 = vmatmul.mubr.bf16.gmra.mrb[0].mxu0 %v2456
  %v2551 = vpop.f32.mrb[0].mxu0
  %v2552 = vadd.f32 0.0, %v2551
  %v2553 = vpop.f32.mrb[0].mxu0
  %v2554 = vpop.f32.mrb[0].mxu0
  %v2555 = vadd.f32 0.0, %v2554
  %v2556 = vpop.f32.mrb[0].mxu0
  %2557 = vmatprep.mubr.bf16.mxu0 0
  %2558 = vmatmul.mubr.bf16.gmra.mrb[0].mxu0 %v2459
  %v2559 = vpop.f32.mrb[0].mxu0
  %v2560 = vadd.f32 0.0, %v2559
  %v2561 = vpop.f32.mrb[0].mxu0
  %v2562 = vpop.f32.mrb[0].mxu0
  %v2563 = vadd.f32 0.0, %v2562
  %v2564 = vpop.f32.mrb[0].mxu0
  %2565 = vdwg.mxu0
  %v2566 = vld [vmem:[#allocation3] sm:$0xff]
  %v2567 = vld [vmem:[#allocation3 + $0x8] sm:$0xff]
  %v2568 = vld [vmem:[#allocation3 + $0x10] sm:$0xff]
  %v2569 = vld [vmem:[#allocation3 + $0x18] sm:$0xff]
  %v2570 = vld [vmem:[#allocation3 + $0x20] sm:$0xff]
  %v2571 = vld [vmem:[#allocation3 + $0x28] sm:$0xff]
  %v2572 = vld [vmem:[#allocation3 + $0x30] sm:$0xff]
  %v2573 = vld [vmem:[#allocation3 + $0x38] sm:$0xff]
  %v2574 = vld [vmem:[#allocation3 + $0x40] sm:$0xff]
  %v2575 = vld [vmem:[#allocation3 + $0x48] sm:$0xff]
  %v2576 = vld [vmem:[#allocation3 + $0x50] sm:$0xff]
  %v2577 = vld [vmem:[#allocation3 + $0x58] sm:$0xff]
  %v2578 = vld [vmem:[#allocation3 + $0x60] sm:$0xff]
  %v2579 = vld [vmem:[#allocation3 + $0x68] sm:$0xff]
  %v2580 = vld [vmem:[#allocation3 + $0x70] sm:$0xff]
  %v2581 = vld [vmem:[#allocation3 + $0x78] sm:$0xff]
  %v2582 = vld [vmem:[#allocation3 + $0x80] sm:$0xff]
  %v2583 = vld [vmem:[#allocation3 + $0x88] sm:$0xff]
  %v2584 = vadd.f32 %v2566, %v2496
  %v2585 = vadd.f32 %v2567, %v2499
  %v2586 = vadd.f32 %v2568, %v2504
  %v2587 = vadd.f32 %v2569, %v2507
  %v2588 = vadd.f32 %v2570, %v2512
  %v2589 = vadd.f32 %v2571, %v2515
  %v2590 = vadd.f32 %v2572, %v2520
  %v2591 = vadd.f32 %v2573, %v2523
  %v2592 = vadd.f32 %v2574, %v2528
  %v2593 = vadd.f32 %v2575, %v2531
  %v2594 = vadd.f32 %v2576, %v2536
  %v2595 = vadd.f32 %v2577, %v2539
  %v2596 = vadd.f32 %v2578, %v2544
  %v2597 = vadd.f32 %v2579, %v2547
  %v2598 = vadd.f32 %v2580, %v2552
  %v2599 = vadd.f32 %v2581, %v2555
  %v2600 = vadd.f32 %v2582, %v2560
  %v2601 = vadd.f32 %v2583, %v2563
  %2602 = vst.msk [vmem:[#allocation3] sm:$0xff] %vm311, %v2584
  %2603 = vst.msk [vmem:[#allocation3 + $0x8] sm:$0xff] %vm311, %v2585
  %2604 = vst.msk [vmem:[#allocation3 + $0x10] sm:$0xff] %vm311, %v2586
  %2605 = vst.msk [vmem:[#allocation3 + $0x18] sm:$0xff] %vm311, %v2587
  %2606 = vst.msk [vmem:[#allocation3 + $0x20] sm:$0xff] %vm311, %v2588
  %2607 = vst.msk [vmem:[#allocation3 + $0x28] sm:$0xff] %vm311, %v2589
  %2608 = vst.msk [vmem:[#allocation3 + $0x30] sm:$0xff] %vm311, %v2590
  %2609 = vst.msk [vmem:[#allocation3 + $0x38] sm:$0xff] %vm311, %v2591
  %2610 = vst.msk [vmem:[#allocation3 + $0x40] sm:$0xff] %vm311, %v2592
  %2611 = vst.msk [vmem:[#allocation3 + $0x48] sm:$0xff] %vm311, %v2593
  %2612 = vst.msk [vmem:[#allocation3 + $0x50] sm:$0xff] %vm311, %v2594
  %2613 = vst.msk [vmem:[#allocation3 + $0x58] sm:$0xff] %vm311, %v2595
  %2614 = vst.msk [vmem:[#allocation3 + $0x60] sm:$0xff] %vm311, %v2596
  %2615 = vst.msk [vmem:[#allocation3 + $0x68] sm:$0xff] %vm311, %v2597
  %2616 = vst.msk [vmem:[#allocation3 + $0x70] sm:$0xff] %vm311, %v2598
  %2617 = vst.msk [vmem:[#allocation3 + $0x78] sm:$0xff] %vm311, %v2599
  %2618 = vst.msk [vmem:[#allocation3 + $0x80] sm:$0xff] %vm311, %v2600
  %2619 = vst.msk [vmem:[#allocation3 + $0x88] sm:$0xff] %vm311, %v2601
  %v2620 = vld [vmem:[#allocation3] sm:$0xff]
  %v2621 = vld [vmem:[#allocation3 + $0x8] sm:$0xff]
  %v2622 = vld [vmem:[#allocation3 + $0x10] sm:$0xff]
  %v2623 = vld [vmem:[#allocation3 + $0x18] sm:$0xff]
  %v2624 = vld [vmem:[#allocation3 + $0x20] sm:$0xff]
  %v2625 = vld [vmem:[#allocation3 + $0x28] sm:$0xff]
  %v2626 = vld [vmem:[#allocation3 + $0x30] sm:$0xff]
  %v2627 = vld [vmem:[#allocation3 + $0x38] sm:$0xff]
  %v2628 = vld [vmem:[#allocation3 + $0x40] sm:$0xff]
  %v2629 = vld [vmem:[#allocation3 + $0x48] sm:$0xff]
  %v2630 = vld [vmem:[#allocation3 + $0x50] sm:$0xff]
  %v2631 = vld [vmem:[#allocation3 + $0x58] sm:$0xff]
  %v2632 = vld [vmem:[#allocation3 + $0x60] sm:$0xff]
  %v2633 = vld [vmem:[#allocation3 + $0x68] sm:$0xff]
  %v2634 = vld [vmem:[#allocation3 + $0x70] sm:$0xff]
  %v2635 = vld [vmem:[#allocation3 + $0x78] sm:$0xff]
  %v2636 = vld [vmem:[#allocation3 + $0x80] sm:$0xff]
  %v2637 = vld [vmem:[#allocation3 + $0x88] sm:$0xff]
  %v2638 = vld [vmem:[%s3] sm:$0x1]
  %v2640 = vlaneseq
  %v2641 = vshrl.u32 %v2640, 7
  %v2642 = vsub.s32 0, %v2641
  %v2643 = vrot.slane %v2638, %v2642
  %v2645 = vadd.f32 %v2620, %v2643
  %v2646 = vadd.f32 %v2621, %v2643
  %v2647 = vadd.f32 %v2622, %v2643
  %v2648 = vadd.f32 %v2623, %v2643
  %v2649 = vadd.f32 %v2624, %v2643
  %v2650 = vadd.f32 %v2625, %v2643
  %v2651 = vadd.f32 %v2626, %v2643
  %v2652 = vadd.f32 %v2627, %v2643
  %v2653 = vadd.f32 %v2628, %v2643
  %v2654 = vadd.f32 %v2629, %v2643
  %v2655 = vadd.f32 %v2630, %v2643
  %v2656 = vadd.f32 %v2631, %v2643
  %v2657 = vadd.f32 %v2632, %v2643
  %v2658 = vadd.f32 %v2633, %v2643
  %v2659 = vadd.f32 %v2634, %v2643
  %v2660 = vadd.f32 %v2635, %v2643
  %v2661 = vadd.f32 %v2636, %v2643
  %v2662 = vadd.f32 %v2637, %v2643
  %v2663 = vmax.f32 %v2645, 0.0
  %v2664 = vmax.f32 %v2646, 0.0
  %v2665 = vmax.f32 %v2647, 0.0
  %v2666 = vmax.f32 %v2648, 0.0
  %v2667 = vmax.f32 %v2649, 0.0
  %v2668 = vmax.f32 %v2650, 0.0
  %v2669 = vmax.f32 %v2651, 0.0
  %v2670 = vmax.f32 %v2652, 0.0
  %v2671 = vmax.f32 %v2653, 0.0
  %v2672 = vmax.f32 %v2654, 0.0
  %v2673 = vmax.f32 %v2655, 0.0
  %v2674 = vmax.f32 %v2656, 0.0
  %v2675 = vmax.f32 %v2657, 0.0
  %v2676 = vmax.f32 %v2658, 0.0
  %v2677 = vmax.f32 %v2659, 0.0
  %v2678 = vmax.f32 %v2660, 0.0
  %v2679 = vmax.f32 %v2661, 0.0
  %v2680 = vmax.f32 %v2662, 0.0
  %v2681 = vpack.c.bf16 %v2664, %v2663
  %v2682 = vpack.c.bf16 %v2666, %v2665
  %v2683 = vpack.c.bf16 %v2668, %v2667
  %v2684 = vpack.c.bf16 %v2670, %v2669
  %v2685 = vpack.c.bf16 %v2672, %v2671
  %v2686 = vpack.c.bf16 %v2674, %v2673
  %v2687 = vpack.c.bf16 %v2676, %v2675
  %v2688 = vpack.c.bf16 %v2678, %v2677
  %v2689 = vpack.c.bf16 %v2680, %v2679
  %v2699 = vunpack.c.l.b16 %v2681
  %v2700 = vunpack.c.h.b16 %v2681
  %v2701 = vunpack.c.l.b16 %v2682
  %v2702 = vunpack.c.h.b16 %v2682
  %v2703 = vunpack.c.l.b16 %v2683
  %v2704 = vunpack.c.h.b16 %v2683
  %v2705 = vunpack.c.l.b16 %v2684
  %v2706 = vunpack.c.h.b16 %v2684
  %v2707 = vunpack.c.l.b16 %v2685
  %v2708 = vunpack.c.h.b16 %v2685
  %v2709 = vunpack.c.l.b16 %v2686
  %v2710 = vunpack.c.h.b16 %v2686
  %v2711 = vunpack.c.l.b16 %v2687
  %v2712 = vunpack.c.h.b16 %v2687
  %v2713 = vunpack.c.l.b16 %v2688
  %v2714 = vunpack.c.h.b16 %v2688
  %v2715 = vunpack.c.l.b16 %v2689
  %v2716 = vunpack.c.h.b16 %v2689
  %v2717 = vpack.c.b16 %v2699, %v2699
  %v2718 = vpack.c.b16 %v2700, %v2700
  %v2719 = vpack.c.b16 %v2701, %v2701
  %v2720 = vpack.c.b16 %v2702, %v2702
  %v2721 = vpack.c.b16 %v2703, %v2703
  %v2722 = vpack.c.b16 %v2704, %v2704
  %v2723 = vpack.c.b16 %v2705, %v2705
  %v2724 = vpack.c.b16 %v2706, %v2706
  %v2725 = vpack.c.b16 %v2707, %v2707
  %v2726 = vpack.c.b16 %v2708, %v2708
  %v2727 = vpack.c.b16 %v2709, %v2709
  %v2728 = vpack.c.b16 %v2710, %v2710
  %v2729 = vpack.c.b16 %v2711, %v2711
  %v2730 = vpack.c.b16 %v2712, %v2712
  %v2731 = vpack.c.b16 %v2713, %v2713
  %v2732 = vpack.c.b16 %v2714, %v2714
  %v2733 = vpack.c.b16 %v2715, %v2715
  %v2734 = vpack.c.b16 %v2716, %v2716
  %vm2753 = vcmask 257024
  %2754 = vst.msk [vmem:[%s4] sm:$0xf] %vm2753, %v2717
  %2755 = vst.msk [vmem:[%s4 + $0x4] sm:$0xf] %vm2753, %v2718
  %2756 = vst.msk [vmem:[%s4 + $0x8] sm:$0xf] %vm2753, %v2719
  %2757 = vst.msk [vmem:[%s4 + $0xc] sm:$0xf] %vm2753, %v2720
  %2758 = vst.msk [vmem:[%s4 + $0x10] sm:$0xf] %vm2753, %v2721
  %2759 = vst.msk [vmem:[%s4 + $0x14] sm:$0xf] %vm2753, %v2722
  %2760 = vst.msk [vmem:[%s4 + $0x18] sm:$0xf] %vm2753, %v2723
  %2761 = vst.msk [vmem:[%s4 + $0x1c] sm:$0xf] %vm2753, %v2724
  %2762 = vst.msk [vmem:[%s4 + $0x20] sm:$0xf] %vm2753, %v2725
  %2763 = vst.msk [vmem:[%s4 + $0x24] sm:$0xf] %vm2753, %v2726
  %2764 = vst.msk [vmem:[%s4 + $0x28] sm:$0xf] %vm2753, %v2727
  %2765 = vst.msk [vmem:[%s4 + $0x2c] sm:$0xf] %vm2753, %v2728
  %2766 = vst.msk [vmem:[%s4 + $0x30] sm:$0xf] %vm2753, %v2729
  %2767 = vst.msk [vmem:[%s4 + $0x34] sm:$0xf] %vm2753, %v2730
  %2768 = vst.msk [vmem:[%s4 + $0x38] sm:$0xf] %vm2753, %v2731
  %2769 = vst.msk [vmem:[%s4 + $0x3c] sm:$0xf] %vm2753, %v2732
  %2770 = vst.msk [vmem:[%s4 + $0x40] sm:$0xf] %vm2753, %v2733
  %2771 = vst.msk [vmem:[%s4 + $0x44] sm:$0xf] %vm2753, %v2734
  // Predicated region
  $region18: #{tpu_custom_call.1} parent=0 // pred_check
    _
  $region19: #{tpu_custom_call.1} parent=0 // pred_check_branch
    %2773 = sbr.rel (0) target = $region21
  $region20: #{tpu_custom_call.1} parent=0 // pred_region
    _
  $region21: #{tpu_custom_call.1} parent=0 // pred_fallthru
    _
  // Predicated region
  $region22: #{tpu_custom_call.1} parent=0 // pred_check
    _
  $region23: #{tpu_custom_call.1} parent=0 // pred_check_branch
    %2775 = sbr.rel (0) target = $region25
  $region24: #{tpu_custom_call.1} parent=0 // pred_region
    _
  $region25: #{tpu_custom_call.1} parent=0 // pred_fallthru
    _

</llo_original>
